<compile_context>
chip_gen: v7x
topology: tpu7x:2x2x1
jax: 0.10.0
libtpu: 0.0.40
codegen_flags: <defaults>
</compile_context>

<pallas_src>
import functools
import numpy as np
import jax
import jax.numpy as jnp
from jax.experimental import pallas as pl
from jax.experimental.pallas import tpu as pltpu

LOG2PI = float(np.log(2.0 * np.pi))


def _round_up(n, m):
    return (n + m - 1) // m * m


def _cparams(sem):
    return pltpu.CompilerParams(dimension_semantics=sem,
                                vmem_limit_bytes=32 * 1024 * 1024)


# ----------------------------------------------------------------------------
# Pallas kernels
# ----------------------------------------------------------------------------

def _actnorm_invconv_kernel(x_ref, w_ref, b_ref, o_ref):
    # x: (tile, C) bf16 pixels-by-channels; w: (C, C) bf16 folded actnorm+invconv
    # weight; b: (1, C) f32 folded bias.  Pure MXU matmul + bias.
    o_ref[...] = jnp.dot(x_ref[...], w_ref[...],
                         preferred_element_type=jnp.float32) + b_ref[...]


def _coupling_kernel(z1_ref, z2_ref, wb1_ref, bb1_ref, wb2_ref, bb2_ref,
                     wb3_ref, bb3_ref, z2n_ref, ld_ref, acc1_ref, acc3_ref,
                     *, H, WCh):
    # One batch element per grid step.  Lanes are (x, channel)-flattened:
    # lane = x*Cin + c.  3x3 convs = 3 row-shifted matmuls against
    # W-direction block-Toeplitz weights (zero padding handled by dropping
    # out-of-range taps / row shifts into a padded accumulator).
    z1 = z1_ref[0]                                        # (H, W*Ch) bf16

    # conv3x3 #1  +  bias + relu
    acc1_ref[...] = jnp.zeros_like(acc1_ref)
    for dy in range(3):
        acc1_ref[2 - dy:2 - dy + H, :] += jnp.dot(
            z1, wb1_ref[dy], preferred_element_type=jnp.float32)
    h1 = jnp.maximum(acc1_ref[1:H + 1, :] + bb1_ref[...], 0.0).astype(jnp.bfloat16)

    # conv1x1 #2 (block-diagonal) + bias + relu
    h2 = jnp.maximum(
        jnp.dot(h1, wb2_ref[...], preferred_element_type=jnp.float32) + bb2_ref[...],
        0.0).astype(jnp.bfloat16)

    # conv3x3 #3; output lanes pre-permuted to [shift-half | s-half]
    acc3_ref[...] = jnp.zeros_like(acc3_ref)
    for dy in range(3):
        acc3_ref[2 - dy:2 - dy + H, :] += jnp.dot(
            h2, wb3_ref[dy], preferred_element_type=jnp.float32)
    h3 = acc3_ref[1:H + 1, :] + bb3_ref[...]              # (H, 2*W*Ch)

    shift = h3[:, :WCh]
    sraw = h3[:, WCh:]
    # scale = sigmoid(sraw + 2);  log(scale) = -softplus(-(sraw + 2))  (stable)
    xg = sraw + 2.0
    neg = -xg
    log_scale = -(jnp.maximum(neg, 0.0) + jnp.log(1.0 + jnp.exp(-jnp.abs(neg))))
    scale = jnp.exp(log_scale)

    z2n_ref[0] = (z2_ref[0] + shift) * scale
    ld_ref[...] = jnp.broadcast_to(jnp.sum(log_scale), ld_ref.shape)


def _split_prior_kernel(z1_ref, z2_ref, wbp_ref, bbp_ref, lp_ref, accp_ref,
                        *, H, WCh):
    # learned 3x3 prior conv on z1 -> (mean, logs), fused with the diagonal
    # Gaussian log-likelihood of z2 (per-sample scalar output).
    z1 = z1_ref[0]                                        # (H, W*Ch) bf16
    accp_ref[...] = jnp.zeros_like(accp_ref)
    for dy in range(3):
        accp_ref[2 - dy:2 - dy + H, :] += jnp.dot(
            z1, wbp_ref[dy], preferred_element_type=jnp.float32)
    h = accp_ref[1:H + 1, :] + bbp_ref[...]               # (H, 2*W*Ch)
    mean = h[:, :WCh]
    logs = h[:, WCh:]
    z2v = z2_ref[0]
    ll = (-0.5 * LOG2PI) - logs - 0.5 * (z2v - mean) ** 2 * jnp.exp(-2.0 * logs)
    lp_ref[...] = jnp.broadcast_to(jnp.sum(ll), lp_ref.shape)


def _gauss_prior_kernel(z_ref, mean_ref, logs_ref, lp_ref):
    z = z_ref[0]
    m = mean_ref[...]
    ls = logs_ref[...]
    ll = (-0.5 * LOG2PI) - ls - 0.5 * (z - m) ** 2 * jnp.exp(-2.0 * ls)
    lp_ref[...] = jnp.broadcast_to(jnp.sum(ll), lp_ref.shape)


# ----------------------------------------------------------------------------
# Kernel wrappers (thin JAX glue around pallas_call)
# ----------------------------------------------------------------------------

def actnorm_invconv(z, wp_bf16, bp):
    # z: NHWC f32 -> NHWC f32;  out = (z + b)*exp(logs) @ W.T  via folded W', b'
    B, H, W, C = z.shape
    rows = B * H * W
    x = z.reshape(rows, C).astype(jnp.bfloat16)
    rows_p = _round_up(rows, 8)
    tile = min(rows_p, 512)
    total = _round_up(rows_p, tile)
    if total != rows:
        x = jnp.pad(x, ((0, total - rows), (0, 0)))
    nt = total // tile
    out = pl.pallas_call(
        _actnorm_invconv_kernel,
        grid=(nt,),
        in_specs=[pl.BlockSpec((tile, C), lambda i: (i, 0)),
                  pl.BlockSpec((C, C), lambda i: (0, 0)),
                  pl.BlockSpec((1, C), lambda i: (0, 0))],
        out_specs=pl.BlockSpec((tile, C), lambda i: (i, 0)),
        out_shape=jax.ShapeDtypeStruct((total, C), jnp.float32),
        compiler_params=_cparams(("parallel",)),
    )(x, wp_bf16, bp)
    if total != rows:
        out = out[:rows]
    return out.reshape(B, H, W, C)


def coupling_nn(z1, z2, sp):
    # Fused coupling NN + affine coupling transform + logdet reduction.
    B, H, W, Ch = z1.shape
    WCh = W * Ch
    WF = sp['bb1'].shape[-1]
    WC = sp['bb3'].shape[-1]
    z1f = z1.reshape(B, H, WCh).astype(jnp.bfloat16)
    z2f = z2.reshape(B, H, WCh)
    kern = functools.partial(_coupling_kernel, H=H, WCh=WCh)
    z2n, ld = pl.pallas_call(
        kern,
        grid=(B,),
        in_specs=[pl.BlockSpec((1, H, WCh), lambda b: (b, 0, 0)),
                  pl.BlockSpec((1, H, WCh), lambda b: (b, 0, 0)),
                  pl.BlockSpec((3, WCh, WF), lambda b: (0, 0, 0)),
                  pl.BlockSpec((1, WF), lambda b: (0, 0)),
                  pl.BlockSpec((WF, WF), lambda b: (0, 0)),
                  pl.BlockSpec((1, WF), lambda b: (0, 0)),
                  pl.BlockSpec((3, WF, WC), lambda b: (0, 0, 0)),
                  pl.BlockSpec((1, WC), lambda b: (0, 0))],
        out_specs=(pl.BlockSpec((1, H, WCh), lambda b: (b, 0, 0)),
                   pl.BlockSpec((1, 1, 128), lambda b: (b, 0, 0))),
        out_shape=(jax.ShapeDtypeStruct((B, H, WCh), jnp.float32),
                   jax.ShapeDtypeStruct((B, 1, 128), jnp.float32)),
        scratch_shapes=[pltpu.VMEM((H + 2, WF), jnp.float32),
                        pltpu.VMEM((H + 2, WC), jnp.float32)],
        compiler_params=_cparams(("parallel",)),
    )(z1f, z2f, sp['wb1'], sp['bb1'], sp['wb2'], sp['bb2'], sp['wb3'], sp['bb3'])
    return z2n.reshape(B, H, W, Ch), ld[:, 0, 0]


def split_prior_logp(z1, z2, wbp, bbp):
    B, H, W, Ch = z1.shape
    WCh = W * Ch
    WC = bbp.shape[-1]
    z1f = z1.reshape(B, H, WCh).astype(jnp.bfloat16)
    z2f = z2.reshape(B, H, WCh)
    kern = functools.partial(_split_prior_kernel, H=H, WCh=WCh)
    lp = pl.pallas_call(
        kern,
        grid=(B,),
        in_specs=[pl.BlockSpec((1, H, WCh), lambda b: (b, 0, 0)),
                  pl.BlockSpec((1, H, WCh), lambda b: (b, 0, 0)),
                  pl.BlockSpec((3, WCh, WC), lambda b: (0, 0, 0)),
                  pl.BlockSpec((1, WC), lambda b: (0, 0))],
        out_specs=pl.BlockSpec((1, 1, 128), lambda b: (b, 0, 0)),
        out_shape=jax.ShapeDtypeStruct((B, 1, 128), jnp.float32),
        scratch_shapes=[pltpu.VMEM((H + 2, WC), jnp.float32)],
        compiler_params=_cparams(("parallel",)),
    )(z1f, z2f, wbp, bbp)
    return lp[:, 0, 0]


def gaussian_prior_logp(z, mean_flat, logs_flat):
    B, H, W, C = z.shape
    WC = W * C
    zf = z.reshape(B, H, WC)
    lp = pl.pallas_call(
        _gauss_prior_kernel,
        grid=(B,),
        in_specs=[pl.BlockSpec((1, H, WC), lambda b: (b, 0, 0)),
                  pl.BlockSpec((H, WC), lambda b: (0, 0)),
                  pl.BlockSpec((H, WC), lambda b: (0, 0))],
        out_specs=pl.BlockSpec((1, 1, 128), lambda b: (b, 0, 0)),
        out_shape=jax.ShapeDtypeStruct((B, 1, 128), jnp.float32),
        compiler_params=_cparams(("parallel",)),
    )(zf, mean_flat, logs_flat)
    return lp[:, 0, 0]


# ----------------------------------------------------------------------------
# Flow layers (NHWC end-to-end inside the loop)
# ----------------------------------------------------------------------------

def squeeze2_nhwc(x):
    B, H, W, C = x.shape
    x = x.reshape(B, H // 2, 2, W // 2, 2, C)
    x = x.transpose(0, 1, 3, 5, 2, 4)
    return x.reshape(B, H // 2, W // 2, C * 4)


def flow_step(z, logdet, sp):
    B, H, W, C = z.shape
    Ch = C // 2
    y = actnorm_invconv(z, sp['Wp'], sp['bp'])
    logdet = logdet + sp['ld_const']                     # H*W*(sum(logs)+log|det W|)
    z1, z2 = y[..., :Ch], y[..., Ch:]
    z2n, ld = coupling_nn(z1, z2, sp)
    return jnp.concatenate([z1, z2n], axis=-1), logdet + ld


def split_layer(z, logpz, wbp, bbp):
    Ch = z.shape[-1] // 2
    z1, z2 = z[..., :Ch], z[..., Ch:]
    return z1, logpz + split_prior_logp(z1, z2, wbp, bbp)


# ----------------------------------------------------------------------------
# Parameter init (deterministic, synthetic) and one-time host-side preprocess
# ----------------------------------------------------------------------------

def init_params(key, input_shape, filter_size, L, K):
    C, H, W = input_shape
    params = {'levels': []}
    for i in range(L):
        C, H, W = C * 4, H // 2, W // 2
        steps = []
        for _ in range(K):
            key, *ks = jax.random.split(key, 7)
            Ch = C // 2
            steps.append(dict(
                b=0.1 * jax.random.normal(ks[0], (C,), jnp.float32),
                logs=0.1 * jax.random.normal(ks[1], (C,), jnp.float32),
                W=jnp.linalg.qr(jax.random.normal(ks[2], (C, C), jnp.float32))[0],
                w1=0.05 * jax.random.normal(ks[3], (filter_size, Ch, 3, 3), jnp.float32),
                b1=jnp.zeros((filter_size,), jnp.float32),
                w2=0.05 * jax.random.normal(ks[4], (filter_size, filter_size, 1, 1), jnp.float32),
                b2=jnp.zeros((filter_size,), jnp.float32),
                w3=0.01 * jax.random.normal(ks[5], (C, filter_size, 3, 3), jnp.float32),
                b3=jnp.zeros((C,), jnp.float32),
            ))
        level = dict(steps=steps)
        if i < L - 1:
            key, kp = jax.random.split(key)
            level['split_w'] = 0.01 * jax.random.normal(kp, (C, C // 2, 3, 3), jnp.float32)
            level['split_b'] = jnp.zeros((C,), jnp.float32)
            C = C // 2
        params['levels'].append(level)
    params['prior_mean'] = jnp.zeros((1, C, H, W), jnp.float32)
    params['prior_logs'] = jnp.zeros((1, C, H, W), jnp.float32)
    return params


def _toeplitz3x3(w, Wd):
    # w: (Cout, Cin, 3, 3) -> (3, Wd*Cin, Wd*Cout) block-Toeplitz in the W dim.
    # entry [dy, x_in*Cin + ci, x_out*Cout + co] = w[co, ci, dy, x_in - x_out + 1]
    Cout, Cin = w.shape[0], w.shape[1]
    Wb = np.zeros((3, Wd * Cin, Wd * Cout), np.float32)
    for dy in range(3):
        for dx in range(3):
            blk = w[:, :, dy, dx].T                      # (Cin, Cout)
            for xo in range(Wd):
                xi = xo + dx - 1
                if 0 <= xi < Wd:
                    Wb[dy, xi * Cin:(xi + 1) * Cin, xo * Cout:(xo + 1) * Cout] = blk
    return Wb


def _halfsplit_perm(Wd, Cout):
    # column permutation turning the standard (x-major, channel-minor) output
    # layout into [first channel-half | second channel-half], each x-major.
    Ch = Cout // 2
    perm = np.empty(Wd * Cout, np.int64)
    for half in range(2):
        for x in range(Wd):
            for c in range(Ch):
                perm[half * Wd * Ch + x * Ch + c] = x * Cout + half * Ch + c
    return perm


def preprocess_params(params, input_shape, L, K):
    """One-time host-side prep: fold ActNorm into the 1x1-conv weight, take
    slogdet, build Toeplitz/block-diag conv matrices with the half-split output
    permutation, cast matmul operands to bf16."""
    C, H, W = input_shape
    prep = {'levels': []}
    for i in range(L):
        C, H, W = C * 4, H // 2, W // 2
        raw = params['levels'][i]
        steps = []
        for k in range(K):
            p = raw['steps'][k]
            b = np.asarray(p['b'], np.float32)
            logs = np.asarray(p['logs'], np.float32)
            Wm = np.asarray(p['W'], np.float32)
            s = np.exp(logs)
            Wp = s[:, None] * Wm.T                       # out = x @ Wp + bp
            bp = (b * s) @ Wm.T
            ld_const = np.float32(H * W * (logs.sum() + np.linalg.slogdet(Wm)[1]))

            w1 = np.asarray(p['w1'], np.float32); b1 = np.asarray(p['b1'], np.float32)
            w2 = np.asarray(p['w2'], np.float32); b2 = np.asarray(p['b2'], np.float32)
            w3 = np.asarray(p['w3'], np.float32); b3 = np.asarray(p['b3'], np.float32)
            perm = _halfsplit_perm(W, C)
            wb1 = _toeplitz3x3(w1, W)                                    # (3, W*Ch, W*F)
            wb2 = np.kron(np.eye(W, dtype=np.float32), w2[:, :, 0, 0].T)  # (W*F, W*F)
            wb3 = _toeplitz3x3(w3, W)[:, :, perm]                        # (3, W*F, W*C)
            steps.append(dict(
                Wp=jnp.asarray(Wp, jnp.bfloat16),
                bp=jnp.asarray(bp[None, :], jnp.float32),
                ld_const=jnp.asarray(ld_const, jnp.float32),
                wb1=jnp.asarray(wb1, jnp.bfloat16),
                bb1=jnp.asarray(np.tile(b1, W)[None, :], jnp.float32),
                wb2=jnp.asarray(wb2, jnp.bfloat16),
                bb2=jnp.asarray(np.tile(b2, W)[None, :], jnp.float32),
                wb3=jnp.asarray(wb3, jnp.bfloat16),
                bb3=jnp.asarray(np.tile(b3, W)[perm][None, :], jnp.float32),
            ))
        level = {'steps': steps}
        if i < L - 1:
            wp = np.asarray(raw['split_w'], np.float32)   # (C, C//2, 3, 3)
            bpz = np.asarray(raw['split_b'], np.float32)  # (C,)
            perm = _halfsplit_perm(W, C)
            level['wbp'] = jnp.asarray(_toeplitz3x3(wp, W)[:, :, perm], jnp.bfloat16)
            level['bbp'] = jnp.asarray(np.tile(bpz, W)[perm][None, :], jnp.float32)
            C = C // 2
        prep['levels'].append(level)
    pm = np.asarray(params['prior_mean'], np.float32)[0].transpose(1, 2, 0).reshape(H, W * C)
    pls = np.asarray(params['prior_logs'], np.float32)[0].transpose(1, 2, 0).reshape(H, W * C)
    prep['prior_mean'] = jnp.asarray(pm, jnp.float32)
    prep['prior_logs'] = jnp.asarray(pls, jnp.float32)
    return prep


# ----------------------------------------------------------------------------
# FlowModel.normalizing_flow (forward, non-reverse) path
# ----------------------------------------------------------------------------

def flow_model_forward(x_image, prep, noise_key, *, L, K, n_bits_x=8):
    n_bins = 2 ** n_bits_x
    B, C0, H0, W0 = x_image.shape
    # _dequantize: add U(0, 1/n_bins) noise, per-sample logdet = -log(n_bins)*C*H*W
    noise = jax.random.uniform(noise_key, x_image.shape, jnp.float32, 0.0, 1.0 / n_bins)
    z = (x_image + noise).transpose(0, 2, 3, 1)           # -> NHWC once
    logdet = jnp.full((B,), -np.log(n_bins) * C0 * H0 * W0, dtype=jnp.float32)
    logpz = jnp.zeros((B,), jnp.float32)

    for i in range(L):
        lvl = prep['levels'][i]
        z = squeeze2_nhwc(z)
        for k in range(K):
            z, logdet = flow_step(z, logdet, lvl['steps'][k])
        if i < L - 1:
            z, logpz = split_layer(z, logpz, lvl['wbp'], lvl['bbp'])
    logpz = logpz + gaussian_prior_logp(z, prep['prior_mean'], prep['prior_logs'])

    z_out = z.transpose(0, 3, 1, 2)                        # back to NCHW once
    x_bpd = -(logdet + logpz) / float(np.log(2.0) * C0 * H0 * W0)
    return z_out, x_bpd


if __name__ == "__main__":
    key = jax.random.PRNGKey(0)
    pkey, xkey, nkey = jax.random.split(key, 3)

    input_shape = (4, 16, 16)      # (C, H, W)
    filter_size, L, K, bsz = 32, 2, 2, 2

    params = init_params(pkey, input_shape, filter_size, L, K)
    prep = preprocess_params(params, input_shape, L, K)   # one-time, host side
    x_image = jax.random.uniform(xkey, (bsz,) + input_shape, jnp.float32)  # NCHW

    fwd = jax.jit(functools.partial(flow_model_forward, L=L, K=K))
    z, x_bpd = fwd(x_image, prep, nkey)
    jax.block_until_ready((z, x_bpd))

    assert z.shape == (bsz, 32, 4, 4) and x_bpd.shape == (bsz,)
    assert np.all(np.isfinite(np.asarray(x_bpd))) and np.all(np.isfinite(np.asarray(z)))
    print("KERNEL_OK")
</pallas_src>

<mosaic_0001>
module attributes {stable_mosaic.version = 11 : i64} {
  func.func @_actnorm_invconv_kernel(%arg0: i32, %arg1: memref<128x16xbf16, #tpu.memory_space<vmem>>, %arg2: memref<16x16xbf16, #tpu.memory_space<vmem>>, %arg3: memref<1x16xf32, #tpu.memory_space<vmem>>, %arg4: memref<128x16xf32, #tpu.memory_space<vmem>>) attributes {dimension_semantics = [#tpu.dimension_semantics<parallel>], iteration_bounds = array<i64: 1>, scalar_prefetch = 0 : i64, scratch_operands = 0 : i64, tpu.core_type = #tpu.core_type<tc>, window_params = [{transform_indices = @transform_0, window_bounds = array<i64: 128, 16>}, {pipeline_mode = #tpu.pipeline_mode<synchronous>, transform_indices = @transform_1, window_bounds = array<i64: 16, 16>}, {pipeline_mode = #tpu.pipeline_mode<synchronous>, transform_indices = @transform_2, window_bounds = array<i64: 1, 16>}, {transform_indices = @transform_3, window_bounds = array<i64: 128, 16>}]} {
    %c0 = arith.constant 0 : index
    %c0_0 = arith.constant 0 : index
    %0 = vector.load %arg1[%c0, %c0_0] : memref<128x16xbf16, #tpu.memory_space<vmem>>, vector<128x16xbf16>
    %c0_1 = arith.constant 0 : index
    %c0_2 = arith.constant 0 : index
    %1 = vector.load %arg2[%c0_1, %c0_2] : memref<16x16xbf16, #tpu.memory_space<vmem>>, vector<16x16xbf16>
    %cst = arith.constant dense<0.000000e+00> : vector<128x16xf32>
    %2 = tpu.matmul %0, %1, %cst {dimension_numbers = #tpu.dot_dimension_numbers<[1], [0], [0], [1], [0, 0, 1, 1], [], []>} : vector<128x16xbf16>, vector<16x16xbf16>, vector<128x16xf32> -> vector<128x16xf32>
    %c0_3 = arith.constant 0 : index
    %c0_4 = arith.constant 0 : index
    %3 = vector.load %arg3[%c0_3, %c0_4] : memref<1x16xf32, #tpu.memory_space<vmem>>, vector<1x16xf32>
    %4 = vector.broadcast %3 : vector<1x16xf32> to vector<128x16xf32>
    %5 = arith.addf %2, %4 : vector<128x16xf32>
    %c0_5 = arith.constant 0 : index
    %c0_6 = arith.constant 0 : index
    %6 = vector.load %arg4[%c0_5, %c0_6] : memref<128x16xf32, #tpu.memory_space<vmem>>, vector<128x16xf32>
    tpu.vector_store %arg4[%c0_5, %c0_6], %5 {strides = array<i32>} : memref<128x16xf32, #tpu.memory_space<vmem>>, vector<128x16xf32>,
    return
  }
  func.func @transform_0(%arg0: i32) -> (i32, i32) {
    %c0_i32 = arith.constant 0 : i32
    %c0_i32_0 = arith.constant 0 : i32
    return %arg0, %c0_i32 : i32, i32
  }
  func.func @transform_1(%arg0: i32) -> (i32, i32) {
    %c0_i32 = arith.constant 0 : i32
    %c0_i32_0 = arith.constant 0 : i32
    %c0_i32_1 = arith.constant 0 : i32
    return %c0_i32, %c0_i32_0 : i32, i32
  }
  func.func @transform_2(%arg0: i32) -> (i32, i32) {
    %c0_i32 = arith.constant 0 : i32
    %c0_i32_0 = arith.constant 0 : i32
    %c0_i32_1 = arith.constant 0 : i32
    return %c0_i32, %c0_i32_0 : i32, i32
  }
  func.func @transform_3(%arg0: i32) -> (i32, i32) {
    %c0_i32 = arith.constant 0 : i32
    %c0_i32_0 = arith.constant 0 : i32
    return %arg0, %c0_i32 : i32, i32
  }
}

module attributes {stable_mosaic.version = 11 : i64} {
  func.func @_coupling_kernel(%arg0: i32, %arg1: memref<1x8x64xbf16, #tpu.memory_space<vmem>>, %arg2: memref<1x8x64xf32, #tpu.memory_space<vmem>>, %arg3: memref<3x64x256xbf16, #tpu.memory_space<vmem>>, %arg4: memref<1x256xf32, #tpu.memory_space<vmem>>, %arg5: memref<256x256xbf16, #tpu.memory_space<vmem>>, %arg6: memref<1x256xf32, #tpu.memory_space<vmem>>, %arg7: memref<3x256x128xbf16, #tpu.memory_space<vmem>>, %arg8: memref<1x128xf32, #tpu.memory_space<vmem>>, %arg9: memref<1x8x64xf32, #tpu.memory_space<vmem>>, %arg10: memref<1x1x128xf32, #tpu.memory_space<vmem>>, %arg11: memref<10x256xf32, #tpu.memory_space<vmem>>, %arg12: memref<10x128xf32, #tpu.memory_space<vmem>>) attributes {dimension_semantics = [#tpu.dimension_semantics<parallel>], iteration_bounds = array<i64: 2>, scalar_prefetch = 0 : i64, scratch_operands = 2 : i64, tpu.core_type = #tpu.core_type<tc>, window_params = [{transform_indices = @transform_0, window_bounds = array<i64: 1, 8, 64>}, {transform_indices = @transform_1, window_bounds = array<i64: 1, 8, 64>}, {pipeline_mode = #tpu.pipeline_mode<synchronous>, transform_indices = @transform_2, window_bounds = array<i64: 3, 64, 256>}, {pipeline_mode = #tpu.pipeline_mode<synchronous>, transform_indices = @transform_3, window_bounds = array<i64: 1, 256>}, {pipeline_mode = #tpu.pipeline_mode<synchronous>, transform_indices = @transform_4, window_bounds = array<i64: 256, 256>}, {pipeline_mode = #tpu.pipeline_mode<synchronous>, transform_indices = @transform_5, window_bounds = array<i64: 1, 256>}, {pipeline_mode = #tpu.pipeline_mode<synchronous>, transform_indices = @transform_6, window_bounds = array<i64: 3, 256, 128>}, {pipeline_mode = #tpu.pipeline_mode<synchronous>, transform_indices = @transform_7, window_bounds = array<i64: 1, 128>}, {transform_indices = @transform_8, window_bounds = array<i64: 1, 8, 64>}, {transform_indices = @transform_9, window_bounds = array<i64: 1, 1, 128>}]} {
    %c0 = arith.constant 0 : index
    %c0_0 = arith.constant 0 : index
    %c0_1 = arith.constant 0 : index
    %0 = vector.load %arg1[%c0, %c0_0, %c0_1] : memref<1x8x64xbf16, #tpu.memory_space<vmem>>, vector<1x8x64xbf16>
    %1 = vector.shape_cast %0 : vector<1x8x64xbf16> to vector<8x64xbf16>
    %cst = arith.constant 0.000000e+00 : f32
    %2 = vector.broadcast %cst : f32 to vector<10x256xf32>
    %c0_2 = arith.constant 0 : index
    %c0_3 = arith.constant 0 : index
    %3 = vector.load %arg11[%c0_2, %c0_3] : memref<10x256xf32, #tpu.memory_space<vmem>>, vector<10x256xf32>
    tpu.vector_store %arg11[%c0_2, %c0_3], %2 {strides = array<i32>} : memref<10x256xf32, #tpu.memory_space<vmem>>, vector<10x256xf32>,
    %c2 = arith.constant 2 : index
    %c0_4 = arith.constant 0 : index
    %4 = vector.load %arg11[%c2, %c0_4] : memref<10x256xf32, #tpu.memory_space<vmem>>, vector<8x256xf32>
    %c0_5 = arith.constant 0 : index
    %c0_6 = arith.constant 0 : index
    %c0_7 = arith.constant 0 : index
    %5 = vector.load %arg3[%c0_5, %c0_6, %c0_7] : memref<3x64x256xbf16, #tpu.memory_space<vmem>>, vector<1x64x256xbf16>
    %6 = vector.shape_cast %5 : vector<1x64x256xbf16> to vector<64x256xbf16>
    %cst_8 = arith.constant dense<0.000000e+00> : vector<8x256xf32>
    %7 = tpu.matmul %1, %6, %cst_8 {dimension_numbers = #tpu.dot_dimension_numbers<[1], [0], [0], [1], [0, 0, 1, 1], [], []>} : vector<8x64xbf16>, vector<64x256xbf16>, vector<8x256xf32> -> vector<8x256xf32>
    %8 = arith.addf %4, %7 : vector<8x256xf32>
    %c2_9 = arith.constant 2 : index
    %c0_10 = arith.constant 0 : index
    %9 = vector.load %arg11[%c2_9, %c0_10] : memref<10x256xf32, #tpu.memory_space<vmem>>, vector<8x256xf32>
    tpu.vector_store %arg11[%c2_9, %c0_10], %8 {strides = array<i32>} : memref<10x256xf32, #tpu.memory_space<vmem>>, vector<8x256xf32>,
    %c1 = arith.constant 1 : index
    %c0_11 = arith.constant 0 : index
    %10 = vector.load %arg11[%c1, %c0_11] : memref<10x256xf32, #tpu.memory_space<vmem>>, vector<8x256xf32>
    %c1_12 = arith.constant 1 : index
    %c0_13 = arith.constant 0 : index
    %c0_14 = arith.constant 0 : index
    %11 = vector.load %arg3[%c1_12, %c0_13, %c0_14] : memref<3x64x256xbf16, #tpu.memory_space<vmem>>, vector<1x64x256xbf16>
    %12 = vector.shape_cast %11 : vector<1x64x256xbf16> to vector<64x256xbf16>
    %cst_15 = arith.constant dense<0.000000e+00> : vector<8x256xf32>
    %13 = tpu.matmul %1, %12, %cst_15 {dimension_numbers = #tpu.dot_dimension_numbers<[1], [0], [0], [1], [0, 0, 1, 1], [], []>} : vector<8x64xbf16>, vector<64x256xbf16>, vector<8x256xf32> -> vector<8x256xf32>
    %14 = arith.addf %10, %13 : vector<8x256xf32>
    %c1_16 = arith.constant 1 : index
    %c0_17 = arith.constant 0 : index
    %15 = vector.load %arg11[%c1_16, %c0_17] : memref<10x256xf32, #tpu.memory_space<vmem>>, vector<8x256xf32>
    tpu.vector_store %arg11[%c1_16, %c0_17], %14 {strides = array<i32>} : memref<10x256xf32, #tpu.memory_space<vmem>>, vector<8x256xf32>,
    %c0_18 = arith.constant 0 : index
    %c0_19 = arith.constant 0 : index
    %16 = vector.load %arg11[%c0_18, %c0_19] : memref<10x256xf32, #tpu.memory_space<vmem>>, vector<8x256xf32>
    %c2_20 = arith.constant 2 : index
    %c0_21 = arith.constant 0 : index
    %c0_22 = arith.constant 0 : index
    %17 = vector.load %arg3[%c2_20, %c0_21, %c0_22] : memref<3x64x256xbf16, #tpu.memory_space<vmem>>, vector<1x64x256xbf16>
    %18 = vector.shape_cast %17 : vector<1x64x256xbf16> to vector<64x256xbf16>
    %cst_23 = arith.constant dense<0.000000e+00> : vector<8x256xf32>
    %19 = tpu.matmul %1, %18, %cst_23 {dimension_numbers = #tpu.dot_dimension_numbers<[1], [0], [0], [1], [0, 0, 1, 1], [], []>} : vector<8x64xbf16>, vector<64x256xbf16>, vector<8x256xf32> -> vector<8x256xf32>
    %20 = arith.addf %16, %19 : vector<8x256xf32>
    %c0_24 = arith.constant 0 : index
    %c0_25 = arith.constant 0 : index
    %21 = vector.load %arg11[%c0_24, %c0_25] : memref<10x256xf32, #tpu.memory_space<vmem>>, vector<8x256xf32>
    tpu.vector_store %arg11[%c0_24, %c0_25], %20 {strides = array<i32>} : memref<10x256xf32, #tpu.memory_space<vmem>>, vector<8x256xf32>,
    %c1_26 = arith.constant 1 : index
    %c0_27 = arith.constant 0 : index
    %22 = vector.load %arg11[%c1_26, %c0_27] : memref<10x256xf32, #tpu.memory_space<vmem>>, vector<8x256xf32>
    %c0_28 = arith.constant 0 : index
    %c0_29 = arith.constant 0 : index
    %23 = vector.load %arg4[%c0_28, %c0_29] : memref<1x256xf32, #tpu.memory_space<vmem>>, vector<1x256xf32>
    %24 = vector.broadcast %23 : vector<1x256xf32> to vector<8x256xf32>
    %25 = arith.addf %22, %24 : vector<8x256xf32>
    %cst_30 = arith.constant 0.000000e+00 : f32
    %26 = vector.broadcast %cst_30 : f32 to vector<8x256xf32>
    %27 = arith.maximumf %25, %26 : vector<8x256xf32>
    %28 = arith.truncf %27 : vector<8x256xf32> to vector<8x256xbf16>
    %c0_31 = arith.constant 0 : index
    %c0_32 = arith.constant 0 : index
    %29 = vector.load %arg5[%c0_31, %c0_32] : memref<256x256xbf16, #tpu.memory_space<vmem>>, vector<256x256xbf16>
    %cst_33 = arith.constant dense<0.000000e+00> : vector<8x256xf32>
    %30 = tpu.matmul %28, %29, %cst_33 {dimension_numbers = #tpu.dot_dimension_numbers<[1], [0], [0], [1], [0, 0, 1, 1], [], []>} : vector<8x256xbf16>, vector<256x256xbf16>, vector<8x256xf32> -> vector<8x256xf32>
    %c0_34 = arith.constant 0 : index
    %c0_35 = arith.constant 0 : index
    %31 = vector.load %arg6[%c0_34, %c0_35] : memref<1x256xf32, #tpu.memory_space<vmem>>, vector<1x256xf32>
    %32 = vector.broadcast %31 : vector<1x256xf32> to vector<8x256xf32>
    %33 = arith.addf %30, %32 : vector<8x256xf32>
    %cst_36 = arith.constant 0.000000e+00 : f32
    %34 = vector.broadcast %cst_36 : f32 to vector<8x256xf32>
    %35 = arith.maximumf %33, %34 : vector<8x256xf32>
    %36 = arith.truncf %35 : vector<8x256xf32> to vector<8x256xbf16>
    %cst_37 = arith.constant 0.000000e+00 : f32
    %37 = vector.broadcast %cst_37 : f32 to vector<10x128xf32>
    %c0_38 = arith.constant 0 : index
    %c0_39 = arith.constant 0 : index
    %38 = vector.load %arg12[%c0_38, %c0_39] : memref<10x128xf32, #tpu.memory_space<vmem>>, vector<10x128xf32>
    tpu.vector_store %arg12[%c0_38, %c0_39], %37 {strides = array<i32>} : memref<10x128xf32, #tpu.memory_space<vmem>>, vector<10x128xf32>,
    %c2_40 = arith.constant 2 : index
    %c0_41 = arith.constant 0 : index
    %39 = vector.load %arg12[%c2_40, %c0_41] : memref<10x128xf32, #tpu.memory_space<vmem>>, vector<8x128xf32>
    %c0_42 = arith.constant 0 : index
    %c0_43 = arith.constant 0 : index
    %c0_44 = arith.constant 0 : index
    %40 = vector.load %arg7[%c0_42, %c0_43, %c0_44] : memref<3x256x128xbf16, #tpu.memory_space<vmem>>, vector<1x256x128xbf16>
    %41 = vector.shape_cast %40 : vector<1x256x128xbf16> to vector<256x128xbf16>
    %cst_45 = arith.constant dense<0.000000e+00> : vector<8x128xf32>
    %42 = tpu.matmul %36, %41, %cst_45 {dimension_numbers = #tpu.dot_dimension_numbers<[1], [0], [0], [1], [0, 0, 1, 1], [], []>} : vector<8x256xbf16>, vector<256x128xbf16>, vector<8x128xf32> -> vector<8x128xf32>
    %43 = arith.addf %39, %42 : vector<8x128xf32>
    %c2_46 = arith.constant 2 : index
    %c0_47 = arith.constant 0 : index
    %44 = vector.load %arg12[%c2_46, %c0_47] : memref<10x128xf32, #tpu.memory_space<vmem>>, vector<8x128xf32>
    tpu.vector_store %arg12[%c2_46, %c0_47], %43 {strides = array<i32>} : memref<10x128xf32, #tpu.memory_space<vmem>>, vector<8x128xf32>,
    %c1_48 = arith.constant 1 : index
    %c0_49 = arith.constant 0 : index
    %45 = vector.load %arg12[%c1_48, %c0_49] : memref<10x128xf32, #tpu.memory_space<vmem>>, vector<8x128xf32>
    %c1_50 = arith.constant 1 : index
    %c0_51 = arith.constant 0 : index
    %c0_52 = arith.constant 0 : index
    %46 = vector.load %arg7[%c1_50, %c0_51, %c0_52] : memref<3x256x128xbf16, #tpu.memory_space<vmem>>, vector<1x256x128xbf16>
    %47 = vector.shape_cast %46 : vector<1x256x128xbf16> to vector<256x128xbf16>
    %cst_53 = arith.constant dense<0.000000e+00> : vector<8x128xf32>
    %48 = tpu.matmul %36, %47, %cst_53 {dimension_numbers = #tpu.dot_dimension_numbers<[1], [0], [0], [1], [0, 0, 1, 1], [], []>} : vector<8x256xbf16>, vector<256x128xbf16>, vector<8x128xf32> -> vector<8x128xf32>
    %49 = arith.addf %45, %48 : vector<8x128xf32>
    %c1_54 = arith.constant 1 : index
    %c0_55 = arith.constant 0 : index
    %50 = vector.load %arg12[%c1_54, %c0_55] : memref<10x128xf32, #tpu.memory_space<vmem>>, vector<8x128xf32>
    tpu.vector_store %arg12[%c1_54, %c0_55], %49 {strides = array<i32>} : memref<10x128xf32, #tpu.memory_space<vmem>>, vector<8x128xf32>,
    %c0_56 = arith.constant 0 : index
    %c0_57 = arith.constant 0 : index
    %51 = vector.load %arg12[%c0_56, %c0_57] : memref<10x128xf32, #tpu.memory_space<vmem>>, vector<8x128xf32>
    %c2_58 = arith.constant 2 : index
    %c0_59 = arith.constant 0 : index
    %c0_60 = arith.constant 0 : index
    %52 = vector.load %arg7[%c2_58, %c0_59, %c0_60] : memref<3x256x128xbf16, #tpu.memory_space<vmem>>, vector<1x256x128xbf16>
    %53 = vector.shape_cast %52 : vector<1x256x128xbf16> to vector<256x128xbf16>
    %cst_61 = arith.constant dense<0.000000e+00> : vector<8x128xf32>
    %54 = tpu.matmul %36, %53, %cst_61 {dimension_numbers = #tpu.dot_dimension_numbers<[1], [0], [0], [1], [0, 0, 1, 1], [], []>} : vector<8x256xbf16>, vector<256x128xbf16>, vector<8x128xf32> -> vector<8x128xf32>
    %55 = arith.addf %51, %54 : vector<8x128xf32>
    %c0_62 = arith.constant 0 : index
    %c0_63 = arith.constant 0 : index
    %56 = vector.load %arg12[%c0_62, %c0_63] : memref<10x128xf32, #tpu.memory_space<vmem>>, vector<8x128xf32>
    tpu.vector_store %arg12[%c0_62, %c0_63], %55 {strides = array<i32>} : memref<10x128xf32, #tpu.memory_space<vmem>>, vector<8x128xf32>,
    %c1_64 = arith.constant 1 : index
    %c0_65 = arith.constant 0 : index
    %57 = vector.load %arg12[%c1_64, %c0_65] : memref<10x128xf32, #tpu.memory_space<vmem>>, vector<8x128xf32>
    %c0_66 = arith.constant 0 : index
    %c0_67 = arith.constant 0 : index
    %58 = vector.load %arg8[%c0_66, %c0_67] : memref<1x128xf32, #tpu.memory_space<vmem>>, vector<1x128xf32>
    %59 = vector.broadcast %58 : vector<1x128xf32> to vector<8x128xf32>
    %60 = arith.addf %57, %59 : vector<8x128xf32>
    %61 = vector.extract_strided_slice %60 {offsets = [0, 0], sizes = [8, 64], strides = [1, 1]} : vector<8x128xf32> to vector<8x64xf32>
    %62 = vector.extract_strided_slice %60 {offsets = [0, 64], sizes = [8, 64], strides = [1, 1]} : vector<8x128xf32> to vector<8x64xf32>
    %cst_68 = arith.constant 2.000000e+00 : f32
    %63 = vector.broadcast %cst_68 : f32 to vector<8x64xf32>
    %64 = arith.addf %62, %63 : vector<8x64xf32>
    %cst_69 = arith.constant 0.000000e+00 : f32
    %65 = vector.broadcast %cst_69 : f32 to vector<8x64xf32>
    %66 = arith.subf %65, %64 : vector<8x64xf32>
    %cst_70 = arith.constant 0.000000e+00 : f32
    %67 = vector.broadcast %cst_70 : f32 to vector<8x64xf32>
    %68 = arith.maximumf %66, %67 : vector<8x64xf32>
    %69 = math.absf %66 : vector<8x64xf32>
    %cst_71 = arith.constant 0.000000e+00 : f32
    %70 = vector.broadcast %cst_71 : f32 to vector<8x64xf32>
    %71 = arith.subf %70, %69 : vector<8x64xf32>
    %72 = math.exp %71 : vector<8x64xf32>
    %cst_72 = arith.constant 1.000000e+00 : f32
    %73 = vector.broadcast %cst_72 : f32 to vector<8x64xf32>
    %74 = arith.addf %73, %72 : vector<8x64xf32>
    %75 = math.log %74 : vector<8x64xf32>
    %76 = arith.addf %68, %75 : vector<8x64xf32>
    %cst_73 = arith.constant 0.000000e+00 : f32
    %77 = vector.broadcast %cst_73 : f32 to vector<8x64xf32>
    %78 = arith.subf %77, %76 : vector<8x64xf32>
    %79 = math.exp %78 : vector<8x64xf32>
    %c0_74 = arith.constant 0 : index
    %c0_75 = arith.constant 0 : index
    %c0_76 = arith.constant 0 : index
    %80 = vector.load %arg2[%c0_74, %c0_75, %c0_76] : memref<1x8x64xf32, #tpu.memory_space<vmem>>, vector<1x8x64xf32>
    %81 = vector.shape_cast %80 : vector<1x8x64xf32> to vector<8x64xf32>
    %82 = arith.addf %81, %61 : vector<8x64xf32>
    %83 = arith.mulf %82, %79 : vector<8x64xf32>
    %c0_77 = arith.constant 0 : index
    %c0_78 = arith.constant 0 : index
    %c0_79 = arith.constant 0 : index
    %84 = vector.load %arg9[%c0_77, %c0_78, %c0_79] : memref<1x8x64xf32, #tpu.memory_space<vmem>>, vector<1x8x64xf32>
    %85 = vector.shape_cast %84 : vector<1x8x64xf32> to vector<8x64xf32>
    %86 = vector.shape_cast %83 : vector<8x64xf32> to vector<1x8x64xf32>
    tpu.vector_store %arg9[%c0_77, %c0_78, %c0_79], %86 {strides = array<i32>} : memref<1x8x64xf32, #tpu.memory_space<vmem>>, vector<1x8x64xf32>,
    %87 = vector.shape_cast %78 : vector<8x64xf32> to vector<1x8x64xf32>
    %cst_80 = arith.constant dense<0.000000e+00> : vector<1xf32>
    %88 = vector.multi_reduction <add>, %87, %cst_80 [1, 2] : vector<1x8x64xf32> to vector<1xf32>
    %89 = vector.shape_cast %88 : vector<1xf32> to vector<1x1x1xf32>
    %90 = vector.extract %89[0, 0, 0] : f32 from vector<1x1x1xf32>
    %91 = vector.broadcast %90 : f32 to vector<1x1x128xf32>
    %c0_81 = arith.constant 0 : index
    %c0_82 = arith.constant 0 : index
    %c0_83 = arith.constant 0 : index
    %92 = vector.load %arg10[%c0_81, %c0_82, %c0_83] : memref<1x1x128xf32, #tpu.memory_space<vmem>>, vector<1x1x128xf32>
    tpu.vector_store %arg10[%c0_81, %c0_82, %c0_83], %91 {strides = array<i32>} : memref<1x1x128xf32, #tpu.memory_space<vmem>>, vector<1x1x128xf32>,
    return
  }
  func.func @transform_0(%arg0: i32) -> (i32, i32, i32) {
    %c0_i32 = arith.constant 0 : i32
    %c0_i32_0 = arith.constant 0 : i32
    %c0_i32_1 = arith.constant 0 : i32
    return %arg0, %c0_i32, %c0_i32_0 : i32, i32, i32
  }
  func.func @transform_1(%arg0: i32) -> (i32, i32, i32) {
    %c0_i32 = arith.constant 0 : i32
    %c0_i32_0 = arith.constant 0 : i32
    %c0_i32_1 = arith.constant 0 : i32
    return %arg0, %c0_i32, %c0_i32_0 : i32, i32, i32
  }
  func.func @transform_2(%arg0: i32) -> (i32, i32, i32) {
    %c0_i32 = arith.constant 0 : i32
    %c0_i32_0 = arith.constant 0 : i32
    %c0_i32_1 = arith.constant 0 : i32
    %c0_i32_2 = arith.constant 0 : i32
    return %c0_i32, %c0_i32_0, %c0_i32_1 : i32, i32, i32
  }
  func.func @transform_3(%arg0: i32) -> (i32, i32) {
    %c0_i32 = arith.constant 0 : i32
    %c0_i32_0 = arith.constant 0 : i32
    %c0_i32_1 = arith.constant 0 : i32
    return %c0_i32, %c0_i32_0 : i32, i32
  }
  func.func @transform_4(%arg0: i32) -> (i32, i32) {
    %c0_i32 = arith.constant 0 : i32
    %c0_i32_0 = arith.constant 0 : i32
    %c0_i32_1 = arith.constant 0 : i32
    return %c0_i32, %c0_i32_0 : i32, i32
  }
  func.func @transform_5(%arg0: i32) -> (i32, i32) {
    %c0_i32 = arith.constant 0 : i32
    %c0_i32_0 = arith.constant 0 : i32
    %c0_i32_1 = arith.constant 0 : i32
    return %c0_i32, %c0_i32_0 : i32, i32
  }
  func.func @transform_6(%arg0: i32) -> (i32, i32, i32) {
    %c0_i32 = arith.constant 0 : i32
    %c0_i32_0 = arith.constant 0 : i32
    %c0_i32_1 = arith.constant 0 : i32
    %c0_i32_2 = arith.constant 0 : i32
    return %c0_i32, %c0_i32_0, %c0_i32_1 : i32, i32, i32
  }
  func.func @transform_7(%arg0: i32) -> (i32, i32) {
    %c0_i32 = arith.constant 0 : i32
    %c0_i32_0 = arith.constant 0 : i32
    %c0_i32_1 = arith.constant 0 : i32
    return %c0_i32, %c0_i32_0 : i32, i32
  }
  func.func @transform_8(%arg0: i32) -> (i32, i32, i32) {
    %c0_i32 = arith.constant 0 : i32
    %c0_i32_0 = arith.constant 0 : i32
    %c0_i32_1 = arith.constant 0 : i32
    return %arg0, %c0_i32, %c0_i32_0 : i32, i32, i32
  }
  func.func @transform_9(%arg0: i32) -> (i32, i32, i32) {
    %c0_i32 = arith.constant 0 : i32
    %c0_i32_0 = arith.constant 0 : i32
    %c0_i32_1 = arith.constant 0 : i32
    return %arg0, %c0_i32, %c0_i32_0 : i32, i32, i32
  }
}

module attributes {stable_mosaic.version = 11 : i64} {
  func.func @_split_prior_kernel(%arg0: i32, %arg1: memref<1x8x64xbf16, #tpu.memory_space<vmem>>, %arg2: memref<1x8x64xf32, #tpu.memory_space<vmem>>, %arg3: memref<3x64x128xbf16, #tpu.memory_space<vmem>>, %arg4: memref<1x128xf32, #tpu.memory_space<vmem>>, %arg5: memref<1x1x128xf32, #tpu.memory_space<vmem>>, %arg6: memref<10x128xf32, #tpu.memory_space<vmem>>) attributes {dimension_semantics = [#tpu.dimension_semantics<parallel>], iteration_bounds = array<i64: 2>, scalar_prefetch = 0 : i64, scratch_operands = 1 : i64, tpu.core_type = #tpu.core_type<tc>, window_params = [{transform_indices = @transform_0, window_bounds = array<i64: 1, 8, 64>}, {transform_indices = @transform_1, window_bounds = array<i64: 1, 8, 64>}, {pipeline_mode = #tpu.pipeline_mode<synchronous>, transform_indices = @transform_2, window_bounds = array<i64: 3, 64, 128>}, {pipeline_mode = #tpu.pipeline_mode<synchronous>, transform_indices = @transform_3, window_bounds = array<i64: 1, 128>}, {transform_indices = @transform_4, window_bounds = array<i64: 1, 1, 128>}]} {
    %c0 = arith.constant 0 : index
    %c0_0 = arith.constant 0 : index
    %c0_1 = arith.constant 0 : index
    %0 = vector.load %arg1[%c0, %c0_0, %c0_1] : memref<1x8x64xbf16, #tpu.memory_space<vmem>>, vector<1x8x64xbf16>
    %1 = vector.shape_cast %0 : vector<1x8x64xbf16> to vector<8x64xbf16>
    %cst = arith.constant 0.000000e+00 : f32
    %2 = vector.broadcast %cst : f32 to vector<10x128xf32>
    %c0_2 = arith.constant 0 : index
    %c0_3 = arith.constant 0 : index
    %3 = vector.load %arg6[%c0_2, %c0_3] : memref<10x128xf32, #tpu.memory_space<vmem>>, vector<10x128xf32>
    tpu.vector_store %arg6[%c0_2, %c0_3], %2 {strides = array<i32>} : memref<10x128xf32, #tpu.memory_space<vmem>>, vector<10x128xf32>,
    %c2 = arith.constant 2 : index
    %c0_4 = arith.constant 0 : index
    %4 = vector.load %arg6[%c2, %c0_4] : memref<10x128xf32, #tpu.memory_space<vmem>>, vector<8x128xf32>
    %c0_5 = arith.constant 0 : index
    %c0_6 = arith.constant 0 : index
    %c0_7 = arith.constant 0 : index
    %5 = vector.load %arg3[%c0_5, %c0_6, %c0_7] : memref<3x64x128xbf16, #tpu.memory_space<vmem>>, vector<1x64x128xbf16>
    %6 = vector.shape_cast %5 : vector<1x64x128xbf16> to vector<64x128xbf16>
    %cst_8 = arith.constant dense<0.000000e+00> : vector<8x128xf32>
    %7 = tpu.matmul %1, %6, %cst_8 {dimension_numbers = #tpu.dot_dimension_numbers<[1], [0], [0], [1], [0, 0, 1, 1], [], []>} : vector<8x64xbf16>, vector<64x128xbf16>, vector<8x128xf32> -> vector<8x128xf32>
    %8 = arith.addf %4, %7 : vector<8x128xf32>
    %c2_9 = arith.constant 2 : index
    %c0_10 = arith.constant 0 : index
    %9 = vector.load %arg6[%c2_9, %c0_10] : memref<10x128xf32, #tpu.memory_space<vmem>>, vector<8x128xf32>
    tpu.vector_store %arg6[%c2_9, %c0_10], %8 {strides = array<i32>} : memref<10x128xf32, #tpu.memory_space<vmem>>, vector<8x128xf32>,
    %c1 = arith.constant 1 : index
    %c0_11 = arith.constant 0 : index
    %10 = vector.load %arg6[%c1, %c0_11] : memref<10x128xf32, #tpu.memory_space<vmem>>, vector<8x128xf32>
    %c1_12 = arith.constant 1 : index
    %c0_13 = arith.constant 0 : index
    %c0_14 = arith.constant 0 : index
    %11 = vector.load %arg3[%c1_12, %c0_13, %c0_14] : memref<3x64x128xbf16, #tpu.memory_space<vmem>>, vector<1x64x128xbf16>
    %12 = vector.shape_cast %11 : vector<1x64x128xbf16> to vector<64x128xbf16>
    %cst_15 = arith.constant dense<0.000000e+00> : vector<8x128xf32>
    %13 = tpu.matmul %1, %12, %cst_15 {dimension_numbers = #tpu.dot_dimension_numbers<[1], [0], [0], [1], [0, 0, 1, 1], [], []>} : vector<8x64xbf16>, vector<64x128xbf16>, vector<8x128xf32> -> vector<8x128xf32>
    %14 = arith.addf %10, %13 : vector<8x128xf32>
    %c1_16 = arith.constant 1 : index
    %c0_17 = arith.constant 0 : index
    %15 = vector.load %arg6[%c1_16, %c0_17] : memref<10x128xf32, #tpu.memory_space<vmem>>, vector<8x128xf32>
    tpu.vector_store %arg6[%c1_16, %c0_17], %14 {strides = array<i32>} : memref<10x128xf32, #tpu.memory_space<vmem>>, vector<8x128xf32>,
    %c0_18 = arith.constant 0 : index
    %c0_19 = arith.constant 0 : index
    %16 = vector.load %arg6[%c0_18, %c0_19] : memref<10x128xf32, #tpu.memory_space<vmem>>, vector<8x128xf32>
    %c2_20 = arith.constant 2 : index
    %c0_21 = arith.constant 0 : index
    %c0_22 = arith.constant 0 : index
    %17 = vector.load %arg3[%c2_20, %c0_21, %c0_22] : memref<3x64x128xbf16, #tpu.memory_space<vmem>>, vector<1x64x128xbf16>
    %18 = vector.shape_cast %17 : vector<1x64x128xbf16> to vector<64x128xbf16>
    %cst_23 = arith.constant dense<0.000000e+00> : vector<8x128xf32>
    %19 = tpu.matmul %1, %18, %cst_23 {dimension_numbers = #tpu.dot_dimension_numbers<[1], [0], [0], [1], [0, 0, 1, 1], [], []>} : vector<8x64xbf16>, vector<64x128xbf16>, vector<8x128xf32> -> vector<8x128xf32>
    %20 = arith.addf %16, %19 : vector<8x128xf32>
    %c0_24 = arith.constant 0 : index
    %c0_25 = arith.constant 0 : index
    %21 = vector.load %arg6[%c0_24, %c0_25] : memref<10x128xf32, #tpu.memory_space<vmem>>, vector<8x128xf32>
    tpu.vector_store %arg6[%c0_24, %c0_25], %20 {strides = array<i32>} : memref<10x128xf32, #tpu.memory_space<vmem>>, vector<8x128xf32>,
    %c1_26 = arith.constant 1 : index
    %c0_27 = arith.constant 0 : index
    %22 = vector.load %arg6[%c1_26, %c0_27] : memref<10x128xf32, #tpu.memory_space<vmem>>, vector<8x128xf32>
    %c0_28 = arith.constant 0 : index
    %c0_29 = arith.constant 0 : index
    %23 = vector.load %arg4[%c0_28, %c0_29] : memref<1x128xf32, #tpu.memory_space<vmem>>, vector<1x128xf32>
    %24 = vector.broadcast %23 : vector<1x128xf32> to vector<8x128xf32>
    %25 = arith.addf %22, %24 : vector<8x128xf32>
    %26 = vector.extract_strided_slice %25 {offsets = [0, 0], sizes = [8, 64], strides = [1, 1]} : vector<8x128xf32> to vector<8x64xf32>
    %27 = vector.extract_strided_slice %25 {offsets = [0, 64], sizes = [8, 64], strides = [1, 1]} : vector<8x128xf32> to vector<8x64xf32>
    %c0_30 = arith.constant 0 : index
    %c0_31 = arith.constant 0 : index
    %c0_32 = arith.constant 0 : index
    %28 = vector.load %arg2[%c0_30, %c0_31, %c0_32] : memref<1x8x64xf32, #tpu.memory_space<vmem>>, vector<1x8x64xf32>
    %29 = vector.shape_cast %28 : vector<1x8x64xf32> to vector<8x64xf32>
    %cst_33 = arith.constant -0.918938517 : f32
    %30 = vector.broadcast %cst_33 : f32 to vector<8x64xf32>
    %31 = arith.subf %30, %27 : vector<8x64xf32>
    %32 = arith.subf %29, %26 : vector<8x64xf32>
    %33 = arith.mulf %32, %32 : vector<8x64xf32>
    %cst_34 = arith.constant 5.000000e-01 : f32
    %34 = vector.broadcast %cst_34 : f32 to vector<8x64xf32>
    %35 = arith.mulf %34, %33 : vector<8x64xf32>
    %cst_35 = arith.constant -2.000000e+00 : f32
    %36 = vector.broadcast %cst_35 : f32 to vector<8x64xf32>
    %37 = arith.mulf %36, %27 : vector<8x64xf32>
    %38 = math.exp %37 : vector<8x64xf32>
    %39 = arith.mulf %35, %38 : vector<8x64xf32>
    %40 = arith.subf %31, %39 : vector<8x64xf32>
    %41 = vector.shape_cast %40 : vector<8x64xf32> to vector<1x8x64xf32>
    %cst_36 = arith.constant dense<0.000000e+00> : vector<1xf32>
    %42 = vector.multi_reduction <add>, %41, %cst_36 [1, 2] : vector<1x8x64xf32> to vector<1xf32>
    %43 = vector.shape_cast %42 : vector<1xf32> to vector<1x1x1xf32>
    %44 = vector.extract %43[0, 0, 0] : f32 from vector<1x1x1xf32>
    %45 = vector.broadcast %44 : f32 to vector<1x1x128xf32>
    %c0_37 = arith.constant 0 : index
    %c0_38 = arith.constant 0 : index
    %c0_39 = arith.constant 0 : index
    %46 = vector.load %arg5[%c0_37, %c0_38, %c0_39] : memref<1x1x128xf32, #tpu.memory_space<vmem>>, vector<1x1x128xf32>
    tpu.vector_store %arg5[%c0_37, %c0_38, %c0_39], %45 {strides = array<i32>} : memref<1x1x128xf32, #tpu.memory_space<vmem>>, vector<1x1x128xf32>,
    return
  }
  func.func @transform_0(%arg0: i32) -> (i32, i32, i32) {
    %c0_i32 = arith.constant 0 : i32
    %c0_i32_0 = arith.constant 0 : i32
    %c0_i32_1 = arith.constant 0 : i32
    return %arg0, %c0_i32, %c0_i32_0 : i32, i32, i32
  }
  func.func @transform_1(%arg0: i32) -> (i32, i32, i32) {
    %c0_i32 = arith.constant 0 : i32
    %c0_i32_0 = arith.constant 0 : i32
    %c0_i32_1 = arith.constant 0 : i32
    return %arg0, %c0_i32, %c0_i32_0 : i32, i32, i32
  }
  func.func @transform_2(%arg0: i32) -> (i32, i32, i32) {
    %c0_i32 = arith.constant 0 : i32
    %c0_i32_0 = arith.constant 0 : i32
    %c0_i32_1 = arith.constant 0 : i32
    %c0_i32_2 = arith.constant 0 : i32
    return %c0_i32, %c0_i32_0, %c0_i32_1 : i32, i32, i32
  }
  func.func @transform_3(%arg0: i32) -> (i32, i32) {
    %c0_i32 = arith.constant 0 : i32
    %c0_i32_0 = arith.constant 0 : i32
    %c0_i32_1 = arith.constant 0 : i32
    return %c0_i32, %c0_i32_0 : i32, i32
  }
  func.func @transform_4(%arg0: i32) -> (i32, i32, i32) {
    %c0_i32 = arith.constant 0 : i32
    %c0_i32_0 = arith.constant 0 : i32
    %c0_i32_1 = arith.constant 0 : i32
    return %arg0, %c0_i32, %c0_i32_0 : i32, i32, i32
  }
}

module attributes {stable_mosaic.version = 11 : i64} {
  func.func @_actnorm_invconv_kernel(%arg0: i32, %arg1: memref<32x32xbf16, #tpu.memory_space<vmem>>, %arg2: memref<32x32xbf16, #tpu.memory_space<vmem>>, %arg3: memref<1x32xf32, #tpu.memory_space<vmem>>, %arg4: memref<32x32xf32, #tpu.memory_space<vmem>>) attributes {dimension_semantics = [#tpu.dimension_semantics<parallel>], iteration_bounds = array<i64: 1>, scalar_prefetch = 0 : i64, scratch_operands = 0 : i64, tpu.core_type = #tpu.core_type<tc>, window_params = [{transform_indices = @transform_0, window_bounds = array<i64: 32, 32>}, {pipeline_mode = #tpu.pipeline_mode<synchronous>, transform_indices = @transform_1, window_bounds = array<i64: 32, 32>}, {pipeline_mode = #tpu.pipeline_mode<synchronous>, transform_indices = @transform_2, window_bounds = array<i64: 1, 32>}, {transform_indices = @transform_3, window_bounds = array<i64: 32, 32>}]} {
    %c0 = arith.constant 0 : index
    %c0_0 = arith.constant 0 : index
    %0 = vector.load %arg1[%c0, %c0_0] : memref<32x32xbf16, #tpu.memory_space<vmem>>, vector<32x32xbf16>
    %c0_1 = arith.constant 0 : index
    %c0_2 = arith.constant 0 : index
    %1 = vector.load %arg2[%c0_1, %c0_2] : memref<32x32xbf16, #tpu.memory_space<vmem>>, vector<32x32xbf16>
    %cst = arith.constant dense<0.000000e+00> : vector<32x32xf32>
    %2 = tpu.matmul %0, %1, %cst {dimension_numbers = #tpu.dot_dimension_numbers<[1], [0], [0], [1], [0, 0, 1, 1], [], []>} : vector<32x32xbf16>, vector<32x32xbf16>, vector<32x32xf32> -> vector<32x32xf32>
    %c0_3 = arith.constant 0 : index
    %c0_4 = arith.constant 0 : index
    %3 = vector.load %arg3[%c0_3, %c0_4] : memref<1x32xf32, #tpu.memory_space<vmem>>, vector<1x32xf32>
    %4 = vector.broadcast %3 : vector<1x32xf32> to vector<32x32xf32>
    %5 = arith.addf %2, %4 : vector<32x32xf32>
    %c0_5 = arith.constant 0 : index
    %c0_6 = arith.constant 0 : index
    %6 = vector.load %arg4[%c0_5, %c0_6] : memref<32x32xf32, #tpu.memory_space<vmem>>, vector<32x32xf32>
    tpu.vector_store %arg4[%c0_5, %c0_6], %5 {strides = array<i32>} : memref<32x32xf32, #tpu.memory_space<vmem>>, vector<32x32xf32>,
    return
  }
  func.func @transform_0(%arg0: i32) -> (i32, i32) {
    %c0_i32 = arith.constant 0 : i32
    %c0_i32_0 = arith.constant 0 : i32
    return %arg0, %c0_i32 : i32, i32
  }
  func.func @transform_1(%arg0: i32) -> (i32, i32) {
    %c0_i32 = arith.constant 0 : i32
    %c0_i32_0 = arith.constant 0 : i32
    %c0_i32_1 = arith.constant 0 : i32
    return %c0_i32, %c0_i32_0 : i32, i32
  }
  func.func @transform_2(%arg0: i32) -> (i32, i32) {
    %c0_i32 = arith.constant 0 : i32
    %c0_i32_0 = arith.constant 0 : i32
    %c0_i32_1 = arith.constant 0 : i32
    return %c0_i32, %c0_i32_0 : i32, i32
  }
  func.func @transform_3(%arg0: i32) -> (i32, i32) {
    %c0_i32 = arith.constant 0 : i32
    %c0_i32_0 = arith.constant 0 : i32
    return %arg0, %c0_i32 : i32, i32
  }
}

module attributes {stable_mosaic.version = 11 : i64} {
  func.func @_coupling_kernel(%arg0: i32, %arg1: memref<1x4x64xbf16, #tpu.memory_space<vmem>>, %arg2: memref<1x4x64xf32, #tpu.memory_space<vmem>>, %arg3: memref<3x64x128xbf16, #tpu.memory_space<vmem>>, %arg4: memref<1x128xf32, #tpu.memory_space<vmem>>, %arg5: memref<128x128xbf16, #tpu.memory_space<vmem>>, %arg6: memref<1x128xf32, #tpu.memory_space<vmem>>, %arg7: memref<3x128x128xbf16, #tpu.memory_space<vmem>>, %arg8: memref<1x128xf32, #tpu.memory_space<vmem>>, %arg9: memref<1x4x64xf32, #tpu.memory_space<vmem>>, %arg10: memref<1x1x128xf32, #tpu.memory_space<vmem>>, %arg11: memref<6x128xf32, #tpu.memory_space<vmem>>, %arg12: memref<6x128xf32, #tpu.memory_space<vmem>>) attributes {dimension_semantics = [#tpu.dimension_semantics<parallel>], iteration_bounds = array<i64: 2>, scalar_prefetch = 0 : i64, scratch_operands = 2 : i64, tpu.core_type = #tpu.core_type<tc>, window_params = [{transform_indices = @transform_0, window_bounds = array<i64: 1, 4, 64>}, {transform_indices = @transform_1, window_bounds = array<i64: 1, 4, 64>}, {pipeline_mode = #tpu.pipeline_mode<synchronous>, transform_indices = @transform_2, window_bounds = array<i64: 3, 64, 128>}, {pipeline_mode = #tpu.pipeline_mode<synchronous>, transform_indices = @transform_3, window_bounds = array<i64: 1, 128>}, {pipeline_mode = #tpu.pipeline_mode<synchronous>, transform_indices = @transform_4, window_bounds = array<i64: 128, 128>}, {pipeline_mode = #tpu.pipeline_mode<synchronous>, transform_indices = @transform_5, window_bounds = array<i64: 1, 128>}, {pipeline_mode = #tpu.pipeline_mode<synchronous>, transform_indices = @transform_6, window_bounds = array<i64: 3, 128, 128>}, {pipeline_mode = #tpu.pipeline_mode<synchronous>, transform_indices = @transform_7, window_bounds = array<i64: 1, 128>}, {transform_indices = @transform_8, window_bounds = array<i64: 1, 4, 64>}, {transform_indices = @transform_9, window_bounds = array<i64: 1, 1, 128>}]} {
    %c0 = arith.constant 0 : index
    %c0_0 = arith.constant 0 : index
    %c0_1 = arith.constant 0 : index
    %0 = vector.load %arg1[%c0, %c0_0, %c0_1] : memref<1x4x64xbf16, #tpu.memory_space<vmem>>, vector<1x4x64xbf16>
    %1 = vector.shape_cast %0 : vector<1x4x64xbf16> to vector<4x64xbf16>
    %cst = arith.constant 0.000000e+00 : f32
    %2 = vector.broadcast %cst : f32 to vector<6x128xf32>
    %c0_2 = arith.constant 0 : index
    %c0_3 = arith.constant 0 : index
    %3 = vector.load %arg11[%c0_2, %c0_3] : memref<6x128xf32, #tpu.memory_space<vmem>>, vector<6x128xf32>
    tpu.vector_store %arg11[%c0_2, %c0_3], %2 {strides = array<i32>} : memref<6x128xf32, #tpu.memory_space<vmem>>, vector<6x128xf32>,
    %c2 = arith.constant 2 : index
    %c0_4 = arith.constant 0 : index
    %4 = vector.load %arg11[%c2, %c0_4] : memref<6x128xf32, #tpu.memory_space<vmem>>, vector<4x128xf32>
    %c0_5 = arith.constant 0 : index
    %c0_6 = arith.constant 0 : index
    %c0_7 = arith.constant 0 : index
    %5 = vector.load %arg3[%c0_5, %c0_6, %c0_7] : memref<3x64x128xbf16, #tpu.memory_space<vmem>>, vector<1x64x128xbf16>
    %6 = vector.shape_cast %5 : vector<1x64x128xbf16> to vector<64x128xbf16>
    %cst_8 = arith.constant dense<0.000000e+00> : vector<4x128xf32>
    %7 = tpu.matmul %1, %6, %cst_8 {dimension_numbers = #tpu.dot_dimension_numbers<[1], [0], [0], [1], [0, 0, 1, 1], [], []>} : vector<4x64xbf16>, vector<64x128xbf16>, vector<4x128xf32> -> vector<4x128xf32>
    %8 = arith.addf %4, %7 : vector<4x128xf32>
    %c2_9 = arith.constant 2 : index
    %c0_10 = arith.constant 0 : index
    %9 = vector.load %arg11[%c2_9, %c0_10] : memref<6x128xf32, #tpu.memory_space<vmem>>, vector<4x128xf32>
    tpu.vector_store %arg11[%c2_9, %c0_10], %8 {strides = array<i32>} : memref<6x128xf32, #tpu.memory_space<vmem>>, vector<4x128xf32>,
    %c1 = arith.constant 1 : index
    %c0_11 = arith.constant 0 : index
    %10 = vector.load %arg11[%c1, %c0_11] : memref<6x128xf32, #tpu.memory_space<vmem>>, vector<4x128xf32>
    %c1_12 = arith.constant 1 : index
    %c0_13 = arith.constant 0 : index
    %c0_14 = arith.constant 0 : index
    %11 = vector.load %arg3[%c1_12, %c0_13, %c0_14] : memref<3x64x128xbf16, #tpu.memory_space<vmem>>, vector<1x64x128xbf16>
    %12 = vector.shape_cast %11 : vector<1x64x128xbf16> to vector<64x128xbf16>
    %cst_15 = arith.constant dense<0.000000e+00> : vector<4x128xf32>
    %13 = tpu.matmul %1, %12, %cst_15 {dimension_numbers = #tpu.dot_dimension_numbers<[1], [0], [0], [1], [0, 0, 1, 1], [], []>} : vector<4x64xbf16>, vector<64x128xbf16>, vector<4x128xf32> -> vector<4x128xf32>
    %14 = arith.addf %10, %13 : vector<4x128xf32>
    %c1_16 = arith.constant 1 : index
    %c0_17 = arith.constant 0 : index
    %15 = vector.load %arg11[%c1_16, %c0_17] : memref<6x128xf32, #tpu.memory_space<vmem>>, vector<4x128xf32>
    tpu.vector_store %arg11[%c1_16, %c0_17], %14 {strides = array<i32>} : memref<6x128xf32, #tpu.memory_space<vmem>>, vector<4x128xf32>,
    %c0_18 = arith.constant 0 : index
    %c0_19 = arith.constant 0 : index
    %16 = vector.load %arg11[%c0_18, %c0_19] : memref<6x128xf32, #tpu.memory_space<vmem>>, vector<4x128xf32>
    %c2_20 = arith.constant 2 : index
    %c0_21 = arith.constant 0 : index
    %c0_22 = arith.constant 0 : index
    %17 = vector.load %arg3[%c2_20, %c0_21, %c0_22] : memref<3x64x128xbf16, #tpu.memory_space<vmem>>, vector<1x64x128xbf16>
    %18 = vector.shape_cast %17 : vector<1x64x128xbf16> to vector<64x128xbf16>
    %cst_23 = arith.constant dense<0.000000e+00> : vector<4x128xf32>
    %19 = tpu.matmul %1, %18, %cst_23 {dimension_numbers = #tpu.dot_dimension_numbers<[1], [0], [0], [1], [0, 0, 1, 1], [], []>} : vector<4x64xbf16>, vector<64x128xbf16>, vector<4x128xf32> -> vector<4x128xf32>
    %20 = arith.addf %16, %19 : vector<4x128xf32>
    %c0_24 = arith.constant 0 : index
    %c0_25 = arith.constant 0 : index
    %21 = vector.load %arg11[%c0_24, %c0_25] : memref<6x128xf32, #tpu.memory_space<vmem>>, vector<4x128xf32>
    tpu.vector_store %arg11[%c0_24, %c0_25], %20 {strides = array<i32>} : memref<6x128xf32, #tpu.memory_space<vmem>>, vector<4x128xf32>,
    %c1_26 = arith.constant 1 : index
    %c0_27 = arith.constant 0 : index
    %22 = vector.load %arg11[%c1_26, %c0_27] : memref<6x128xf32, #tpu.memory_space<vmem>>, vector<4x128xf32>
    %c0_28 = arith.constant 0 : index
    %c0_29 = arith.constant 0 : index
    %23 = vector.load %arg4[%c0_28, %c0_29] : memref<1x128xf32, #tpu.memory_space<vmem>>, vector<1x128xf32>
    %24 = vector.broadcast %23 : vector<1x128xf32> to vector<4x128xf32>
    %25 = arith.addf %22, %24 : vector<4x128xf32>
    %cst_30 = arith.constant 0.000000e+00 : f32
    %26 = vector.broadcast %cst_30 : f32 to vector<4x128xf32>
    %27 = arith.maximumf %25, %26 : vector<4x128xf32>
    %28 = arith.truncf %27 : vector<4x128xf32> to vector<4x128xbf16>
    %c0_31 = arith.constant 0 : index
    %c0_32 = arith.constant 0 : index
    %29 = vector.load %arg5[%c0_31, %c0_32] : memref<128x128xbf16, #tpu.memory_space<vmem>>, vector<128x128xbf16>
    %cst_33 = arith.constant dense<0.000000e+00> : vector<4x128xf32>
    %30 = tpu.matmul %28, %29, %cst_33 {dimension_numbers = #tpu.dot_dimension_numbers<[1], [0], [0], [1], [0, 0, 1, 1], [], []>} : vector<4x128xbf16>, vector<128x128xbf16>, vector<4x128xf32> -> vector<4x128xf32>
    %c0_34 = arith.constant 0 : index
    %c0_35 = arith.constant 0 : index
    %31 = vector.load %arg6[%c0_34, %c0_35] : memref<1x128xf32, #tpu.memory_space<vmem>>, vector<1x128xf32>
    %32 = vector.broadcast %31 : vector<1x128xf32> to vector<4x128xf32>
    %33 = arith.addf %30, %32 : vector<4x128xf32>
    %cst_36 = arith.constant 0.000000e+00 : f32
    %34 = vector.broadcast %cst_36 : f32 to vector<4x128xf32>
    %35 = arith.maximumf %33, %34 : vector<4x128xf32>
    %36 = arith.truncf %35 : vector<4x128xf32> to vector<4x128xbf16>
    %cst_37 = arith.constant 0.000000e+00 : f32
    %37 = vector.broadcast %cst_37 : f32 to vector<6x128xf32>
    %c0_38 = arith.constant 0 : index
    %c0_39 = arith.constant 0 : index
    %38 = vector.load %arg12[%c0_38, %c0_39] : memref<6x128xf32, #tpu.memory_space<vmem>>, vector<6x128xf32>
    tpu.vector_store %arg12[%c0_38, %c0_39], %37 {strides = array<i32>} : memref<6x128xf32, #tpu.memory_space<vmem>>, vector<6x128xf32>,
    %c2_40 = arith.constant 2 : index
    %c0_41 = arith.constant 0 : index
    %39 = vector.load %arg12[%c2_40, %c0_41] : memref<6x128xf32, #tpu.memory_space<vmem>>, vector<4x128xf32>
    %c0_42 = arith.constant 0 : index
    %c0_43 = arith.constant 0 : index
    %c0_44 = arith.constant 0 : index
    %40 = vector.load %arg7[%c0_42, %c0_43, %c0_44] : memref<3x128x128xbf16, #tpu.memory_space<vmem>>, vector<1x128x128xbf16>
    %41 = vector.shape_cast %40 : vector<1x128x128xbf16> to vector<128x128xbf16>
    %cst_45 = arith.constant dense<0.000000e+00> : vector<4x128xf32>
    %42 = tpu.matmul %36, %41, %cst_45 {dimension_numbers = #tpu.dot_dimension_numbers<[1], [0], [0], [1], [0, 0, 1, 1], [], []>} : vector<4x128xbf16>, vector<128x128xbf16>, vector<4x128xf32> -> vector<4x128xf32>
    %43 = arith.addf %39, %42 : vector<4x128xf32>
    %c2_46 = arith.constant 2 : index
    %c0_47 = arith.constant 0 : index
    %44 = vector.load %arg12[%c2_46, %c0_47] : memref<6x128xf32, #tpu.memory_space<vmem>>, vector<4x128xf32>
    tpu.vector_store %arg12[%c2_46, %c0_47], %43 {strides = array<i32>} : memref<6x128xf32, #tpu.memory_space<vmem>>, vector<4x128xf32>,
    %c1_48 = arith.constant 1 : index
    %c0_49 = arith.constant 0 : index
    %45 = vector.load %arg12[%c1_48, %c0_49] : memref<6x128xf32, #tpu.memory_space<vmem>>, vector<4x128xf32>
    %c1_50 = arith.constant 1 : index
    %c0_51 = arith.constant 0 : index
    %c0_52 = arith.constant 0 : index
    %46 = vector.load %arg7[%c1_50, %c0_51, %c0_52] : memref<3x128x128xbf16, #tpu.memory_space<vmem>>, vector<1x128x128xbf16>
    %47 = vector.shape_cast %46 : vector<1x128x128xbf16> to vector<128x128xbf16>
    %cst_53 = arith.constant dense<0.000000e+00> : vector<4x128xf32>
    %48 = tpu.matmul %36, %47, %cst_53 {dimension_numbers = #tpu.dot_dimension_numbers<[1], [0], [0], [1], [0, 0, 1, 1], [], []>} : vector<4x128xbf16>, vector<128x128xbf16>, vector<4x128xf32> -> vector<4x128xf32>
    %49 = arith.addf %45, %48 : vector<4x128xf32>
    %c1_54 = arith.constant 1 : index
    %c0_55 = arith.constant 0 : index
    %50 = vector.load %arg12[%c1_54, %c0_55] : memref<6x128xf32, #tpu.memory_space<vmem>>, vector<4x128xf32>
    tpu.vector_store %arg12[%c1_54, %c0_55], %49 {strides = array<i32>} : memref<6x128xf32, #tpu.memory_space<vmem>>, vector<4x128xf32>,
    %c0_56 = arith.constant 0 : index
    %c0_57 = arith.constant 0 : index
    %51 = vector.load %arg12[%c0_56, %c0_57] : memref<6x128xf32, #tpu.memory_space<vmem>>, vector<4x128xf32>
    %c2_58 = arith.constant 2 : index
    %c0_59 = arith.constant 0 : index
    %c0_60 = arith.constant 0 : index
    %52 = vector.load %arg7[%c2_58, %c0_59, %c0_60] : memref<3x128x128xbf16, #tpu.memory_space<vmem>>, vector<1x128x128xbf16>
    %53 = vector.shape_cast %52 : vector<1x128x128xbf16> to vector<128x128xbf16>
    %cst_61 = arith.constant dense<0.000000e+00> : vector<4x128xf32>
    %54 = tpu.matmul %36, %53, %cst_61 {dimension_numbers = #tpu.dot_dimension_numbers<[1], [0], [0], [1], [0, 0, 1, 1], [], []>} : vector<4x128xbf16>, vector<128x128xbf16>, vector<4x128xf32> -> vector<4x128xf32>
    %55 = arith.addf %51, %54 : vector<4x128xf32>
    %c0_62 = arith.constant 0 : index
    %c0_63 = arith.constant 0 : index
    %56 = vector.load %arg12[%c0_62, %c0_63] : memref<6x128xf32, #tpu.memory_space<vmem>>, vector<4x128xf32>
    tpu.vector_store %arg12[%c0_62, %c0_63], %55 {strides = array<i32>} : memref<6x128xf32, #tpu.memory_space<vmem>>, vector<4x128xf32>,
    %c1_64 = arith.constant 1 : index
    %c0_65 = arith.constant 0 : index
    %57 = vector.load %arg12[%c1_64, %c0_65] : memref<6x128xf32, #tpu.memory_space<vmem>>, vector<4x128xf32>
    %c0_66 = arith.constant 0 : index
    %c0_67 = arith.constant 0 : index
    %58 = vector.load %arg8[%c0_66, %c0_67] : memref<1x128xf32, #tpu.memory_space<vmem>>, vector<1x128xf32>
    %59 = vector.broadcast %58 : vector<1x128xf32> to vector<4x128xf32>
    %60 = arith.addf %57, %59 : vector<4x128xf32>
    %61 = vector.extract_strided_slice %60 {offsets = [0, 0], sizes = [4, 64], strides = [1, 1]} : vector<4x128xf32> to vector<4x64xf32>
    %62 = vector.extract_strided_slice %60 {offsets = [0, 64], sizes = [4, 64], strides = [1, 1]} : vector<4x128xf32> to vector<4x64xf32>
    %cst_68 = arith.constant 2.000000e+00 : f32
    %63 = vector.broadcast %cst_68 : f32 to vector<4x64xf32>
    %64 = arith.addf %62, %63 : vector<4x64xf32>
    %cst_69 = arith.constant 0.000000e+00 : f32
    %65 = vector.broadcast %cst_69 : f32 to vector<4x64xf32>
    %66 = arith.subf %65, %64 : vector<4x64xf32>
    %cst_70 = arith.constant 0.000000e+00 : f32
    %67 = vector.broadcast %cst_70 : f32 to vector<4x64xf32>
    %68 = arith.maximumf %66, %67 : vector<4x64xf32>
    %69 = math.absf %66 : vector<4x64xf32>
    %cst_71 = arith.constant 0.000000e+00 : f32
    %70 = vector.broadcast %cst_71 : f32 to vector<4x64xf32>
    %71 = arith.subf %70, %69 : vector<4x64xf32>
    %72 = math.exp %71 : vector<4x64xf32>
    %cst_72 = arith.constant 1.000000e+00 : f32
    %73 = vector.broadcast %cst_72 : f32 to vector<4x64xf32>
    %74 = arith.addf %73, %72 : vector<4x64xf32>
    %75 = math.log %74 : vector<4x64xf32>
    %76 = arith.addf %68, %75 : vector<4x64xf32>
    %cst_73 = arith.constant 0.000000e+00 : f32
    %77 = vector.broadcast %cst_73 : f32 to vector<4x64xf32>
    %78 = arith.subf %77, %76 : vector<4x64xf32>
    %79 = math.exp %78 : vector<4x64xf32>
    %c0_74 = arith.constant 0 : index
    %c0_75 = arith.constant 0 : index
    %c0_76 = arith.constant 0 : index
    %80 = vector.load %arg2[%c0_74, %c0_75, %c0_76] : memref<1x4x64xf32, #tpu.memory_space<vmem>>, vector<1x4x64xf32>
    %81 = vector.shape_cast %80 : vector<1x4x64xf32> to vector<4x64xf32>
    %82 = arith.addf %81, %61 : vector<4x64xf32>
    %83 = arith.mulf %82, %79 : vector<4x64xf32>
    %c0_77 = arith.constant 0 : index
    %c0_78 = arith.constant 0 : index
    %c0_79 = arith.constant 0 : index
    %84 = vector.load %arg9[%c0_77, %c0_78, %c0_79] : memref<1x4x64xf32, #tpu.memory_space<vmem>>, vector<1x4x64xf32>
    %85 = vector.shape_cast %84 : vector<1x4x64xf32> to vector<4x64xf32>
    %86 = vector.shape_cast %83 : vector<4x64xf32> to vector<1x4x64xf32>
    tpu.vector_store %arg9[%c0_77, %c0_78, %c0_79], %86 {strides = array<i32>} : memref<1x4x64xf32, #tpu.memory_space<vmem>>, vector<1x4x64xf32>,
    %87 = vector.shape_cast %78 : vector<4x64xf32> to vector<1x4x64xf32>
    %cst_80 = arith.constant dense<0.000000e+00> : vector<1xf32>
    %88 = vector.multi_reduction <add>, %87, %cst_80 [1, 2] : vector<1x4x64xf32> to vector<1xf32>
    %89 = vector.shape_cast %88 : vector<1xf32> to vector<1x1x1xf32>
    %90 = vector.extract %89[0, 0, 0] : f32 from vector<1x1x1xf32>
    %91 = vector.broadcast %90 : f32 to vector<1x1x128xf32>
    %c0_81 = arith.constant 0 : index
    %c0_82 = arith.constant 0 : index
    %c0_83 = arith.constant 0 : index
    %92 = vector.load %arg10[%c0_81, %c0_82, %c0_83] : memref<1x1x128xf32, #tpu.memory_space<vmem>>, vector<1x1x128xf32>
    tpu.vector_store %arg10[%c0_81, %c0_82, %c0_83], %91 {strides = array<i32>} : memref<1x1x128xf32, #tpu.memory_space<vmem>>, vector<1x1x128xf32>,
    return
  }
  func.func @transform_0(%arg0: i32) -> (i32, i32, i32) {
    %c0_i32 = arith.constant 0 : i32
    %c0_i32_0 = arith.constant 0 : i32
    %c0_i32_1 = arith.constant 0 : i32
    return %arg0, %c0_i32, %c0_i32_0 : i32, i32, i32
  }
  func.func @transform_1(%arg0: i32) -> (i32, i32, i32) {
    %c0_i32 = arith.constant 0 : i32
    %c0_i32_0 = arith.constant 0 : i32
    %c0_i32_1 = arith.constant 0 : i32
    return %arg0, %c0_i32, %c0_i32_0 : i32, i32, i32
  }
  func.func @transform_2(%arg0: i32) -> (i32, i32, i32) {
    %c0_i32 = arith.constant 0 : i32
    %c0_i32_0 = arith.constant 0 : i32
    %c0_i32_1 = arith.constant 0 : i32
    %c0_i32_2 = arith.constant 0 : i32
    return %c0_i32, %c0_i32_0, %c0_i32_1 : i32, i32, i32
  }
  func.func @transform_3(%arg0: i32) -> (i32, i32) {
    %c0_i32 = arith.constant 0 : i32
    %c0_i32_0 = arith.constant 0 : i32
    %c0_i32_1 = arith.constant 0 : i32
    return %c0_i32, %c0_i32_0 : i32, i32
  }
  func.func @transform_4(%arg0: i32) -> (i32, i32) {
    %c0_i32 = arith.constant 0 : i32
    %c0_i32_0 = arith.constant 0 : i32
    %c0_i32_1 = arith.constant 0 : i32
    return %c0_i32, %c0_i32_0 : i32, i32
  }
  func.func @transform_5(%arg0: i32) -> (i32, i32) {
    %c0_i32 = arith.constant 0 : i32
    %c0_i32_0 = arith.constant 0 : i32
    %c0_i32_1 = arith.constant 0 : i32
    return %c0_i32, %c0_i32_0 : i32, i32
  }
  func.func @transform_6(%arg0: i32) -> (i32, i32, i32) {
    %c0_i32 = arith.constant 0 : i32
    %c0_i32_0 = arith.constant 0 : i32
    %c0_i32_1 = arith.constant 0 : i32
    %c0_i32_2 = arith.constant 0 : i32
    return %c0_i32, %c0_i32_0, %c0_i32_1 : i32, i32, i32
  }
  func.func @transform_7(%arg0: i32) -> (i32, i32) {
    %c0_i32 = arith.constant 0 : i32
    %c0_i32_0 = arith.constant 0 : i32
    %c0_i32_1 = arith.constant 0 : i32
    return %c0_i32, %c0_i32_0 : i32, i32
  }
  func.func @transform_8(%arg0: i32) -> (i32, i32, i32) {
    %c0_i32 = arith.constant 0 : i32
    %c0_i32_0 = arith.constant 0 : i32
    %c0_i32_1 = arith.constant 0 : i32
    return %arg0, %c0_i32, %c0_i32_0 : i32, i32, i32
  }
  func.func @transform_9(%arg0: i32) -> (i32, i32, i32) {
    %c0_i32 = arith.constant 0 : i32
    %c0_i32_0 = arith.constant 0 : i32
    %c0_i32_1 = arith.constant 0 : i32
    return %arg0, %c0_i32, %c0_i32_0 : i32, i32, i32
  }
}

module attributes {stable_mosaic.version = 11 : i64} {
  func.func @_gauss_prior_kernel(%arg0: i32, %arg1: memref<1x4x128xf32, #tpu.memory_space<vmem>>, %arg2: memref<4x128xf32, #tpu.memory_space<vmem>>, %arg3: memref<4x128xf32, #tpu.memory_space<vmem>>, %arg4: memref<1x1x128xf32, #tpu.memory_space<vmem>>) attributes {dimension_semantics = [#tpu.dimension_semantics<parallel>], iteration_bounds = array<i64: 2>, scalar_prefetch = 0 : i64, scratch_operands = 0 : i64, tpu.core_type = #tpu.core_type<tc>, window_params = [{transform_indices = @transform_0, window_bounds = array<i64: 1, 4, 128>}, {pipeline_mode = #tpu.pipeline_mode<synchronous>, transform_indices = @transform_1, window_bounds = array<i64: 4, 128>}, {pipeline_mode = #tpu.pipeline_mode<synchronous>, transform_indices = @transform_2, window_bounds = array<i64: 4, 128>}, {transform_indices = @transform_3, window_bounds = array<i64: 1, 1, 128>}]} {
    %c0 = arith.constant 0 : index
    %c0_0 = arith.constant 0 : index
    %c0_1 = arith.constant 0 : index
    %0 = vector.load %arg1[%c0, %c0_0, %c0_1] : memref<1x4x128xf32, #tpu.memory_space<vmem>>, vector<1x4x128xf32>
    %1 = vector.shape_cast %0 : vector<1x4x128xf32> to vector<4x128xf32>
    %c0_2 = arith.constant 0 : index
    %c0_3 = arith.constant 0 : index
    %2 = vector.load %arg2[%c0_2, %c0_3] : memref<4x128xf32, #tpu.memory_space<vmem>>, vector<4x128xf32>
    %c0_4 = arith.constant 0 : index
    %c0_5 = arith.constant 0 : index
    %3 = vector.load %arg3[%c0_4, %c0_5] : memref<4x128xf32, #tpu.memory_space<vmem>>, vector<4x128xf32>
    %cst = arith.constant -0.918938517 : f32
    %4 = vector.broadcast %cst : f32 to vector<4x128xf32>
    %5 = arith.subf %4, %3 : vector<4x128xf32>
    %6 = arith.subf %1, %2 : vector<4x128xf32>
    %7 = arith.mulf %6, %6 : vector<4x128xf32>
    %cst_6 = arith.constant 5.000000e-01 : f32
    %8 = vector.broadcast %cst_6 : f32 to vector<4x128xf32>
    %9 = arith.mulf %8, %7 : vector<4x128xf32>
    %cst_7 = arith.constant -2.000000e+00 : f32
    %10 = vector.broadcast %cst_7 : f32 to vector<4x128xf32>
    %11 = arith.mulf %10, %3 : vector<4x128xf32>
    %12 = math.exp %11 : vector<4x128xf32>
    %13 = arith.mulf %9, %12 : vector<4x128xf32>
    %14 = arith.subf %5, %13 : vector<4x128xf32>
    %15 = vector.shape_cast %14 : vector<4x128xf32> to vector<1x4x128xf32>
    %cst_8 = arith.constant dense<0.000000e+00> : vector<1xf32>
    %16 = vector.multi_reduction <add>, %15, %cst_8 [1, 2] : vector<1x4x128xf32> to vector<1xf32>
    %17 = vector.shape_cast %16 : vector<1xf32> to vector<1x1x1xf32>
    %18 = vector.extract %17[0, 0, 0] : f32 from vector<1x1x1xf32>
    %19 = vector.broadcast %18 : f32 to vector<1x1x128xf32>
    %c0_9 = arith.constant 0 : index
    %c0_10 = arith.constant 0 : index
    %c0_11 = arith.constant 0 : index
    %20 = vector.load %arg4[%c0_9, %c0_10, %c0_11] : memref<1x1x128xf32, #tpu.memory_space<vmem>>, vector<1x1x128xf32>
    tpu.vector_store %arg4[%c0_9, %c0_10, %c0_11], %19 {strides = array<i32>} : memref<1x1x128xf32, #tpu.memory_space<vmem>>, vector<1x1x128xf32>,
    return
  }
  func.func @transform_0(%arg0: i32) -> (i32, i32, i32) {
    %c0_i32 = arith.constant 0 : i32
    %c0_i32_0 = arith.constant 0 : i32
    %c0_i32_1 = arith.constant 0 : i32
    return %arg0, %c0_i32, %c0_i32_0 : i32, i32, i32
  }
  func.func @transform_1(%arg0: i32) -> (i32, i32) {
    %c0_i32 = arith.constant 0 : i32
    %c0_i32_0 = arith.constant 0 : i32
    %c0_i32_1 = arith.constant 0 : i32
    return %c0_i32, %c0_i32_0 : i32, i32
  }
  func.func @transform_2(%arg0: i32) -> (i32, i32) {
    %c0_i32 = arith.constant 0 : i32
    %c0_i32_0 = arith.constant 0 : i32
    %c0_i32_1 = arith.constant 0 : i32
    return %c0_i32, %c0_i32_0 : i32, i32
  }
  func.func @transform_3(%arg0: i32) -> (i32, i32, i32) {
    %c0_i32 = arith.constant 0 : i32
    %c0_i32_0 = arith.constant 0 : i32
    %c0_i32_1 = arith.constant 0 : i32
    return %arg0, %c0_i32, %c0_i32_0 : i32, i32, i32
  }
}

</mosaic_0001>

<llo_original>
// kernel: flow_model_forward.10
$region0: #{flow_model_forward.10}
  #allocation0 [shape = 'u32[]', space=smem, size = 0x4, offset = 0x4, fixed_abs, tag = 'smem constant byte address 0x4 - core index']
  #allocation1 [shape = 'u32[144,128]{1,0:T(1,128)}', space=vmem, size = 0x12000, scoped, tag = 'internal scratch']
  %s0 = inlined_call_operand.vmem [shape: bf16[128,16], index: 0, kind: input, shape index: {}]
  %s1 = inlined_call_operand.vmem [shape: bf16[16,16], index: 1, kind: input, shape index: {}]
  %s2 = inlined_call_operand.vmem [shape: f32[1,16], index: 2, kind: input, shape index: {}]
  %s3 = inlined_call_operand.vmem [shape: f32[128,16], index: 3, kind: output, shape index: {}]
  %s4 = sld [smem:[#allocation0]]
  $region22: #{flow_model_forward.10} parent=0
    _
  %s6 = ssub.s32 1, %s4
  %s7 = scalar_select 0, %s6, %s4
  // Predicated region
  $region2: #{flow_model_forward.10} parent=0 // pred_check
    _
  $region3: #{flow_model_forward.10} parent=0 // pred_check_branch
    %9 = sbr.rel (0) target = $region5
  $region4: #{flow_model_forward.10} parent=0 // pred_region
    _
  $region5: #{flow_model_forward.10} parent=0 // pred_fallthru
    _
  // Predicated region
  $region6: #{flow_model_forward.10} parent=0 // pred_check
    _
  $region7: #{flow_model_forward.10} parent=0 // pred_check_branch
    %11 = sbr.rel (0) target = $region9
  $region8: #{flow_model_forward.10} parent=0 // pred_region
    _
  $region9: #{flow_model_forward.10} parent=0 // pred_fallthru
    _
  // Predicated region
  $region10: #{flow_model_forward.10} parent=0 // pred_check
    _
  $region11: #{flow_model_forward.10} parent=0 // pred_check_branch
    %13 = sbr.rel (0) target = $region13
  $region12: #{flow_model_forward.10} parent=0 // pred_region
    _
  $region13: #{flow_model_forward.10} parent=0 // pred_fallthru
    _
  %v15 = vld [vmem:[%s0] sm:$0xf]
  %v16 = vld [vmem:[%s0 + $0x4] sm:$0xf]
  %v17 = vld [vmem:[%s0 + $0x8] sm:$0xf]
  %v18 = vld [vmem:[%s0 + $0xc] sm:$0xf]
  %v19 = vld [vmem:[%s0 + $0x10] sm:$0xf]
  %v20 = vld [vmem:[%s0 + $0x14] sm:$0xf]
  %v21 = vld [vmem:[%s0 + $0x18] sm:$0xf]
  %v22 = vld [vmem:[%s0 + $0x1c] sm:$0xf]
  %v23 = vld [vmem:[%s0 + $0x20] sm:$0xf]
  %v24 = vld [vmem:[%s0 + $0x24] sm:$0xf]
  %v25 = vld [vmem:[%s0 + $0x28] sm:$0xf]
  %v26 = vld [vmem:[%s0 + $0x2c] sm:$0xf]
  %v27 = vld [vmem:[%s0 + $0x30] sm:$0xf]
  %v28 = vld [vmem:[%s0 + $0x34] sm:$0xf]
  %v29 = vld [vmem:[%s0 + $0x38] sm:$0xf]
  %v30 = vld [vmem:[%s0 + $0x3c] sm:$0xf]
  %v31 = vld [vmem:[%s1] sm:$0xf]
  %v32 = vld [vmem:[%s1 + $0x4] sm:$0xf]
  %v33 = vld [vmem:[%s2] sm:$0x1]
  %v35 = vlaneseq
  %v36 = vshrl.u32 %v35, 7
  %v37 = vsub.s32 0, %v36
  %v38 = vrot.slane %v33, %v37
  %v56 = vunpack.c.l.b16 %v15
  %v57 = vunpack.c.l.b16 %v16
  %v58 = vunpack.c.l.b16 %v17
  %v59 = vunpack.c.l.b16 %v18
  %v60 = vunpack.c.l.b16 %v19
  %v61 = vunpack.c.l.b16 %v20
  %v62 = vunpack.c.l.b16 %v21
  %v63 = vunpack.c.l.b16 %v22
  %v64 = vunpack.c.l.b16 %v23
  %v65 = vunpack.c.l.b16 %v24
  %v66 = vunpack.c.l.b16 %v25
  %v67 = vunpack.c.l.b16 %v26
  %v68 = vunpack.c.l.b16 %v27
  %v69 = vunpack.c.l.b16 %v28
  %v70 = vunpack.c.l.b16 %v29
  %v71 = vunpack.c.l.b16 %v30
  %v72 = vpack.c.b16 %v57, %v56
  %v73 = vpack.c.b16 %v59, %v58
  %v74 = vpack.c.b16 %v61, %v60
  %v75 = vpack.c.b16 %v63, %v62
  %v76 = vpack.c.b16 %v65, %v64
  %v77 = vpack.c.b16 %v67, %v66
  %v78 = vpack.c.b16 %v69, %v68
  %v79 = vpack.c.b16 %v71, %v70
  %v82 = vunpack.c.l.b16 %v31
  %v83 = vunpack.c.l.b16 %v32
  %v84 = vpack.c.b16 %v83, %v82
  %vm86 = vcmask 130048
  %v88 = vsel %vm86, %v72, 0
  %v91 = vsel %vm86, %v73, 0
  %v94 = vsel %vm86, %v74, 0
  %v97 = vsel %vm86, %v75, 0
  %v100 = vsel %vm86, %v76, 0
  %v103 = vsel %vm86, %v77, 0
  %v106 = vsel %vm86, %v78, 0
  %v109 = vsel %vm86, %v79, 0
  %111 = vmatprep.subr.bf16.mxu0 0
  %112 = vmatpush1.bf16.msra.mxu0 %v84
  %113 = vmatprep.subr.bf16.mxu0 0
  %114 = vmatpush1.bf16.msra.mxu0 0
  %115 = vmatprep.subr.bf16.mxu0 0
  %116 = vmatpush1.bf16.msra.mxu0 0
  %117 = vmatprep.subr.bf16.mxu0 0
  %118 = vmatpush1.bf16.msra.mxu0 0
  %119 = vmatprep.subr.bf16.mxu0 0
  %120 = vmatpush1.bf16.msra.mxu0 0
  %121 = vmatprep.subr.bf16.mxu0 0
  %122 = vmatpush1.bf16.msra.mxu0 0
  %123 = vmatprep.subr.bf16.mxu0 0
  %124 = vmatpush1.bf16.msra.mxu0 0
  %125 = vmatprep.subr.bf16.mxu0 0
  %126 = vmatpush1.bf16.msra.mxu0 0
  %127 = vmatprep.subr.bf16.mxu0 0
  %128 = vmatpush1.bf16.msra.mxu0 0
  %129 = vmatprep.subr.bf16.mxu0 0
  %130 = vmatpush1.bf16.msra.mxu0 0
  %131 = vmatprep.subr.bf16.mxu0 0
  %132 = vmatpush1.bf16.msra.mxu0 0
  %133 = vmatprep.subr.bf16.mxu0 0
  %134 = vmatpush1.bf16.msra.mxu0 0
  %135 = vmatprep.subr.bf16.mxu0 0
  %136 = vmatpush1.bf16.msra.mxu0 0
  %137 = vmatprep.subr.bf16.mxu0 0
  %138 = vmatpush1.bf16.msra.mxu0 0
  %139 = vmatprep.subr.bf16.mxu0 0
  %140 = vmatpush1.bf16.msra.mxu0 0
  %141 = vmatprep.subr.bf16.mxu0 0
  %142 = vmatpush1.bf16.msra.mxu0 0
  %143 = vmatprep.mubr.bf16.mxu0 0
  %144 = vmatmul.mubr.bf16.gmra.mrb[0].mxu0 %v88
  %v145 = vpop.f32.mrb[0].mxu0
  %v146 = vadd.f32 %v38, %v145
  %v147 = vpop.f32.mrb[0].mxu0
  %v148 = vpop.f32.mrb[0].mxu0
  %v149 = vadd.f32 %v38, %v148
  %v150 = vpop.f32.mrb[0].mxu0
  %151 = vmatprep.mubr.bf16.mxu0 0
  %152 = vmatmul.mubr.bf16.gmra.mrb[0].mxu0 %v91
  %v153 = vpop.f32.mrb[0].mxu0
  %v154 = vadd.f32 %v38, %v153
  %v155 = vpop.f32.mrb[0].mxu0
  %v156 = vpop.f32.mrb[0].mxu0
  %v157 = vadd.f32 %v38, %v156
  %v158 = vpop.f32.mrb[0].mxu0
  %159 = vmatprep.mubr.bf16.mxu0 0
  %160 = vmatmul.mubr.bf16.gmra.mrb[0].mxu0 %v94
  %v161 = vpop.f32.mrb[0].mxu0
  %v162 = vadd.f32 %v38, %v161
  %v163 = vpop.f32.mrb[0].mxu0
  %v164 = vpop.f32.mrb[0].mxu0
  %v165 = vadd.f32 %v38, %v164
  %v166 = vpop.f32.mrb[0].mxu0
  %167 = vmatprep.mubr.bf16.mxu0 0
  %168 = vmatmul.mubr.bf16.gmra.mrb[0].mxu0 %v97
  %v169 = vpop.f32.mrb[0].mxu0
  %v170 = vadd.f32 %v38, %v169
  %v171 = vpop.f32.mrb[0].mxu0
  %v172 = vpop.f32.mrb[0].mxu0
  %v173 = vadd.f32 %v38, %v172
  %v174 = vpop.f32.mrb[0].mxu0
  %175 = vmatprep.mubr.bf16.mxu0 0
  %176 = vmatmul.mubr.bf16.gmra.mrb[0].mxu0 %v100
  %v177 = vpop.f32.mrb[0].mxu0
  %v178 = vadd.f32 %v38, %v177
  %v179 = vpop.f32.mrb[0].mxu0
  %v180 = vpop.f32.mrb[0].mxu0
  %v181 = vadd.f32 %v38, %v180
  %v182 = vpop.f32.mrb[0].mxu0
  %183 = vmatprep.mubr.bf16.mxu0 0
  %184 = vmatmul.mubr.bf16.gmra.mrb[0].mxu0 %v103
  %v185 = vpop.f32.mrb[0].mxu0
  %v186 = vadd.f32 %v38, %v185
  %v187 = vpop.f32.mrb[0].mxu0
  %v188 = vpop.f32.mrb[0].mxu0
  %v189 = vadd.f32 %v38, %v188
  %v190 = vpop.f32.mrb[0].mxu0
  %191 = vmatprep.mubr.bf16.mxu0 0
  %192 = vmatmul.mubr.bf16.gmra.mrb[0].mxu0 %v106
  %v193 = vpop.f32.mrb[0].mxu0
  %v194 = vadd.f32 %v38, %v193
  %v195 = vpop.f32.mrb[0].mxu0
  %v196 = vpop.f32.mrb[0].mxu0
  %v197 = vadd.f32 %v38, %v196
  %v198 = vpop.f32.mrb[0].mxu0
  %199 = vmatprep.mubr.bf16.mxu0 0
  %200 = vmatmul.mubr.bf16.gmra.mrb[0].mxu0 %v109
  %v201 = vpop.f32.mrb[0].mxu0
  %v202 = vadd.f32 %v38, %v201
  %v203 = vpop.f32.mrb[0].mxu0
  %v204 = vpop.f32.mrb[0].mxu0
  %v205 = vadd.f32 %v38, %v204
  %v206 = vpop.f32.mrb[0].mxu0
  %207 = vdwg.mxu0
  %208 = vst.msk [vmem:[%s3] sm:$0xff] %vm86, %v146
  %209 = vst.msk [vmem:[%s3 + $0x8] sm:$0xff] %vm86, %v149
  %210 = vst.msk [vmem:[%s3 + $0x10] sm:$0xff] %vm86, %v154
  %211 = vst.msk [vmem:[%s3 + $0x18] sm:$0xff] %vm86, %v157
  %212 = vst.msk [vmem:[%s3 + $0x20] sm:$0xff] %vm86, %v162
  %213 = vst.msk [vmem:[%s3 + $0x28] sm:$0xff] %vm86, %v165
  %214 = vst.msk [vmem:[%s3 + $0x30] sm:$0xff] %vm86, %v170
  %215 = vst.msk [vmem:[%s3 + $0x38] sm:$0xff] %vm86, %v173
  %216 = vst.msk [vmem:[%s3 + $0x40] sm:$0xff] %vm86, %v178
  %217 = vst.msk [vmem:[%s3 + $0x48] sm:$0xff] %vm86, %v181
  %218 = vst.msk [vmem:[%s3 + $0x50] sm:$0xff] %vm86, %v186
  %219 = vst.msk [vmem:[%s3 + $0x58] sm:$0xff] %vm86, %v189
  %220 = vst.msk [vmem:[%s3 + $0x60] sm:$0xff] %vm86, %v194
  %221 = vst.msk [vmem:[%s3 + $0x68] sm:$0xff] %vm86, %v197
  %222 = vst.msk [vmem:[%s3 + $0x70] sm:$0xff] %vm86, %v202
  %223 = vst.msk [vmem:[%s3 + $0x78] sm:$0xff] %vm86, %v205
  // Predicated region
  $region14: #{flow_model_forward.10} parent=0 // pred_check
    _
  $region15: #{flow_model_forward.10} parent=0 // pred_check_branch
    %225 = sbr.rel (0) target = $region17
  $region16: #{flow_model_forward.10} parent=0 // pred_region
    _
  $region17: #{flow_model_forward.10} parent=0 // pred_fallthru
    _
  // Predicated region
  $region18: #{flow_model_forward.10} parent=0 // pred_check
    _
  $region19: #{flow_model_forward.10} parent=0 // pred_check_branch
    %227 = sbr.rel (0) target = $region21
  $region20: #{flow_model_forward.10} parent=0 // pred_region
    _
  $region21: #{flow_model_forward.10} parent=0 // pred_fallthru
    _

// kernel: flow_model_forward.18
$region0: #{flow_model_forward.18}
  #allocation0 [shape = 'u32[]', space=smem, size = 0x4, offset = 0x4, fixed_abs, tag = 'smem constant byte address 0x4 - core index']
  #allocation1 [shape = 'u32[144,128]{1,0:T(1,128)}', space=vmem, size = 0x12000, scoped, tag = 'internal scratch']
  #allocation2 [shape = 'f32[10,128]{1,0:T(8,128)}', space=vmem, size = 0x2000, scoped, tag = 'scratch operand']
  %s0 = inlined_call_operand.vmem [shape: bf16[2,8,64], index: 0, kind: input, shape index: {}]
  %s1 = inlined_call_operand.vmem [shape: f32[2,8,64], index: 1, kind: input, shape index: {}]
  %s2 = inlined_call_operand.vmem [shape: bf16[3,64,128], index: 2, kind: input, shape index: {}]
  %s3 = inlined_call_operand.vmem [shape: f32[1,128], index: 3, kind: input, shape index: {}]
  %s4 = inlined_call_operand.vmem [shape: f32[2,1,128], index: 4, kind: output, shape index: {}]
  %s5 = sld [smem:[#allocation0]]
  $region49: #{flow_model_forward.18} parent=0
    _
  %s7 = ssub.s32 1, %s5
  %s8 = scalar_select 0, %s7, %s5
  loop: start=0, step=1, limit=4
  $region2: #{flow_model_forward.18} parent=0 // loop_pre_header
    _
  $region3: #{flow_model_forward.18} parent=0 // loop_header
    %s10 = sphi 0, %s14
    %p11 = scmp.ge.s32.totalorder %s10, 4
    %s20 = sphi 0, %s22
    %s23 = sphi 0, %s20
    %s24 = sphi 0, %s23
    %s40 = sphi 0, %s24
    %s46 = sphi 0, %s48
    %s49 = sphi 0, %s46
    %s50 = sphi 0, %s49
    %s66 = sphi 0, %s50
    %s70 = sphi 0, %s70
    %s72 = sphi 0, %s70
    %s73 = sphi 0, %s72
    %s87 = sphi 0, %s73
    %s91 = sphi 0, %s91
    %s93 = sphi 0, %s91
    %s94 = sphi 0, %s93
    %s108 = sphi 0, %s94
    %s114 = sphi 0, %s116
    %s117 = sphi 0, %s114
    %s118 = sphi 0, %s117
    %s134 = sphi 0, %s118
  $region4: #{flow_model_forward.18} parent=0 // loop_header_branch
    %13 = sbr.rel (%p11) target = $region8
  $region5: #{flow_model_forward.18} parent=0 // loop_body
    %s15 = ssub.s32 %s10, 1
    %s16 = ssub.s32 %s10, 2
    %s17 = sadd.s32 %s10, 1
    %s18 = ssub.s32 %s10, %s17
    %p19 = scmp.eq.s32.totalorder %s18, 0
    %s21 = sadd.s32 %s20, 1
    %s22 = scalar_select %p19, %s20, %s21
    %p25 = pneg %p19
    %p26 = scmp.eq.s32.totalorder %s10, 1
    %p27 = por %p25, %p26
    %p28 = scmp.ne.s32.totalorder %s20, %s23
    %p29 = scmp.eq.s32.totalorder %s10, 0
    %p30 = por %p28, %p29
    %p31 = scmp.ne.s32.totalorder %s20, %s23
    %p32 = scmp.eq.s32.totalorder %s15, 1
    %p33 = por %p31, %p32
    %p34 = scmp.ne.s32.totalorder %s23, %s24
    %p35 = scmp.eq.s32.totalorder %s15, 0
    %p36 = por %p34, %p35
    %p37 = scmp.ne.s32.totalorder %s23, %s24
    %p38 = scmp.eq.s32.totalorder %s16, 1
    %p39 = por %p37, %p38
    %p41 = scmp.ne.s32.totalorder %s24, %s40
    %p42 = scmp.eq.s32.totalorder %s16, 0
    %p43 = por %p41, %p42
    %s44 = ssub.s32 %s10, %s17
    %p45 = scmp.eq.s32.totalorder %s44, 0
    %s47 = sadd.s32 %s46, 1
    %s48 = scalar_select %p45, %s46, %s47
    %p51 = pneg %p45
    %p52 = scmp.eq.s32.totalorder %s10, 1
    %p53 = por %p51, %p52
    %p54 = scmp.ne.s32.totalorder %s46, %s49
    %p55 = scmp.eq.s32.totalorder %s10, 0
    %p56 = por %p54, %p55
    %p57 = scmp.ne.s32.totalorder %s46, %s49
    %p58 = scmp.eq.s32.totalorder %s15, 1
    %p59 = por %p57, %p58
    %p60 = scmp.ne.s32.totalorder %s49, %s50
    %p61 = scmp.eq.s32.totalorder %s15, 0
    %p62 = por %p60, %p61
    %p63 = scmp.ne.s32.totalorder %s49, %s50
    %p64 = scmp.eq.s32.totalorder %s16, 1
    %p65 = por %p63, %p64
    %p67 = scmp.ne.s32.totalorder %s50, %s66
    %p68 = scmp.eq.s32.totalorder %s16, 0
    %p69 = por %p67, %p68
    %s71 = sadd.s32 %s70, 1
    %p74 = scmp.eq.s32.totalorder %s10, 1
    %p75 = scmp.ne.s32.totalorder %s70, %s72
    %p76 = scmp.eq.s32.totalorder %s10, 0
    %p77 = por %p75, %p76
    %p78 = scmp.ne.s32.totalorder %s70, %s72
    %p79 = scmp.eq.s32.totalorder %s15, 1
    %p80 = por %p78, %p79
    %p81 = scmp.ne.s32.totalorder %s72, %s73
    %p82 = scmp.eq.s32.totalorder %s15, 0
    %p83 = por %p81, %p82
    %p84 = scmp.ne.s32.totalorder %s72, %s73
    %p85 = scmp.eq.s32.totalorder %s16, 1
    %p86 = por %p84, %p85
    %p88 = scmp.ne.s32.totalorder %s73, %s87
    %p89 = scmp.eq.s32.totalorder %s16, 0
    %p90 = por %p88, %p89
    %s92 = sadd.s32 %s91, 1
    %p95 = scmp.eq.s32.totalorder %s10, 1
    %p96 = scmp.ne.s32.totalorder %s91, %s93
    %p97 = scmp.eq.s32.totalorder %s10, 0
    %p98 = por %p96, %p97
    %p99 = scmp.ne.s32.totalorder %s91, %s93
    %p100 = scmp.eq.s32.totalorder %s15, 1
    %p101 = por %p99, %p100
    %p102 = scmp.ne.s32.totalorder %s93, %s94
    %p103 = scmp.eq.s32.totalorder %s15, 0
    %p104 = por %p102, %p103
    %p105 = scmp.ne.s32.totalorder %s93, %s94
    %p106 = scmp.eq.s32.totalorder %s16, 1
    %p107 = por %p105, %p106
    %p109 = scmp.ne.s32.totalorder %s94, %s108
    %p110 = scmp.eq.s32.totalorder %s16, 0
    %p111 = por %p109, %p110
    %s112 = ssub.s32 %s10, %s17
    %p113 = scmp.eq.s32.totalorder %s112, 0
    %s115 = sadd.s32 %s114, 1
    %s116 = scalar_select %p113, %s114, %s115
    %p119 = pneg %p113
    %p120 = scmp.eq.s32.totalorder %s10, 1
    %p121 = por %p119, %p120
    %p122 = scmp.ne.s32.totalorder %s114, %s117
    %p123 = scmp.eq.s32.totalorder %s10, 0
    %p124 = por %p122, %p123
    %p125 = scmp.ne.s32.totalorder %s114, %s117
    %p126 = scmp.eq.s32.totalorder %s15, 1
    %p127 = por %p125, %p126
    %p128 = scmp.ne.s32.totalorder %s117, %s118
    %p129 = scmp.eq.s32.totalorder %s15, 0
    %p130 = por %p128, %p129
    %p131 = scmp.ne.s32.totalorder %s117, %s118
    %p132 = scmp.eq.s32.totalorder %s16, 1
    %p133 = por %p131, %p132
    %p135 = scmp.ne.s32.totalorder %s118, %s134
    %p136 = scmp.eq.s32.totalorder %s16, 0
    %p137 = por %p135, %p136
    %p138 = scmp.le.s32.totalorder 1, %s10
    %p139 = scmp.lt.s32.totalorder %s10, 3
    %p140 = pnand %p138, %p139
    %p141 = pneg %p140
    // Predicated region
    $region9: #{flow_model_forward.18} parent=5 // pred_check
      _
    $region10: #{flow_model_forward.18} parent=5 // pred_check_branch
      %143 = sbr.rel (%p140) target = $region12
    $region11: #{flow_model_forward.18} parent=5 // pred_region
      %s144 = ssub.s32 %s10, 1
      // Predicated region
      $region13: #{flow_model_forward.18} parent=11 // pred_check
        %p145 = pneg %p83
      $region14: #{flow_model_forward.18} parent=11 // pred_check_branch
        %147 = sbr.rel (%p145) target = $region16
      $region15: #{flow_model_forward.18} parent=11 // pred_region
        _
      $region16: #{flow_model_forward.18} parent=11 // pred_fallthru
        _
      // Predicated region
      $region17: #{flow_model_forward.18} parent=11 // pred_check
        %p148 = pneg %p104
      $region18: #{flow_model_forward.18} parent=11 // pred_check_branch
        %150 = sbr.rel (%p148) target = $region20
      $region19: #{flow_model_forward.18} parent=11 // pred_region
        _
      $region20: #{flow_model_forward.18} parent=11 // pred_fallthru
        _
    $region12: #{flow_model_forward.18} parent=5 // pred_fallthru
      _
    %p151 = scmp.lt.s32.totalorder %s10, 2
    // Predicated region
    $region21: #{flow_model_forward.18} parent=5 // pred_check
      %p152 = pneg %p151
    $region22: #{flow_model_forward.18} parent=5 // pred_check_branch
      %154 = sbr.rel (%p152) target = $region24
    $region23: #{flow_model_forward.18} parent=5 // pred_region
      // Predicated region
      $region25: #{flow_model_forward.18} parent=23 // pred_check
        %p155 = pneg %p30
      $region26: #{flow_model_forward.18} parent=23 // pred_check_branch
        %157 = sbr.rel (%p155) target = $region28
      $region27: #{flow_model_forward.18} parent=23 // pred_region
        %p158 = scmp.lt.s32.totalorder %s10, 1
        %s159 = scalar_select %p158, %s10, 1
        %s160 = smul.addr %s159, 4
        %s161 = scalar_lea.vmem %s0, %s160
      $region28: #{flow_model_forward.18} parent=23 // pred_fallthru
        _
      // Predicated region
      $region29: #{flow_model_forward.18} parent=23 // pred_check
        %p162 = pneg %p56
      $region30: #{flow_model_forward.18} parent=23 // pred_check_branch
        %164 = sbr.rel (%p162) target = $region32
      $region31: #{flow_model_forward.18} parent=23 // pred_region
        %p165 = scmp.lt.s32.totalorder %s10, 1
        %s166 = scalar_select %p165, %s10, 1
        %s167 = smul.addr %s166, 8
        %s168 = scalar_lea.vmem %s1, %s167
      $region32: #{flow_model_forward.18} parent=23 // pred_fallthru
        _
    $region24: #{flow_model_forward.18} parent=5 // pred_fallthru
      _
    %p169 = scmp.le.s32.totalorder 1, %s10
    %p170 = scmp.lt.s32.totalorder %s10, 3
    %p171 = pnand %p169, %p170
    %p172 = pneg %p171
    // Predicated region
    $region33: #{flow_model_forward.18} parent=5 // pred_check
      _
    $region34: #{flow_model_forward.18} parent=5 // pred_check_branch
      %174 = sbr.rel (%p171) target = $region36
    $region35: #{flow_model_forward.18} parent=5 // pred_region
      %s175 = ssub.s32 %s10, 1
      %p176 = scmp.lt.s32.totalorder %s15, 1
      %s177 = scalar_select %p176, %s15, 1
      %s178 = smul.addr %s177, 4
      %s179 = scalar_lea.vmem %s0, %s178
      %p180 = pneg %p36
      %p181 = pneg %p33
      %p182 = scmp.lt.s32.totalorder %s15, 1
      %s183 = scalar_select %p182, %s15, 1
      %s184 = smul.addr %s183, 8
      %s185 = scalar_lea.vmem %s1, %s184
      %p186 = pneg %p62
      %p187 = pneg %p59
      %p188 = pneg %p83
      %p189 = pneg %p80
      %p190 = pneg %p104
      %p191 = pneg %p101
      %p192 = pneg %p130
      %p193 = pneg %p127
      %p194 = scmp.lt.s32.totalorder %s15, 1
      %s195 = scalar_select %p194, %s15, 1
      %s196 = scalar_lea.vmem %s4, %s195
      %p197 = scmp.lt.s32.totalorder %s15, 1
      %s198 = scalar_select %p197, %s15, 1
      %s199 = smul.addr %s198, 4
      %s200 = scalar_lea.vmem %s0, %s199
      %p201 = scmp.lt.s32.totalorder %s15, 1
      %s202 = scalar_select %p201, %s15, 1
      %s203 = smul.addr %s202, 8
      %s204 = scalar_lea.vmem %s1, %s203
      %p205 = scmp.lt.s32.totalorder %s15, 1
      %s206 = scalar_select %p205, %s15, 1
      %s207 = scalar_lea.vmem %s4, %s206
      %v209 = vld [vmem:[%s200] sm:$0xf]
      %210 = vst [vmem:[#allocation2] sm:$0xff] 0.0
      %211 = vst [vmem:[#allocation2 + $0x8] sm:$0x3] 0.0
      %v212 = vld [vmem:[#allocation2 + $0x2] sm:$0xff]
      %v213 = vld [vmem:[%s2] sm:$0xf]
      %v214 = vld [vmem:[%s2 + $0x4] sm:$0xf]
      %v215 = vld [vmem:[%s2 + $0x8] sm:$0xf]
      %v216 = vld [vmem:[%s2 + $0xc] sm:$0xf]
      %v217 = vld [vmem:[%s2 + $0x10] sm:$0xf]
      %v218 = vld [vmem:[%s2 + $0x14] sm:$0xf]
      %v219 = vld [vmem:[%s2 + $0x18] sm:$0xf]
      %v220 = vld [vmem:[%s2 + $0x1c] sm:$0xf]
      %v229 = vunpack.c.l.b16 %v213
      %v230 = vunpack.c.l.b16 %v214
      %v231 = vunpack.c.l.b16 %v215
      %v232 = vunpack.c.l.b16 %v216
      %v233 = vunpack.c.l.b16 %v217
      %v234 = vunpack.c.l.b16 %v218
      %v235 = vunpack.c.l.b16 %v219
      %v236 = vunpack.c.l.b16 %v220
      %v237 = vpack.c.b16 %v230, %v229
      %v238 = vpack.c.b16 %v232, %v231
      %v239 = vpack.c.b16 %v234, %v233
      %v240 = vpack.c.b16 %v236, %v235
      %vm245 = vcmask 523264
      %v247 = vsel %vm245, %v209, 0
      %249 = vmatprep.subr.bf16.mxu0 0
      %250 = vmatpush1.bf16.msra.mxu0 %v237
      %251 = vmatprep.subr.bf16.mxu0 0
      %252 = vmatpush1.bf16.msra.mxu0 %v238
      %253 = vmatprep.subr.bf16.mxu0 0
      %254 = vmatpush1.bf16.msra.mxu0 %v239
      %255 = vmatprep.subr.bf16.mxu0 0
      %256 = vmatpush1.bf16.msra.mxu0 %v240
      %257 = vmatprep.subr.bf16.mxu0 0
      %258 = vmatpush1.bf16.msra.mxu0 0
      %259 = vmatprep.subr.bf16.mxu0 0
      %260 = vmatpush1.bf16.msra.mxu0 0
      %261 = vmatprep.subr.bf16.mxu0 0
      %262 = vmatpush1.bf16.msra.mxu0 0
      %263 = vmatprep.subr.bf16.mxu0 0
      %264 = vmatpush1.bf16.msra.mxu0 0
      %265 = vmatprep.subr.bf16.mxu0 0
      %266 = vmatpush1.bf16.msra.mxu0 0
      %267 = vmatprep.subr.bf16.mxu0 0
      %268 = vmatpush1.bf16.msra.mxu0 0
      %269 = vmatprep.subr.bf16.mxu0 0
      %270 = vmatpush1.bf16.msra.mxu0 0
      %271 = vmatprep.subr.bf16.mxu0 0
      %272 = vmatpush1.bf16.msra.mxu0 0
      %273 = vmatprep.subr.bf16.mxu0 0
      %274 = vmatpush1.bf16.msra.mxu0 0
      %275 = vmatprep.subr.bf16.mxu0 0
      %276 = vmatpush1.bf16.msra.mxu0 0
      %277 = vmatprep.subr.bf16.mxu0 0
      %278 = vmatpush1.bf16.msra.mxu0 0
      %279 = vmatprep.subr.bf16.mxu0 0
      %280 = vmatpush1.bf16.msra.mxu0 0
      %281 = vmatprep.mubr.bf16.mxu0 0
      %282 = vmatmul.mubr.bf16.gmra.mrb[0].mxu0 %v247
      %v283 = vpop.f32.mrb[0].mxu0
      %v284 = vadd.f32 0.0, %v283
      %v285 = vpop.f32.mrb[0].mxu0
      %v286 = vpop.f32.mrb[0].mxu0
      %v287 = vpop.f32.mrb[0].mxu0
      %288 = vdwg.mxu0
      %v289 = vadd.f32 %v212, %v284
      %290 = vst [vmem:[#allocation2 + $0x2] sm:$0xff] %v289
      %v291 = vld [vmem:[#allocation2 + $0x1] sm:$0xff]
      %s292 = scalar_lea.vmem %s2, 32
      %v293 = vld [vmem:[%s292] sm:$0xf]
      %v294 = vld [vmem:[%s292 + $0x4] sm:$0xf]
      %v295 = vld [vmem:[%s292 + $0x8] sm:$0xf]
      %v296 = vld [vmem:[%s292 + $0xc] sm:$0xf]
      %v297 = vld [vmem:[%s292 + $0x10] sm:$0xf]
      %v298 = vld [vmem:[%s292 + $0x14] sm:$0xf]
      %v299 = vld [vmem:[%s292 + $0x18] sm:$0xf]
      %v300 = vld [vmem:[%s292 + $0x1c] sm:$0xf]
      %v309 = vunpack.c.l.b16 %v293
      %v310 = vunpack.c.l.b16 %v294
      %v311 = vunpack.c.l.b16 %v295
      %v312 = vunpack.c.l.b16 %v296
      %v313 = vunpack.c.l.b16 %v297
      %v314 = vunpack.c.l.b16 %v298
      %v315 = vunpack.c.l.b16 %v299
      %v316 = vunpack.c.l.b16 %v300
      %v317 = vpack.c.b16 %v310, %v309
      %v318 = vpack.c.b16 %v312, %v311
      %v319 = vpack.c.b16 %v314, %v313
      %v320 = vpack.c.b16 %v316, %v315
      %325 = vmatprep.subr.bf16.mxu0 0
      %326 = vmatpush1.bf16.msra.mxu0 %v317
      %327 = vmatprep.subr.bf16.mxu0 0
      %328 = vmatpush1.bf16.msra.mxu0 %v318
      %329 = vmatprep.subr.bf16.mxu0 0
      %330 = vmatpush1.bf16.msra.mxu0 %v319
      %331 = vmatprep.subr.bf16.mxu0 0
      %332 = vmatpush1.bf16.msra.mxu0 %v320
      %333 = vmatprep.subr.bf16.mxu0 0
      %334 = vmatpush1.bf16.msra.mxu0 0
      %335 = vmatprep.subr.bf16.mxu0 0
      %336 = vmatpush1.bf16.msra.mxu0 0
      %337 = vmatprep.subr.bf16.mxu0 0
      %338 = vmatpush1.bf16.msra.mxu0 0
      %339 = vmatprep.subr.bf16.mxu0 0
      %340 = vmatpush1.bf16.msra.mxu0 0
      %341 = vmatprep.subr.bf16.mxu0 0
      %342 = vmatpush1.bf16.msra.mxu0 0
      %343 = vmatprep.subr.bf16.mxu0 0
      %344 = vmatpush1.bf16.msra.mxu0 0
      %345 = vmatprep.subr.bf16.mxu0 0
      %346 = vmatpush1.bf16.msra.mxu0 0
      %347 = vmatprep.subr.bf16.mxu0 0
      %348 = vmatpush1.bf16.msra.mxu0 0
      %349 = vmatprep.subr.bf16.mxu0 0
      %350 = vmatpush1.bf16.msra.mxu0 0
      %351 = vmatprep.subr.bf16.mxu0 0
      %352 = vmatpush1.bf16.msra.mxu0 0
      %353 = vmatprep.subr.bf16.mxu0 0
      %354 = vmatpush1.bf16.msra.mxu0 0
      %355 = vmatprep.subr.bf16.mxu0 0
      %356 = vmatpush1.bf16.msra.mxu0 0
      %357 = vmatprep.mubr.bf16.mxu0 0
      %358 = vmatmul.mubr.bf16.gmra.mrb[0].mxu0 %v247
      %v359 = vpop.f32.mrb[0].mxu0
      %v360 = vadd.f32 0.0, %v359
      %v361 = vpop.f32.mrb[0].mxu0
      %v362 = vpop.f32.mrb[0].mxu0
      %v363 = vpop.f32.mrb[0].mxu0
      %364 = vdwg.mxu0
      %v365 = vadd.f32 %v291, %v360
      %366 = vst [vmem:[#allocation2 + $0x1] sm:$0xff] %v365
      %v367 = vld [vmem:[#allocation2] sm:$0xff]
      %s368 = scalar_lea.vmem %s2, 64
      %v369 = vld [vmem:[%s368] sm:$0xf]
      %v370 = vld [vmem:[%s368 + $0x4] sm:$0xf]
      %v371 = vld [vmem:[%s368 + $0x8] sm:$0xf]
      %v372 = vld [vmem:[%s368 + $0xc] sm:$0xf]
      %v373 = vld [vmem:[%s368 + $0x10] sm:$0xf]
      %v374 = vld [vmem:[%s368 + $0x14] sm:$0xf]
      %v375 = vld [vmem:[%s368 + $0x18] sm:$0xf]
      %v376 = vld [vmem:[%s368 + $0x1c] sm:$0xf]
      %v385 = vunpack.c.l.b16 %v369
      %v386 = vunpack.c.l.b16 %v370
      %v387 = vunpack.c.l.b16 %v371
      %v388 = vunpack.c.l.b16 %v372
      %v389 = vunpack.c.l.b16 %v373
      %v390 = vunpack.c.l.b16 %v374
      %v391 = vunpack.c.l.b16 %v375
      %v392 = vunpack.c.l.b16 %v376
      %v393 = vpack.c.b16 %v386, %v385
      %v394 = vpack.c.b16 %v388, %v387
      %v395 = vpack.c.b16 %v390, %v389
      %v396 = vpack.c.b16 %v392, %v391
      %401 = vmatprep.subr.bf16.mxu0 0
      %402 = vmatpush1.bf16.msra.mxu0 %v393
      %403 = vmatprep.subr.bf16.mxu0 0
      %404 = vmatpush1.bf16.msra.mxu0 %v394
      %405 = vmatprep.subr.bf16.mxu0 0
      %406 = vmatpush1.bf16.msra.mxu0 %v395
      %407 = vmatprep.subr.bf16.mxu0 0
      %408 = vmatpush1.bf16.msra.mxu0 %v396
      %409 = vmatprep.subr.bf16.mxu0 0
      %410 = vmatpush1.bf16.msra.mxu0 0
      %411 = vmatprep.subr.bf16.mxu0 0
      %412 = vmatpush1.bf16.msra.mxu0 0
      %413 = vmatprep.subr.bf16.mxu0 0
      %414 = vmatpush1.bf16.msra.mxu0 0
      %415 = vmatprep.subr.bf16.mxu0 0
      %416 = vmatpush1.bf16.msra.mxu0 0
      %417 = vmatprep.subr.bf16.mxu0 0
      %418 = vmatpush1.bf16.msra.mxu0 0
      %419 = vmatprep.subr.bf16.mxu0 0
      %420 = vmatpush1.bf16.msra.mxu0 0
      %421 = vmatprep.subr.bf16.mxu0 0
      %422 = vmatpush1.bf16.msra.mxu0 0
      %423 = vmatprep.subr.bf16.mxu0 0
      %424 = vmatpush1.bf16.msra.mxu0 0
      %425 = vmatprep.subr.bf16.mxu0 0
      %426 = vmatpush1.bf16.msra.mxu0 0
      %427 = vmatprep.subr.bf16.mxu0 0
      %428 = vmatpush1.bf16.msra.mxu0 0
      %429 = vmatprep.subr.bf16.mxu0 0
      %430 = vmatpush1.bf16.msra.mxu0 0
      %431 = vmatprep.subr.bf16.mxu0 0
      %432 = vmatpush1.bf16.msra.mxu0 0
      %433 = vmatprep.mubr.bf16.mxu0 0
      %434 = vmatmul.mubr.bf16.gmra.mrb[0].mxu0 %v247
      %v435 = vpop.f32.mrb[0].mxu0
      %v436 = vadd.f32 0.0, %v435
      %v437 = vpop.f32.mrb[0].mxu0
      %v438 = vpop.f32.mrb[0].mxu0
      %v439 = vpop.f32.mrb[0].mxu0
      %440 = vdwg.mxu0
      %v441 = vadd.f32 %v367, %v436
      %442 = vst [vmem:[#allocation2] sm:$0xff] %v441
      %v443 = vld [vmem:[#allocation2 + $0x1] sm:$0xff]
      %v444 = vld [vmem:[%s3] sm:$0x1]
      %v446 = vlaneseq
      %v447 = vshrl.u32 %v446, 7
      %v448 = vsub.s32 0, %v447
      %v449 = vrot.slane %v444, %v448
      %v451 = vadd.f32 %v443, %v449
      %v452 = vld [vmem:[%s204] sm:$0xff]
      %v453 = vsub.f32 -0.9189385, %v451
      %v454 = vsub.f32 %v452, %v451
      %v455 = vmul.f32 %v454, %v454
      %v456 = vmul.f32 %v455, 0.5
      %v457 = vmul.f32 %v451, -2.0
      %v458 = vmul.f32 %v457, 1.442695
      %v459 = vpow.pop %v458
      %461 = vrot.lane.b32.xlu0 %v459, 64
      %v462 = vpop.permute.xlu0 %461
      %v464 = vmul.f32 %v456, %v462
      %466 = vrot.lane.b32.xlu0 %v464, 64
      %v467 = vpop.permute.xlu0 %466
      %v469 = vsub.f32 %v453, %v467
      %471 = vrot.lane.b32.xlu0 %v469, 64
      %v472 = vpop.permute.xlu0 %471
      %v474 = vsel %vm245, %v472, 0.0
      %475 = vadd.xlane.f32.xlu0 %v474
      %v476 = vpop.xlane.xlu0 %475
      %v477 = vrot.slane %v476, 4
      %v478 = vadd.f32 %v476, %v477
      %v479 = vrot.slane %v478, 2
      %v480 = vadd.f32 %v478, %v479
      %v481 = vrot.slane %v480, 1
      %v482 = vadd.f32 %v480, %v481
      %s483 = vtos %v482
      %v484 = vstv %s483
      %485 = vst [vmem:[%s207] sm:$0x1] %v484
      %p486 = scmp.lt.s32.totalorder %s15, 1
      %s487 = scalar_select %p486, %s15, 1
      %s488 = scalar_lea.vmem %s4, %s487
      // Predicated region
      $region37: #{flow_model_forward.18} parent=35 // pred_check
        %p489 = pneg %p127
      $region38: #{flow_model_forward.18} parent=35 // pred_check_branch
        %491 = sbr.rel (%p489) target = $region40
      $region39: #{flow_model_forward.18} parent=35 // pred_region
        _
      $region40: #{flow_model_forward.18} parent=35 // pred_fallthru
        _
    $region36: #{flow_model_forward.18} parent=5 // pred_fallthru
      _
    %p492 = scmp.le.s32.totalorder 2, %s10
    // Predicated region
    $region41: #{flow_model_forward.18} parent=5 // pred_check
      %p493 = pneg %p492
    $region42: #{flow_model_forward.18} parent=5 // pred_check_branch
      %495 = sbr.rel (%p493) target = $region44
    $region43: #{flow_model_forward.18} parent=5 // pred_region
      %s496 = ssub.s32 %s10, 2
      // Predicated region
      $region45: #{flow_model_forward.18} parent=43 // pred_check
        %p497 = pneg %p133
      $region46: #{flow_model_forward.18} parent=43 // pred_check_branch
        %499 = sbr.rel (%p497) target = $region48
      $region47: #{flow_model_forward.18} parent=43 // pred_region
        %p500 = scmp.lt.s32.totalorder %s16, 1
        %s501 = scalar_select %p500, %s16, 1
        %s502 = scalar_lea.vmem %s4, %s501
      $region48: #{flow_model_forward.18} parent=43 // pred_fallthru
        _
    $region44: #{flow_model_forward.18} parent=5 // pred_fallthru
      _
  $region6: #{flow_model_forward.18} parent=0 // loop_footer
    %s14 = sadd.s32 1, %s10
  $region7: #{flow_model_forward.18} parent=0 // loop_footer_branch
    %9 = sbr.rel target = $region3
  $region8: #{flow_model_forward.18} parent=0 // loop_exit
    _

// kernel: flow_model_forward.13
$region0: #{flow_model_forward.13}
  #allocation0 [shape = 'u32[]', space=smem, size = 0x4, offset = 0x4, fixed_abs, tag = 'smem constant byte address 0x4 - core index']
  #allocation1 [shape = 'u32[144,128]{1,0:T(1,128)}', space=vmem, size = 0x12000, scoped, tag = 'internal scratch']
  %s0 = inlined_call_operand.vmem [shape: bf16[32,32], index: 0, kind: input, shape index: {}]
  %s1 = inlined_call_operand.vmem [shape: bf16[32,32], index: 1, kind: input, shape index: {}]
  %s2 = inlined_call_operand.vmem [shape: f32[1,32], index: 2, kind: input, shape index: {}]
  %s3 = inlined_call_operand.vmem [shape: f32[32,32], index: 3, kind: output, shape index: {}]
  %s4 = sld [smem:[#allocation0]]
  $region22: #{flow_model_forward.13} parent=0
    _
  %s6 = ssub.s32 1, %s4
  %s7 = scalar_select 0, %s6, %s4
  // Predicated region
  $region2: #{flow_model_forward.13} parent=0 // pred_check
    _
  $region3: #{flow_model_forward.13} parent=0 // pred_check_branch
    %9 = sbr.rel (0) target = $region5
  $region4: #{flow_model_forward.13} parent=0 // pred_region
    _
  $region5: #{flow_model_forward.13} parent=0 // pred_fallthru
    _
  // Predicated region
  $region6: #{flow_model_forward.13} parent=0 // pred_check
    _
  $region7: #{flow_model_forward.13} parent=0 // pred_check_branch
    %11 = sbr.rel (0) target = $region9
  $region8: #{flow_model_forward.13} parent=0 // pred_region
    _
  $region9: #{flow_model_forward.13} parent=0 // pred_fallthru
    _
  // Predicated region
  $region10: #{flow_model_forward.13} parent=0 // pred_check
    _
  $region11: #{flow_model_forward.13} parent=0 // pred_check_branch
    %13 = sbr.rel (0) target = $region13
  $region12: #{flow_model_forward.13} parent=0 // pred_region
    _
  $region13: #{flow_model_forward.13} parent=0 // pred_fallthru
    _
  %v15 = vld [vmem:[%s0] sm:$0xf]
  %v16 = vld [vmem:[%s0 + $0x4] sm:$0xf]
  %v17 = vld [vmem:[%s0 + $0x8] sm:$0xf]
  %v18 = vld [vmem:[%s0 + $0xc] sm:$0xf]
  %v19 = vld [vmem:[%s1] sm:$0xf]
  %v20 = vld [vmem:[%s1 + $0x4] sm:$0xf]
  %v21 = vld [vmem:[%s1 + $0x8] sm:$0xf]
  %v22 = vld [vmem:[%s1 + $0xc] sm:$0xf]
  %v23 = vld [vmem:[%s2] sm:$0x1]
  %v25 = vlaneseq
  %v26 = vshrl.u32 %v25, 7
  %v27 = vsub.s32 0, %v26
  %v28 = vrot.slane %v23, %v27
  %v34 = vunpack.c.l.b16 %v15
  %v35 = vunpack.c.l.b16 %v16
  %v36 = vunpack.c.l.b16 %v17
  %v37 = vunpack.c.l.b16 %v18
  %v38 = vpack.c.b16 %v35, %v34
  %v39 = vpack.c.b16 %v37, %v36
  %v44 = vunpack.c.l.b16 %v19
  %v45 = vunpack.c.l.b16 %v20
  %v46 = vunpack.c.l.b16 %v21
  %v47 = vunpack.c.l.b16 %v22
  %v48 = vpack.c.b16 %v45, %v44
  %v49 = vpack.c.b16 %v47, %v46
  %vm52 = vcmask 261120
  %v54 = vsel %vm52, %v38, 0
  %v57 = vsel %vm52, %v39, 0
  %59 = vmatprep.subr.bf16.mxu0 0
  %60 = vmatpush1.bf16.msra.mxu0 %v48
  %61 = vmatprep.subr.bf16.mxu0 0
  %62 = vmatpush1.bf16.msra.mxu0 %v49
  %63 = vmatprep.subr.bf16.mxu0 0
  %64 = vmatpush1.bf16.msra.mxu0 0
  %65 = vmatprep.subr.bf16.mxu0 0
  %66 = vmatpush1.bf16.msra.mxu0 0
  %67 = vmatprep.subr.bf16.mxu0 0
  %68 = vmatpush1.bf16.msra.mxu0 0
  %69 = vmatprep.subr.bf16.mxu0 0
  %70 = vmatpush1.bf16.msra.mxu0 0
  %71 = vmatprep.subr.bf16.mxu0 0
  %72 = vmatpush1.bf16.msra.mxu0 0
  %73 = vmatprep.subr.bf16.mxu0 0
  %74 = vmatpush1.bf16.msra.mxu0 0
  %75 = vmatprep.subr.bf16.mxu0 0
  %76 = vmatpush1.bf16.msra.mxu0 0
  %77 = vmatprep.subr.bf16.mxu0 0
  %78 = vmatpush1.bf16.msra.mxu0 0
  %79 = vmatprep.subr.bf16.mxu0 0
  %80 = vmatpush1.bf16.msra.mxu0 0
  %81 = vmatprep.subr.bf16.mxu0 0
  %82 = vmatpush1.bf16.msra.mxu0 0
  %83 = vmatprep.subr.bf16.mxu0 0
  %84 = vmatpush1.bf16.msra.mxu0 0
  %85 = vmatprep.subr.bf16.mxu0 0
  %86 = vmatpush1.bf16.msra.mxu0 0
  %87 = vmatprep.subr.bf16.mxu0 0
  %88 = vmatpush1.bf16.msra.mxu0 0
  %89 = vmatprep.subr.bf16.mxu0 0
  %90 = vmatpush1.bf16.msra.mxu0 0
  %91 = vmatprep.mubr.bf16.mxu0 0
  %92 = vmatmul.mubr.bf16.gmra.mrb[0].mxu0 %v54
  %v93 = vpop.f32.mrb[0].mxu0
  %v94 = vadd.f32 %v28, %v93
  %v95 = vpop.f32.mrb[0].mxu0
  %v96 = vpop.f32.mrb[0].mxu0
  %v97 = vadd.f32 %v28, %v96
  %v98 = vpop.f32.mrb[0].mxu0
  %99 = vmatprep.mubr.bf16.mxu0 0
  %100 = vmatmul.mubr.bf16.gmra.mrb[0].mxu0 %v57
  %v101 = vpop.f32.mrb[0].mxu0
  %v102 = vadd.f32 %v28, %v101
  %v103 = vpop.f32.mrb[0].mxu0
  %v104 = vpop.f32.mrb[0].mxu0
  %v105 = vadd.f32 %v28, %v104
  %v106 = vpop.f32.mrb[0].mxu0
  %107 = vdwg.mxu0
  %108 = vst.msk [vmem:[%s3] sm:$0xff] %vm52, %v94
  %109 = vst.msk [vmem:[%s3 + $0x8] sm:$0xff] %vm52, %v97
  %110 = vst.msk [vmem:[%s3 + $0x10] sm:$0xff] %vm52, %v102
  %111 = vst.msk [vmem:[%s3 + $0x18] sm:$0xff] %vm52, %v105
  // Predicated region
  $region14: #{flow_model_forward.13} parent=0 // pred_check
    _
  $region15: #{flow_model_forward.13} parent=0 // pred_check_branch
    %113 = sbr.rel (0) target = $region17
  $region16: #{flow_model_forward.13} parent=0 // pred_region
    _
  $region17: #{flow_model_forward.13} parent=0 // pred_fallthru
    _
  // Predicated region
  $region18: #{flow_model_forward.13} parent=0 // pred_check
    _
  $region19: #{flow_model_forward.13} parent=0 // pred_check_branch
    %115 = sbr.rel (0) target = $region21
  $region20: #{flow_model_forward.13} parent=0 // pred_region
    _
  $region21: #{flow_model_forward.13} parent=0 // pred_fallthru
    _

// kernel: flow_model_forward.11
$region0: #{flow_model_forward.11}
  #allocation0 [shape = 'u32[]', space=smem, size = 0x4, offset = 0x4, fixed_abs, tag = 'smem constant byte address 0x4 - core index']
  #allocation1 [shape = 'u32[144,128]{1,0:T(1,128)}', space=vmem, size = 0x12000, scoped, tag = 'internal scratch']
  #allocation2 [shape = 'f32[10,256]{1,0:T(8,128)}', space=vmem, size = 0x4000, scoped, tag = 'scratch operand']
  #allocation3 [shape = 'f32[10,128]{1,0:T(8,128)}', space=vmem, size = 0x2000, scoped, tag = 'scratch operand']
  %s0 = inlined_call_operand.vmem [shape: bf16[2,8,64], index: 0, kind: input, shape index: {}]
  %s1 = inlined_call_operand.vmem [shape: f32[2,8,64], index: 1, kind: input, shape index: {}]
  %s2 = inlined_call_operand.vmem [shape: bf16[3,64,256], index: 2, kind: input, shape index: {}]
  %s3 = inlined_call_operand.vmem [shape: f32[1,256], index: 3, kind: input, shape index: {}]
  %s4 = inlined_call_operand.vmem [shape: bf16[256,256], index: 4, kind: input, shape index: {}]
  %s5 = inlined_call_operand.vmem [shape: f32[1,256], index: 5, kind: input, shape index: {}]
  %s6 = inlined_call_operand.vmem [shape: bf16[3,256,128], index: 6, kind: input, shape index: {}]
  %s7 = inlined_call_operand.vmem [shape: f32[1,128], index: 7, kind: input, shape index: {}]
  %s8 = inlined_call_operand.vmem [shape: f32[2,8,64], index: 8, kind: output, shape index: {0}]
  %s9 = inlined_call_operand.vmem [shape: f32[2,1,128], index: 9, kind: output, shape index: {1}]
  %10 = xla_tuple %s8, %s9
  %s11 = sld [smem:[#allocation0]]
  $region73: #{flow_model_forward.11} parent=0
    _
  %s13 = ssub.s32 1, %s11
  %s14 = scalar_select 0, %s13, %s11
  loop: start=0, step=1, limit=4
  $region2: #{flow_model_forward.11} parent=0 // loop_pre_header
    _
  $region3: #{flow_model_forward.11} parent=0 // loop_header
    %s16 = sphi 0, %s20
    %p17 = scmp.ge.s32.totalorder %s16, 4
    %s26 = sphi 0, %s28
    %s29 = sphi 0, %s26
    %s30 = sphi 0, %s29
    %s46 = sphi 0, %s30
    %s52 = sphi 0, %s54
    %s55 = sphi 0, %s52
    %s56 = sphi 0, %s55
    %s72 = sphi 0, %s56
    %s76 = sphi 0, %s76
    %s78 = sphi 0, %s76
    %s79 = sphi 0, %s78
    %s93 = sphi 0, %s79
    %s97 = sphi 0, %s97
    %s99 = sphi 0, %s97
    %s100 = sphi 0, %s99
    %s114 = sphi 0, %s100
    %s118 = sphi 0, %s118
    %s120 = sphi 0, %s118
    %s121 = sphi 0, %s120
    %s135 = sphi 0, %s121
    %s139 = sphi 0, %s139
    %s141 = sphi 0, %s139
    %s142 = sphi 0, %s141
    %s156 = sphi 0, %s142
    %s160 = sphi 0, %s160
    %s162 = sphi 0, %s160
    %s163 = sphi 0, %s162
    %s177 = sphi 0, %s163
    %s181 = sphi 0, %s181
    %s183 = sphi 0, %s181
    %s184 = sphi 0, %s183
    %s198 = sphi 0, %s184
    %s204 = sphi 0, %s206
    %s207 = sphi 0, %s204
    %s208 = sphi 0, %s207
    %s224 = sphi 0, %s208
    %s230 = sphi 0, %s232
    %s233 = sphi 0, %s230
    %s234 = sphi 0, %s233
    %s250 = sphi 0, %s234
  $region4: #{flow_model_forward.11} parent=0 // loop_header_branch
    %19 = sbr.rel (%p17) target = $region8
  $region5: #{flow_model_forward.11} parent=0 // loop_body
    %s21 = ssub.s32 %s16, 1
    %s22 = ssub.s32 %s16, 2
    %s23 = sadd.s32 %s16, 1
    %s24 = ssub.s32 %s16, %s23
    %p25 = scmp.eq.s32.totalorder %s24, 0
    %s27 = sadd.s32 %s26, 1
    %s28 = scalar_select %p25, %s26, %s27
    %p31 = pneg %p25
    %p32 = scmp.eq.s32.totalorder %s16, 1
    %p33 = por %p31, %p32
    %p34 = scmp.ne.s32.totalorder %s26, %s29
    %p35 = scmp.eq.s32.totalorder %s16, 0
    %p36 = por %p34, %p35
    %p37 = scmp.ne.s32.totalorder %s26, %s29
    %p38 = scmp.eq.s32.totalorder %s21, 1
    %p39 = por %p37, %p38
    %p40 = scmp.ne.s32.totalorder %s29, %s30
    %p41 = scmp.eq.s32.totalorder %s21, 0
    %p42 = por %p40, %p41
    %p43 = scmp.ne.s32.totalorder %s29, %s30
    %p44 = scmp.eq.s32.totalorder %s22, 1
    %p45 = por %p43, %p44
    %p47 = scmp.ne.s32.totalorder %s30, %s46
    %p48 = scmp.eq.s32.totalorder %s22, 0
    %p49 = por %p47, %p48
    %s50 = ssub.s32 %s16, %s23
    %p51 = scmp.eq.s32.totalorder %s50, 0
    %s53 = sadd.s32 %s52, 1
    %s54 = scalar_select %p51, %s52, %s53
    %p57 = pneg %p51
    %p58 = scmp.eq.s32.totalorder %s16, 1
    %p59 = por %p57, %p58
    %p60 = scmp.ne.s32.totalorder %s52, %s55
    %p61 = scmp.eq.s32.totalorder %s16, 0
    %p62 = por %p60, %p61
    %p63 = scmp.ne.s32.totalorder %s52, %s55
    %p64 = scmp.eq.s32.totalorder %s21, 1
    %p65 = por %p63, %p64
    %p66 = scmp.ne.s32.totalorder %s55, %s56
    %p67 = scmp.eq.s32.totalorder %s21, 0
    %p68 = por %p66, %p67
    %p69 = scmp.ne.s32.totalorder %s55, %s56
    %p70 = scmp.eq.s32.totalorder %s22, 1
    %p71 = por %p69, %p70
    %p73 = scmp.ne.s32.totalorder %s56, %s72
    %p74 = scmp.eq.s32.totalorder %s22, 0
    %p75 = por %p73, %p74
    %s77 = sadd.s32 %s76, 1
    %p80 = scmp.eq.s32.totalorder %s16, 1
    %p81 = scmp.ne.s32.totalorder %s76, %s78
    %p82 = scmp.eq.s32.totalorder %s16, 0
    %p83 = por %p81, %p82
    %p84 = scmp.ne.s32.totalorder %s76, %s78
    %p85 = scmp.eq.s32.totalorder %s21, 1
    %p86 = por %p84, %p85
    %p87 = scmp.ne.s32.totalorder %s78, %s79
    %p88 = scmp.eq.s32.totalorder %s21, 0
    %p89 = por %p87, %p88
    %p90 = scmp.ne.s32.totalorder %s78, %s79
    %p91 = scmp.eq.s32.totalorder %s22, 1
    %p92 = por %p90, %p91
    %p94 = scmp.ne.s32.totalorder %s79, %s93
    %p95 = scmp.eq.s32.totalorder %s22, 0
    %p96 = por %p94, %p95
    %s98 = sadd.s32 %s97, 1
    %p101 = scmp.eq.s32.totalorder %s16, 1
    %p102 = scmp.ne.s32.totalorder %s97, %s99
    %p103 = scmp.eq.s32.totalorder %s16, 0
    %p104 = por %p102, %p103
    %p105 = scmp.ne.s32.totalorder %s97, %s99
    %p106 = scmp.eq.s32.totalorder %s21, 1
    %p107 = por %p105, %p106
    %p108 = scmp.ne.s32.totalorder %s99, %s100
    %p109 = scmp.eq.s32.totalorder %s21, 0
    %p110 = por %p108, %p109
    %p111 = scmp.ne.s32.totalorder %s99, %s100
    %p112 = scmp.eq.s32.totalorder %s22, 1
    %p113 = por %p111, %p112
    %p115 = scmp.ne.s32.totalorder %s100, %s114
    %p116 = scmp.eq.s32.totalorder %s22, 0
    %p117 = por %p115, %p116
    %s119 = sadd.s32 %s118, 1
    %p122 = scmp.eq.s32.totalorder %s16, 1
    %p123 = scmp.ne.s32.totalorder %s118, %s120
    %p124 = scmp.eq.s32.totalorder %s16, 0
    %p125 = por %p123, %p124
    %p126 = scmp.ne.s32.totalorder %s118, %s120
    %p127 = scmp.eq.s32.totalorder %s21, 1
    %p128 = por %p126, %p127
    %p129 = scmp.ne.s32.totalorder %s120, %s121
    %p130 = scmp.eq.s32.totalorder %s21, 0
    %p131 = por %p129, %p130
    %p132 = scmp.ne.s32.totalorder %s120, %s121
    %p133 = scmp.eq.s32.totalorder %s22, 1
    %p134 = por %p132, %p133
    %p136 = scmp.ne.s32.totalorder %s121, %s135
    %p137 = scmp.eq.s32.totalorder %s22, 0
    %p138 = por %p136, %p137
    %s140 = sadd.s32 %s139, 1
    %p143 = scmp.eq.s32.totalorder %s16, 1
    %p144 = scmp.ne.s32.totalorder %s139, %s141
    %p145 = scmp.eq.s32.totalorder %s16, 0
    %p146 = por %p144, %p145
    %p147 = scmp.ne.s32.totalorder %s139, %s141
    %p148 = scmp.eq.s32.totalorder %s21, 1
    %p149 = por %p147, %p148
    %p150 = scmp.ne.s32.totalorder %s141, %s142
    %p151 = scmp.eq.s32.totalorder %s21, 0
    %p152 = por %p150, %p151
    %p153 = scmp.ne.s32.totalorder %s141, %s142
    %p154 = scmp.eq.s32.totalorder %s22, 1
    %p155 = por %p153, %p154
    %p157 = scmp.ne.s32.totalorder %s142, %s156
    %p158 = scmp.eq.s32.totalorder %s22, 0
    %p159 = por %p157, %p158
    %s161 = sadd.s32 %s160, 1
    %p164 = scmp.eq.s32.totalorder %s16, 1
    %p165 = scmp.ne.s32.totalorder %s160, %s162
    %p166 = scmp.eq.s32.totalorder %s16, 0
    %p167 = por %p165, %p166
    %p168 = scmp.ne.s32.totalorder %s160, %s162
    %p169 = scmp.eq.s32.totalorder %s21, 1
    %p170 = por %p168, %p169
    %p171 = scmp.ne.s32.totalorder %s162, %s163
    %p172 = scmp.eq.s32.totalorder %s21, 0
    %p173 = por %p171, %p172
    %p174 = scmp.ne.s32.totalorder %s162, %s163
    %p175 = scmp.eq.s32.totalorder %s22, 1
    %p176 = por %p174, %p175
    %p178 = scmp.ne.s32.totalorder %s163, %s177
    %p179 = scmp.eq.s32.totalorder %s22, 0
    %p180 = por %p178, %p179
    %s182 = sadd.s32 %s181, 1
    %p185 = scmp.eq.s32.totalorder %s16, 1
    %p186 = scmp.ne.s32.totalorder %s181, %s183
    %p187 = scmp.eq.s32.totalorder %s16, 0
    %p188 = por %p186, %p187
    %p189 = scmp.ne.s32.totalorder %s181, %s183
    %p190 = scmp.eq.s32.totalorder %s21, 1
    %p191 = por %p189, %p190
    %p192 = scmp.ne.s32.totalorder %s183, %s184
    %p193 = scmp.eq.s32.totalorder %s21, 0
    %p194 = por %p192, %p193
    %p195 = scmp.ne.s32.totalorder %s183, %s184
    %p196 = scmp.eq.s32.totalorder %s22, 1
    %p197 = por %p195, %p196
    %p199 = scmp.ne.s32.totalorder %s184, %s198
    %p200 = scmp.eq.s32.totalorder %s22, 0
    %p201 = por %p199, %p200
    %s202 = ssub.s32 %s16, %s23
    %p203 = scmp.eq.s32.totalorder %s202, 0
    %s205 = sadd.s32 %s204, 1
    %s206 = scalar_select %p203, %s204, %s205
    %p209 = pneg %p203
    %p210 = scmp.eq.s32.totalorder %s16, 1
    %p211 = por %p209, %p210
    %p212 = scmp.ne.s32.totalorder %s204, %s207
    %p213 = scmp.eq.s32.totalorder %s16, 0
    %p214 = por %p212, %p213
    %p215 = scmp.ne.s32.totalorder %s204, %s207
    %p216 = scmp.eq.s32.totalorder %s21, 1
    %p217 = por %p215, %p216
    %p218 = scmp.ne.s32.totalorder %s207, %s208
    %p219 = scmp.eq.s32.totalorder %s21, 0
    %p220 = por %p218, %p219
    %p221 = scmp.ne.s32.totalorder %s207, %s208
    %p222 = scmp.eq.s32.totalorder %s22, 1
    %p223 = por %p221, %p222
    %p225 = scmp.ne.s32.totalorder %s208, %s224
    %p226 = scmp.eq.s32.totalorder %s22, 0
    %p227 = por %p225, %p226
    %s228 = ssub.s32 %s16, %s23
    %p229 = scmp.eq.s32.totalorder %s228, 0
    %s231 = sadd.s32 %s230, 1
    %s232 = scalar_select %p229, %s230, %s231
    %p235 = pneg %p229
    %p236 = scmp.eq.s32.totalorder %s16, 1
    %p237 = por %p235, %p236
    %p238 = scmp.ne.s32.totalorder %s230, %s233
    %p239 = scmp.eq.s32.totalorder %s16, 0
    %p240 = por %p238, %p239
    %p241 = scmp.ne.s32.totalorder %s230, %s233
    %p242 = scmp.eq.s32.totalorder %s21, 1
    %p243 = por %p241, %p242
    %p244 = scmp.ne.s32.totalorder %s233, %s234
    %p245 = scmp.eq.s32.totalorder %s21, 0
    %p246 = por %p244, %p245
    %p247 = scmp.ne.s32.totalorder %s233, %s234
    %p248 = scmp.eq.s32.totalorder %s22, 1
    %p249 = por %p247, %p248
    %p251 = scmp.ne.s32.totalorder %s234, %s250
    %p252 = scmp.eq.s32.totalorder %s22, 0
    %p253 = por %p251, %p252
    %p254 = scmp.le.s32.totalorder 1, %s16
    %p255 = scmp.lt.s32.totalorder %s16, 3
    %p256 = pnand %p254, %p255
    %p257 = pneg %p256
    // Predicated region
    $region9: #{flow_model_forward.11} parent=5 // pred_check
      _
    $region10: #{flow_model_forward.11} parent=5 // pred_check_branch
      %259 = sbr.rel (%p256) target = $region12
    $region11: #{flow_model_forward.11} parent=5 // pred_region
      %s260 = ssub.s32 %s16, 1
      // Predicated region
      $region13: #{flow_model_forward.11} parent=11 // pred_check
        %p261 = pneg %p89
      $region14: #{flow_model_forward.11} parent=11 // pred_check_branch
        %263 = sbr.rel (%p261) target = $region16
      $region15: #{flow_model_forward.11} parent=11 // pred_region
        _
      $region16: #{flow_model_forward.11} parent=11 // pred_fallthru
        _
      // Predicated region
      $region17: #{flow_model_forward.11} parent=11 // pred_check
        %p264 = pneg %p110
      $region18: #{flow_model_forward.11} parent=11 // pred_check_branch
        %266 = sbr.rel (%p264) target = $region20
      $region19: #{flow_model_forward.11} parent=11 // pred_region
        _
      $region20: #{flow_model_forward.11} parent=11 // pred_fallthru
        _
      // Predicated region
      $region21: #{flow_model_forward.11} parent=11 // pred_check
        %p267 = pneg %p131
      $region22: #{flow_model_forward.11} parent=11 // pred_check_branch
        %269 = sbr.rel (%p267) target = $region24
      $region23: #{flow_model_forward.11} parent=11 // pred_region
        _
      $region24: #{flow_model_forward.11} parent=11 // pred_fallthru
        _
      // Predicated region
      $region25: #{flow_model_forward.11} parent=11 // pred_check
        %p270 = pneg %p152
      $region26: #{flow_model_forward.11} parent=11 // pred_check_branch
        %272 = sbr.rel (%p270) target = $region28
      $region27: #{flow_model_forward.11} parent=11 // pred_region
        _
      $region28: #{flow_model_forward.11} parent=11 // pred_fallthru
        _
      // Predicated region
      $region29: #{flow_model_forward.11} parent=11 // pred_check
        %p273 = pneg %p173
      $region30: #{flow_model_forward.11} parent=11 // pred_check_branch
        %275 = sbr.rel (%p273) target = $region32
      $region31: #{flow_model_forward.11} parent=11 // pred_region
        _
      $region32: #{flow_model_forward.11} parent=11 // pred_fallthru
        _
      // Predicated region
      $region33: #{flow_model_forward.11} parent=11 // pred_check
        %p276 = pneg %p194
      $region34: #{flow_model_forward.11} parent=11 // pred_check_branch
        %278 = sbr.rel (%p276) target = $region36
      $region35: #{flow_model_forward.11} parent=11 // pred_region
        _
      $region36: #{flow_model_forward.11} parent=11 // pred_fallthru
        _
    $region12: #{flow_model_forward.11} parent=5 // pred_fallthru
      _
    %p279 = scmp.lt.s32.totalorder %s16, 2
    // Predicated region
    $region37: #{flow_model_forward.11} parent=5 // pred_check
      %p280 = pneg %p279
    $region38: #{flow_model_forward.11} parent=5 // pred_check_branch
      %282 = sbr.rel (%p280) target = $region40
    $region39: #{flow_model_forward.11} parent=5 // pred_region
      // Predicated region
      $region41: #{flow_model_forward.11} parent=39 // pred_check
        %p283 = pneg %p36
      $region42: #{flow_model_forward.11} parent=39 // pred_check_branch
        %285 = sbr.rel (%p283) target = $region44
      $region43: #{flow_model_forward.11} parent=39 // pred_region
        %p286 = scmp.lt.s32.totalorder %s16, 1
        %s287 = scalar_select %p286, %s16, 1
        %s288 = smul.addr %s287, 4
        %s289 = scalar_lea.vmem %s0, %s288
      $region44: #{flow_model_forward.11} parent=39 // pred_fallthru
        _
      // Predicated region
      $region45: #{flow_model_forward.11} parent=39 // pred_check
        %p290 = pneg %p62
      $region46: #{flow_model_forward.11} parent=39 // pred_check_branch
        %292 = sbr.rel (%p290) target = $region48
      $region47: #{flow_model_forward.11} parent=39 // pred_region
        %p293 = scmp.lt.s32.totalorder %s16, 1
        %s294 = scalar_select %p293, %s16, 1
        %s295 = smul.addr %s294, 8
        %s296 = scalar_lea.vmem %s1, %s295
      $region48: #{flow_model_forward.11} parent=39 // pred_fallthru
        _
    $region40: #{flow_model_forward.11} parent=5 // pred_fallthru
      _
    %p297 = scmp.le.s32.totalorder 1, %s16
    %p298 = scmp.lt.s32.totalorder %s16, 3
    %p299 = pnand %p297, %p298
    %p300 = pneg %p299
    // Predicated region
    $region49: #{flow_model_forward.11} parent=5 // pred_check
      _
    $region50: #{flow_model_forward.11} parent=5 // pred_check_branch
      %302 = sbr.rel (%p299) target = $region52
    $region51: #{flow_model_forward.11} parent=5 // pred_region
      %s303 = ssub.s32 %s16, 1
      %p304 = scmp.lt.s32.totalorder %s21, 1
      %s305 = scalar_select %p304, %s21, 1
      %s306 = smul.addr %s305, 4
      %s307 = scalar_lea.vmem %s0, %s306
      %p308 = pneg %p42
      %p309 = pneg %p39
      %p310 = scmp.lt.s32.totalorder %s21, 1
      %s311 = scalar_select %p310, %s21, 1
      %s312 = smul.addr %s311, 8
      %s313 = scalar_lea.vmem %s1, %s312
      %p314 = pneg %p68
      %p315 = pneg %p65
      %p316 = pneg %p89
      %p317 = pneg %p86
      %p318 = pneg %p110
      %p319 = pneg %p107
      %p320 = pneg %p131
      %p321 = pneg %p128
      %p322 = pneg %p152
      %p323 = pneg %p149
      %p324 = pneg %p173
      %p325 = pneg %p170
      %p326 = pneg %p194
      %p327 = pneg %p191
      %p328 = pneg %p220
      %p329 = pneg %p217
      %p330 = scmp.lt.s32.totalorder %s21, 1
      %s331 = scalar_select %p330, %s21, 1
      %s332 = smul.addr %s331, 8
      %s333 = scalar_lea.vmem %s8, %s332
      %p334 = pneg %p246
      %p335 = pneg %p243
      %p336 = scmp.lt.s32.totalorder %s21, 1
      %s337 = scalar_select %p336, %s21, 1
      %s338 = scalar_lea.vmem %s9, %s337
      %p339 = scmp.lt.s32.totalorder %s21, 1
      %s340 = scalar_select %p339, %s21, 1
      %s341 = smul.addr %s340, 4
      %s342 = scalar_lea.vmem %s0, %s341
      %p343 = scmp.lt.s32.totalorder %s21, 1
      %s344 = scalar_select %p343, %s21, 1
      %s345 = smul.addr %s344, 8
      %s346 = scalar_lea.vmem %s1, %s345
      %p347 = scmp.lt.s32.totalorder %s21, 1
      %s348 = scalar_select %p347, %s21, 1
      %s349 = smul.addr %s348, 8
      %s350 = scalar_lea.vmem %s8, %s349
      %p351 = scmp.lt.s32.totalorder %s21, 1
      %s352 = scalar_select %p351, %s21, 1
      %s353 = scalar_lea.vmem %s9, %s352
      %v355 = vld [vmem:[%s342] sm:$0xf]
      %356 = vst [vmem:[#allocation2] sm:$0xff] 0.0
      %357 = vst [vmem:[#allocation2 + $0x8] sm:$0xff] 0.0
      %358 = vst [vmem:[#allocation2 + $0x10] sm:$0x3] 0.0
      %359 = vst [vmem:[#allocation2 + $0x18] sm:$0x3] 0.0
      %v360 = vld [vmem:[#allocation2] sm:$0xfc]
      %v361 = vld [vmem:[#allocation2 + $0x8] sm:$0xfc]
      %v362 = vld [vmem:[#allocation2 + $0x10] sm:$0x3]
      %v363 = vld [vmem:[#allocation2 + $0x18] sm:$0x3]
      %v364 = vld [vmem:[%s2] sm:$0xff]
      %v365 = vld [vmem:[%s2 + $0x8] sm:$0xff]
      %v366 = vld [vmem:[%s2 + $0x10] sm:$0xff]
      %v367 = vld [vmem:[%s2 + $0x18] sm:$0xff]
      %v368 = vld [vmem:[%s2 + $0x20] sm:$0xff]
      %v369 = vld [vmem:[%s2 + $0x28] sm:$0xff]
      %v370 = vld [vmem:[%s2 + $0x30] sm:$0xff]
      %v371 = vld [vmem:[%s2 + $0x38] sm:$0xff]
      %v380 = vunpack.c.l.b16 %v364
      %v381 = vunpack.c.h.b16 %v364
      %v382 = vunpack.c.l.b16 %v365
      %v383 = vunpack.c.h.b16 %v365
      %v384 = vunpack.c.l.b16 %v366
      %v385 = vunpack.c.h.b16 %v366
      %v386 = vunpack.c.l.b16 %v367
      %v387 = vunpack.c.h.b16 %v367
      %v388 = vunpack.c.l.b16 %v368
      %v389 = vunpack.c.h.b16 %v368
      %v390 = vunpack.c.l.b16 %v369
      %v391 = vunpack.c.h.b16 %v369
      %v392 = vunpack.c.l.b16 %v370
      %v393 = vunpack.c.h.b16 %v370
      %v394 = vunpack.c.l.b16 %v371
      %v395 = vunpack.c.h.b16 %v371
      %v396 = vpack.c.b16 %v382, %v380
      %v397 = vpack.c.b16 %v383, %v381
      %v398 = vpack.c.b16 %v386, %v384
      %v399 = vpack.c.b16 %v387, %v385
      %v400 = vpack.c.b16 %v390, %v388
      %v401 = vpack.c.b16 %v391, %v389
      %v402 = vpack.c.b16 %v394, %v392
      %v403 = vpack.c.b16 %v395, %v393
      %vm412 = vcmask 523264
      %v414 = vsel %vm412, %v355, 0
      %416 = vmatprep.subr.bf16.mxu0 %v397
      %417 = vmatpush1.bf16.msra.mxu0 %v396
      %418 = vmatprep.subr.bf16.mxu0 %v399
      %419 = vmatpush1.bf16.msra.mxu0 %v398
      %420 = vmatprep.subr.bf16.mxu0 %v401
      %421 = vmatpush1.bf16.msra.mxu0 %v400
      %422 = vmatprep.subr.bf16.mxu0 %v403
      %423 = vmatpush1.bf16.msra.mxu0 %v402
      %424 = vmatprep.subr.bf16.mxu0 0
      %425 = vmatpush1.bf16.msra.mxu0 0
      %426 = vmatprep.subr.bf16.mxu0 0
      %427 = vmatpush1.bf16.msra.mxu0 0
      %428 = vmatprep.subr.bf16.mxu0 0
      %429 = vmatpush1.bf16.msra.mxu0 0
      %430 = vmatprep.subr.bf16.mxu0 0
      %431 = vmatpush1.bf16.msra.mxu0 0
      %432 = vmatprep.subr.bf16.mxu0 0
      %433 = vmatpush1.bf16.msra.mxu0 0
      %434 = vmatprep.subr.bf16.mxu0 0
      %435 = vmatpush1.bf16.msra.mxu0 0
      %436 = vmatprep.subr.bf16.mxu0 0
      %437 = vmatpush1.bf16.msra.mxu0 0
      %438 = vmatprep.subr.bf16.mxu0 0
      %439 = vmatpush1.bf16.msra.mxu0 0
      %440 = vmatprep.subr.bf16.mxu0 0
      %441 = vmatpush1.bf16.msra.mxu0 0
      %442 = vmatprep.subr.bf16.mxu0 0
      %443 = vmatpush1.bf16.msra.mxu0 0
      %444 = vmatprep.subr.bf16.mxu0 0
      %445 = vmatpush1.bf16.msra.mxu0 0
      %446 = vmatprep.subr.bf16.mxu0 0
      %447 = vmatpush1.bf16.msra.mxu0 0
      %448 = vmatprep.mubr.bf16.mxu0 0
      %449 = vmatmul.mubr.bf16.gmra.mrb[0].mxu0 %v414
      %v450 = vpop.f32.mrb[0].mxu0
      %v451 = vadd.f32 0.0, %v450
      %v452 = vpop.f32.mrb[0].mxu0
      %v453 = vadd.f32 0.0, %v452
      %v454 = vpop.f32.mrb[0].mxu0
      %v455 = vpop.f32.mrb[0].mxu0
      %456 = vdwg.mxu0
      %v459 = vrot.slane %v451, 6
      %v460 = vrot.slane %v453, 6
      %v463 = vadd.f32 %v360, %v459
      %v464 = vadd.f32 %v361, %v460
      %v465 = vadd.f32 %v362, %v459
      %v466 = vadd.f32 %v363, %v460
      %467 = vst [vmem:[#allocation2] sm:$0xfc] %v463
      %468 = vst [vmem:[#allocation2 + $0x8] sm:$0xfc] %v464
      %469 = vst [vmem:[#allocation2 + $0x10] sm:$0x3] %v465
      %470 = vst [vmem:[#allocation2 + $0x18] sm:$0x3] %v466
      %v471 = vld [vmem:[#allocation2] sm:$0xfe]
      %v472 = vld [vmem:[#allocation2 + $0x8] sm:$0xfe]
      %v473 = vld [vmem:[#allocation2 + $0x10] sm:$0x1]
      %v474 = vld [vmem:[#allocation2 + $0x18] sm:$0x1]
      %s475 = scalar_lea.vmem %s2, 64
      %v476 = vld [vmem:[%s475] sm:$0xff]
      %v477 = vld [vmem:[%s475 + $0x8] sm:$0xff]
      %v478 = vld [vmem:[%s475 + $0x10] sm:$0xff]
      %v479 = vld [vmem:[%s475 + $0x18] sm:$0xff]
      %v480 = vld [vmem:[%s475 + $0x20] sm:$0xff]
      %v481 = vld [vmem:[%s475 + $0x28] sm:$0xff]
      %v482 = vld [vmem:[%s475 + $0x30] sm:$0xff]
      %v483 = vld [vmem:[%s475 + $0x38] sm:$0xff]
      %v492 = vunpack.c.l.b16 %v476
      %v493 = vunpack.c.h.b16 %v476
      %v494 = vunpack.c.l.b16 %v477
      %v495 = vunpack.c.h.b16 %v477
      %v496 = vunpack.c.l.b16 %v478
      %v497 = vunpack.c.h.b16 %v478
      %v498 = vunpack.c.l.b16 %v479
      %v499 = vunpack.c.h.b16 %v479
      %v500 = vunpack.c.l.b16 %v480
      %v501 = vunpack.c.h.b16 %v480
      %v502 = vunpack.c.l.b16 %v481
      %v503 = vunpack.c.h.b16 %v481
      %v504 = vunpack.c.l.b16 %v482
      %v505 = vunpack.c.h.b16 %v482
      %v506 = vunpack.c.l.b16 %v483
      %v507 = vunpack.c.h.b16 %v483
      %v508 = vpack.c.b16 %v494, %v492
      %v509 = vpack.c.b16 %v495, %v493
      %v510 = vpack.c.b16 %v498, %v496
      %v511 = vpack.c.b16 %v499, %v497
      %v512 = vpack.c.b16 %v502, %v500
      %v513 = vpack.c.b16 %v503, %v501
      %v514 = vpack.c.b16 %v506, %v504
      %v515 = vpack.c.b16 %v507, %v505
      %524 = vmatprep.subr.bf16.mxu0 %v509
      %525 = vmatpush1.bf16.msra.mxu0 %v508
      %526 = vmatprep.subr.bf16.mxu0 %v511
      %527 = vmatpush1.bf16.msra.mxu0 %v510
      %528 = vmatprep.subr.bf16.mxu0 %v513
      %529 = vmatpush1.bf16.msra.mxu0 %v512
      %530 = vmatprep.subr.bf16.mxu0 %v515
      %531 = vmatpush1.bf16.msra.mxu0 %v514
      %532 = vmatprep.subr.bf16.mxu0 0
      %533 = vmatpush1.bf16.msra.mxu0 0
      %534 = vmatprep.subr.bf16.mxu0 0
      %535 = vmatpush1.bf16.msra.mxu0 0
      %536 = vmatprep.subr.bf16.mxu0 0
      %537 = vmatpush1.bf16.msra.mxu0 0
      %538 = vmatprep.subr.bf16.mxu0 0
      %539 = vmatpush1.bf16.msra.mxu0 0
      %540 = vmatprep.subr.bf16.mxu0 0
      %541 = vmatpush1.bf16.msra.mxu0 0
      %542 = vmatprep.subr.bf16.mxu0 0
      %543 = vmatpush1.bf16.msra.mxu0 0
      %544 = vmatprep.subr.bf16.mxu0 0
      %545 = vmatpush1.bf16.msra.mxu0 0
      %546 = vmatprep.subr.bf16.mxu0 0
      %547 = vmatpush1.bf16.msra.mxu0 0
      %548 = vmatprep.subr.bf16.mxu0 0
      %549 = vmatpush1.bf16.msra.mxu0 0
      %550 = vmatprep.subr.bf16.mxu0 0
      %551 = vmatpush1.bf16.msra.mxu0 0
      %552 = vmatprep.subr.bf16.mxu0 0
      %553 = vmatpush1.bf16.msra.mxu0 0
      %554 = vmatprep.subr.bf16.mxu0 0
      %555 = vmatpush1.bf16.msra.mxu0 0
      %556 = vmatprep.mubr.bf16.mxu0 0
      %557 = vmatmul.mubr.bf16.gmra.mrb[0].mxu0 %v414
      %v558 = vpop.f32.mrb[0].mxu0
      %v559 = vadd.f32 0.0, %v558
      %v560 = vpop.f32.mrb[0].mxu0
      %v561 = vadd.f32 0.0, %v560
      %v562 = vpop.f32.mrb[0].mxu0
      %v563 = vpop.f32.mrb[0].mxu0
      %564 = vdwg.mxu0
      %v567 = vrot.slane %v559, 7
      %v568 = vrot.slane %v561, 7
      %v571 = vadd.f32 %v471, %v567
      %v572 = vadd.f32 %v472, %v568
      %v573 = vadd.f32 %v473, %v567
      %v574 = vadd.f32 %v474, %v568
      %575 = vst [vmem:[#allocation2] sm:$0xfe] %v571
      %576 = vst [vmem:[#allocation2 + $0x8] sm:$0xfe] %v572
      %577 = vst [vmem:[#allocation2 + $0x10] sm:$0x1] %v573
      %578 = vst [vmem:[#allocation2 + $0x18] sm:$0x1] %v574
      %v579 = vld [vmem:[#allocation2] sm:$0xff]
      %v580 = vld [vmem:[#allocation2 + $0x8] sm:$0xff]
      %s581 = scalar_lea.vmem %s2, 128
      %v582 = vld [vmem:[%s581] sm:$0xff]
      %v583 = vld [vmem:[%s581 + $0x8] sm:$0xff]
      %v584 = vld [vmem:[%s581 + $0x10] sm:$0xff]
      %v585 = vld [vmem:[%s581 + $0x18] sm:$0xff]
      %v586 = vld [vmem:[%s581 + $0x20] sm:$0xff]
      %v587 = vld [vmem:[%s581 + $0x28] sm:$0xff]
      %v588 = vld [vmem:[%s581 + $0x30] sm:$0xff]
      %v589 = vld [vmem:[%s581 + $0x38] sm:$0xff]
      %v598 = vunpack.c.l.b16 %v582
      %v599 = vunpack.c.h.b16 %v582
      %v600 = vunpack.c.l.b16 %v583
      %v601 = vunpack.c.h.b16 %v583
      %v602 = vunpack.c.l.b16 %v584
      %v603 = vunpack.c.h.b16 %v584
      %v604 = vunpack.c.l.b16 %v585
      %v605 = vunpack.c.h.b16 %v585
      %v606 = vunpack.c.l.b16 %v586
      %v607 = vunpack.c.h.b16 %v586
      %v608 = vunpack.c.l.b16 %v587
      %v609 = vunpack.c.h.b16 %v587
      %v610 = vunpack.c.l.b16 %v588
      %v611 = vunpack.c.h.b16 %v588
      %v612 = vunpack.c.l.b16 %v589
      %v613 = vunpack.c.h.b16 %v589
      %v614 = vpack.c.b16 %v600, %v598
      %v615 = vpack.c.b16 %v601, %v599
      %v616 = vpack.c.b16 %v604, %v602
      %v617 = vpack.c.b16 %v605, %v603
      %v618 = vpack.c.b16 %v608, %v606
      %v619 = vpack.c.b16 %v609, %v607
      %v620 = vpack.c.b16 %v612, %v610
      %v621 = vpack.c.b16 %v613, %v611
      %630 = vmatprep.subr.bf16.mxu0 %v615
      %631 = vmatpush1.bf16.msra.mxu0 %v614
      %632 = vmatprep.subr.bf16.mxu0 %v617
      %633 = vmatpush1.bf16.msra.mxu0 %v616
      %634 = vmatprep.subr.bf16.mxu0 %v619
      %635 = vmatpush1.bf16.msra.mxu0 %v618
      %636 = vmatprep.subr.bf16.mxu0 %v621
      %637 = vmatpush1.bf16.msra.mxu0 %v620
      %638 = vmatprep.subr.bf16.mxu0 0
      %639 = vmatpush1.bf16.msra.mxu0 0
      %640 = vmatprep.subr.bf16.mxu0 0
      %641 = vmatpush1.bf16.msra.mxu0 0
      %642 = vmatprep.subr.bf16.mxu0 0
      %643 = vmatpush1.bf16.msra.mxu0 0
      %644 = vmatprep.subr.bf16.mxu0 0
      %645 = vmatpush1.bf16.msra.mxu0 0
      %646 = vmatprep.subr.bf16.mxu0 0
      %647 = vmatpush1.bf16.msra.mxu0 0
      %648 = vmatprep.subr.bf16.mxu0 0
      %649 = vmatpush1.bf16.msra.mxu0 0
      %650 = vmatprep.subr.bf16.mxu0 0
      %651 = vmatpush1.bf16.msra.mxu0 0
      %652 = vmatprep.subr.bf16.mxu0 0
      %653 = vmatpush1.bf16.msra.mxu0 0
      %654 = vmatprep.subr.bf16.mxu0 0
      %655 = vmatpush1.bf16.msra.mxu0 0
      %656 = vmatprep.subr.bf16.mxu0 0
      %657 = vmatpush1.bf16.msra.mxu0 0
      %658 = vmatprep.subr.bf16.mxu0 0
      %659 = vmatpush1.bf16.msra.mxu0 0
      %660 = vmatprep.subr.bf16.mxu0 0
      %661 = vmatpush1.bf16.msra.mxu0 0
      %662 = vmatprep.mubr.bf16.mxu0 0
      %663 = vmatmul.mubr.bf16.gmra.mrb[0].mxu0 %v414
      %v664 = vpop.f32.mrb[0].mxu0
      %v665 = vadd.f32 0.0, %v664
      %v666 = vpop.f32.mrb[0].mxu0
      %v667 = vadd.f32 0.0, %v666
      %v668 = vpop.f32.mrb[0].mxu0
      %v669 = vpop.f32.mrb[0].mxu0
      %670 = vdwg.mxu0
      %v671 = vadd.f32 %v579, %v665
      %v672 = vadd.f32 %v580, %v667
      %673 = vst [vmem:[#allocation2] sm:$0xff] %v671
      %674 = vst [vmem:[#allocation2 + $0x8] sm:$0xff] %v672
      %v675 = vld [vmem:[#allocation2] sm:$0xfe]
      %v676 = vld [vmem:[#allocation2 + $0x8] sm:$0xfe]
      %v677 = vld [vmem:[#allocation2 + $0x10] sm:$0x1]
      %v678 = vld [vmem:[#allocation2 + $0x18] sm:$0x1]
      %v679 = vld [vmem:[%s3] sm:$0x3]
      %v681 = vlaneseq
      %v682 = vshrl.u32 %v681, 7
      %v683 = vsub.s32 0, %v682
      %v684 = vrot.slane %v679, %v683
      %v685 = vlaneseq
      %v686 = vshrl.u32 %v685, 7
      %v687 = vsub.s32 1, %v686
      %v688 = vrot.slane %v679, %v687
      %v691 = vadd.f32 %v675, %v684
      %v692 = vadd.f32 %v676, %v688
      %v693 = vadd.f32 %v677, %v684
      %v694 = vadd.f32 %v678, %v688
      %v695 = vmax.f32 %v691, 0.0
      %v696 = vmax.f32 %v692, 0.0
      %v697 = vmax.f32 %v693, 0.0
      %v698 = vmax.f32 %v694, 0.0
      %v699 = vpack.c.bf16 %v697, %v695
      %v700 = vpack.c.bf16 %v698, %v696
      %v701 = vld [vmem:[%s4] sm:$0xff]
      %v702 = vld [vmem:[%s4 + $0x8] sm:$0xff]
      %v703 = vld [vmem:[%s4 + $0x10] sm:$0xff]
      %v704 = vld [vmem:[%s4 + $0x18] sm:$0xff]
      %v705 = vld [vmem:[%s4 + $0x20] sm:$0xff]
      %v706 = vld [vmem:[%s4 + $0x28] sm:$0xff]
      %v707 = vld [vmem:[%s4 + $0x30] sm:$0xff]
      %v708 = vld [vmem:[%s4 + $0x38] sm:$0xff]
      %v709 = vld [vmem:[%s4 + $0x40] sm:$0xff]
      %v710 = vld [vmem:[%s4 + $0x48] sm:$0xff]
      %v711 = vld [vmem:[%s4 + $0x50] sm:$0xff]
      %v712 = vld [vmem:[%s4 + $0x58] sm:$0xff]
      %v713 = vld [vmem:[%s4 + $0x60] sm:$0xff]
      %v714 = vld [vmem:[%s4 + $0x68] sm:$0xff]
      %v715 = vld [vmem:[%s4 + $0x70] sm:$0xff]
      %v716 = vld [vmem:[%s4 + $0x78] sm:$0xff]
      %v717 = vld [vmem:[%s4 + $0x80] sm:$0xff]
      %v718 = vld [vmem:[%s4 + $0x88] sm:$0xff]
      %v719 = vld [vmem:[%s4 + $0x90] sm:$0xff]
      %v720 = vld [vmem:[%s4 + $0x98] sm:$0xff]
      %v721 = vld [vmem:[%s4 + $0xa0] sm:$0xff]
      %v722 = vld [vmem:[%s4 + $0xa8] sm:$0xff]
      %v723 = vld [vmem:[%s4 + $0xb0] sm:$0xff]
      %v724 = vld [vmem:[%s4 + $0xb8] sm:$0xff]
      %v725 = vld [vmem:[%s4 + $0xc0] sm:$0xff]
      %v726 = vld [vmem:[%s4 + $0xc8] sm:$0xff]
      %v727 = vld [vmem:[%s4 + $0xd0] sm:$0xff]
      %v728 = vld [vmem:[%s4 + $0xd8] sm:$0xff]
      %v729 = vld [vmem:[%s4 + $0xe0] sm:$0xff]
      %v730 = vld [vmem:[%s4 + $0xe8] sm:$0xff]
      %v731 = vld [vmem:[%s4 + $0xf0] sm:$0xff]
      %v732 = vld [vmem:[%s4 + $0xf8] sm:$0xff]
      %v733 = vld [vmem:[%s5] sm:$0x3]
      %v735 = vlaneseq
      %v736 = vshrl.u32 %v735, 7
      %v737 = vsub.s32 0, %v736
      %v738 = vrot.slane %v733, %v737
      %v739 = vlaneseq
      %v740 = vshrl.u32 %v739, 7
      %v741 = vsub.s32 1, %v740
      %v742 = vrot.slane %v733, %v741
      %v746 = vshrl.u32 %v699, 16
      %v748 = vshll.u32 %v699, 16
      %v750 = vrot.slane %v748, 1
      %v751 = vor.u32 %v746, %v750
      %v753 = vshrl.u32 %v700, 16
      %v755 = vshll.u32 %v700, 16
      %v757 = vrot.slane %v755, 1
      %v758 = vor.u32 %v753, %v757
      %v793 = vunpack.c.l.b16 %v701
      %v794 = vunpack.c.h.b16 %v701
      %v795 = vunpack.c.l.b16 %v702
      %v796 = vunpack.c.h.b16 %v702
      %v797 = vunpack.c.l.b16 %v703
      %v798 = vunpack.c.h.b16 %v703
      %v799 = vunpack.c.l.b16 %v704
      %v800 = vunpack.c.h.b16 %v704
      %v801 = vunpack.c.l.b16 %v705
      %v802 = vunpack.c.h.b16 %v705
      %v803 = vunpack.c.l.b16 %v706
      %v804 = vunpack.c.h.b16 %v706
      %v805 = vunpack.c.l.b16 %v707
      %v806 = vunpack.c.h.b16 %v707
      %v807 = vunpack.c.l.b16 %v708
      %v808 = vunpack.c.h.b16 %v708
      %v809 = vunpack.c.l.b16 %v709
      %v810 = vunpack.c.h.b16 %v709
      %v811 = vunpack.c.l.b16 %v710
      %v812 = vunpack.c.h.b16 %v710
      %v813 = vunpack.c.l.b16 %v711
      %v814 = vunpack.c.h.b16 %v711
      %v815 = vunpack.c.l.b16 %v712
      %v816 = vunpack.c.h.b16 %v712
      %v817 = vunpack.c.l.b16 %v713
      %v818 = vunpack.c.h.b16 %v713
      %v819 = vunpack.c.l.b16 %v714
      %v820 = vunpack.c.h.b16 %v714
      %v821 = vunpack.c.l.b16 %v715
      %v822 = vunpack.c.h.b16 %v715
      %v823 = vunpack.c.l.b16 %v716
      %v824 = vunpack.c.h.b16 %v716
      %v825 = vunpack.c.l.b16 %v717
      %v826 = vunpack.c.h.b16 %v717
      %v827 = vunpack.c.l.b16 %v718
      %v828 = vunpack.c.h.b16 %v718
      %v829 = vunpack.c.l.b16 %v719
      %v830 = vunpack.c.h.b16 %v719
      %v831 = vunpack.c.l.b16 %v720
      %v832 = vunpack.c.h.b16 %v720
      %v833 = vunpack.c.l.b16 %v721
      %v834 = vunpack.c.h.b16 %v721
      %v835 = vunpack.c.l.b16 %v722
      %v836 = vunpack.c.h.b16 %v722
      %v837 = vunpack.c.l.b16 %v723
      %v838 = vunpack.c.h.b16 %v723
      %v839 = vunpack.c.l.b16 %v724
      %v840 = vunpack.c.h.b16 %v724
      %v841 = vunpack.c.l.b16 %v725
      %v842 = vunpack.c.h.b16 %v725
      %v843 = vunpack.c.l.b16 %v726
      %v844 = vunpack.c.h.b16 %v726
      %v845 = vunpack.c.l.b16 %v727
      %v846 = vunpack.c.h.b16 %v727
      %v847 = vunpack.c.l.b16 %v728
      %v848 = vunpack.c.h.b16 %v728
      %v849 = vunpack.c.l.b16 %v729
      %v850 = vunpack.c.h.b16 %v729
      %v851 = vunpack.c.l.b16 %v730
      %v852 = vunpack.c.h.b16 %v730
      %v853 = vunpack.c.l.b16 %v731
      %v854 = vunpack.c.h.b16 %v731
      %v855 = vunpack.c.l.b16 %v732
      %v856 = vunpack.c.h.b16 %v732
      %v857 = vpack.c.b16 %v795, %v793
      %v858 = vpack.c.b16 %v796, %v794
      %v859 = vpack.c.b16 %v799, %v797
      %v860 = vpack.c.b16 %v800, %v798
      %v861 = vpack.c.b16 %v803, %v801
      %v862 = vpack.c.b16 %v804, %v802
      %v863 = vpack.c.b16 %v807, %v805
      %v864 = vpack.c.b16 %v808, %v806
      %v865 = vpack.c.b16 %v811, %v809
      %v866 = vpack.c.b16 %v812, %v810
      %v867 = vpack.c.b16 %v815, %v813
      %v868 = vpack.c.b16 %v816, %v814
      %v869 = vpack.c.b16 %v819, %v817
      %v870 = vpack.c.b16 %v820, %v818
      %v871 = vpack.c.b16 %v823, %v821
      %v872 = vpack.c.b16 %v824, %v822
      %v873 = vpack.c.b16 %v827, %v825
      %v874 = vpack.c.b16 %v828, %v826
      %v875 = vpack.c.b16 %v831, %v829
      %v876 = vpack.c.b16 %v832, %v830
      %v877 = vpack.c.b16 %v835, %v833
      %v878 = vpack.c.b16 %v836, %v834
      %v879 = vpack.c.b16 %v839, %v837
      %v880 = vpack.c.b16 %v840, %v838
      %v881 = vpack.c.b16 %v843, %v841
      %v882 = vpack.c.b16 %v844, %v842
      %v883 = vpack.c.b16 %v847, %v845
      %v884 = vpack.c.b16 %v848, %v846
      %v885 = vpack.c.b16 %v851, %v849
      %v886 = vpack.c.b16 %v852, %v850
      %v887 = vpack.c.b16 %v855, %v853
      %v888 = vpack.c.b16 %v856, %v854
      %921 = vmatprep.subr.bf16.mxu0 %v858
      %922 = vmatpush1.bf16.msra.mxu0 %v857
      %923 = vmatprep.subr.bf16.mxu0 %v860
      %924 = vmatpush1.bf16.msra.mxu0 %v859
      %925 = vmatprep.subr.bf16.mxu0 %v862
      %926 = vmatpush1.bf16.msra.mxu0 %v861
      %927 = vmatprep.subr.bf16.mxu0 %v864
      %928 = vmatpush1.bf16.msra.mxu0 %v863
      %929 = vmatprep.subr.bf16.mxu0 %v866
      %930 = vmatpush1.bf16.msra.mxu0 %v865
      %931 = vmatprep.subr.bf16.mxu0 %v868
      %932 = vmatpush1.bf16.msra.mxu0 %v867
      %933 = vmatprep.subr.bf16.mxu0 %v870
      %934 = vmatpush1.bf16.msra.mxu0 %v869
      %935 = vmatprep.subr.bf16.mxu0 %v872
      %936 = vmatpush1.bf16.msra.mxu0 %v871
      %937 = vmatprep.subr.bf16.mxu0 %v874
      %938 = vmatpush1.bf16.msra.mxu0 %v873
      %939 = vmatprep.subr.bf16.mxu0 %v876
      %940 = vmatpush1.bf16.msra.mxu0 %v875
      %941 = vmatprep.subr.bf16.mxu0 %v878
      %942 = vmatpush1.bf16.msra.mxu0 %v877
      %943 = vmatprep.subr.bf16.mxu0 %v880
      %944 = vmatpush1.bf16.msra.mxu0 %v879
      %945 = vmatprep.subr.bf16.mxu0 %v882
      %946 = vmatpush1.bf16.msra.mxu0 %v881
      %947 = vmatprep.subr.bf16.mxu0 %v884
      %948 = vmatpush1.bf16.msra.mxu0 %v883
      %949 = vmatprep.subr.bf16.mxu0 %v886
      %950 = vmatpush1.bf16.msra.mxu0 %v885
      %951 = vmatprep.subr.bf16.mxu0 %v888
      %952 = vmatpush1.bf16.msra.mxu0 %v887
      %953 = vmatprep.mubr.bf16.mxu0 %v758
      %954 = vmatmul.mubr.bf16.gmra.mrb[0].mxu0 %v751
      %v955 = vpop.f32.mrb[0].mxu0
      %v956 = vadd.f32 %v738, %v955
      %v957 = vpop.f32.mrb[0].mxu0
      %v958 = vadd.f32 %v742, %v957
      %v959 = vpop.f32.mrb[0].mxu0
      %v960 = vpop.f32.mrb[0].mxu0
      %961 = vdwg.mxu0
      %v962 = vmax.f32 %v956, 0.0
      %v963 = vmax.f32 %v958, 0.0
      %v964 = vpack.c.bf16 %v962, %v962
      %v965 = vpack.c.bf16 %v963, %v963
      %966 = vst [vmem:[#allocation3] sm:$0xff] 0.0
      %967 = vst [vmem:[#allocation3 + $0x8] sm:$0x3] 0.0
      %v968 = vld [vmem:[#allocation3 + $0x2] sm:$0xff]
      %v969 = vld [vmem:[%s6] sm:$0xf]
      %v970 = vld [vmem:[%s6 + $0x4] sm:$0xf]
      %v971 = vld [vmem:[%s6 + $0x8] sm:$0xf]
      %v972 = vld [vmem:[%s6 + $0xc] sm:$0xf]
      %v973 = vld [vmem:[%s6 + $0x10] sm:$0xf]
      %v974 = vld [vmem:[%s6 + $0x14] sm:$0xf]
      %v975 = vld [vmem:[%s6 + $0x18] sm:$0xf]
      %v976 = vld [vmem:[%s6 + $0x1c] sm:$0xf]
      %v977 = vld [vmem:[%s6 + $0x20] sm:$0xf]
      %v978 = vld [vmem:[%s6 + $0x24] sm:$0xf]
      %v979 = vld [vmem:[%s6 + $0x28] sm:$0xf]
      %v980 = vld [vmem:[%s6 + $0x2c] sm:$0xf]
      %v981 = vld [vmem:[%s6 + $0x30] sm:$0xf]
      %v982 = vld [vmem:[%s6 + $0x34] sm:$0xf]
      %v983 = vld [vmem:[%s6 + $0x38] sm:$0xf]
      %v984 = vld [vmem:[%s6 + $0x3c] sm:$0xf]
      %v985 = vld [vmem:[%s6 + $0x40] sm:$0xf]
      %v986 = vld [vmem:[%s6 + $0x44] sm:$0xf]
      %v987 = vld [vmem:[%s6 + $0x48] sm:$0xf]
      %v988 = vld [vmem:[%s6 + $0x4c] sm:$0xf]
      %v989 = vld [vmem:[%s6 + $0x50] sm:$0xf]
      %v990 = vld [vmem:[%s6 + $0x54] sm:$0xf]
      %v991 = vld [vmem:[%s6 + $0x58] sm:$0xf]
      %v992 = vld [vmem:[%s6 + $0x5c] sm:$0xf]
      %v993 = vld [vmem:[%s6 + $0x60] sm:$0xf]
      %v994 = vld [vmem:[%s6 + $0x64] sm:$0xf]
      %v995 = vld [vmem:[%s6 + $0x68] sm:$0xf]
      %v996 = vld [vmem:[%s6 + $0x6c] sm:$0xf]
      %v997 = vld [vmem:[%s6 + $0x70] sm:$0xf]
      %v998 = vld [vmem:[%s6 + $0x74] sm:$0xf]
      %v999 = vld [vmem:[%s6 + $0x78] sm:$0xf]
      %v1000 = vld [vmem:[%s6 + $0x7c] sm:$0xf]
      %v1033 = vunpack.c.l.b16 %v969
      %v1034 = vunpack.c.l.b16 %v970
      %v1035 = vunpack.c.l.b16 %v971
      %v1036 = vunpack.c.l.b16 %v972
      %v1037 = vunpack.c.l.b16 %v973
      %v1038 = vunpack.c.l.b16 %v974
      %v1039 = vunpack.c.l.b16 %v975
      %v1040 = vunpack.c.l.b16 %v976
      %v1041 = vunpack.c.l.b16 %v977
      %v1042 = vunpack.c.l.b16 %v978
      %v1043 = vunpack.c.l.b16 %v979
      %v1044 = vunpack.c.l.b16 %v980
      %v1045 = vunpack.c.l.b16 %v981
      %v1046 = vunpack.c.l.b16 %v982
      %v1047 = vunpack.c.l.b16 %v983
      %v1048 = vunpack.c.l.b16 %v984
      %v1049 = vunpack.c.l.b16 %v985
      %v1050 = vunpack.c.l.b16 %v986
      %v1051 = vunpack.c.l.b16 %v987
      %v1052 = vunpack.c.l.b16 %v988
      %v1053 = vunpack.c.l.b16 %v989
      %v1054 = vunpack.c.l.b16 %v990
      %v1055 = vunpack.c.l.b16 %v991
      %v1056 = vunpack.c.l.b16 %v992
      %v1057 = vunpack.c.l.b16 %v993
      %v1058 = vunpack.c.l.b16 %v994
      %v1059 = vunpack.c.l.b16 %v995
      %v1060 = vunpack.c.l.b16 %v996
      %v1061 = vunpack.c.l.b16 %v997
      %v1062 = vunpack.c.l.b16 %v998
      %v1063 = vunpack.c.l.b16 %v999
      %v1064 = vunpack.c.l.b16 %v1000
      %v1065 = vpack.c.b16 %v1034, %v1033
      %v1066 = vpack.c.b16 %v1036, %v1035
      %v1067 = vpack.c.b16 %v1038, %v1037
      %v1068 = vpack.c.b16 %v1040, %v1039
      %v1069 = vpack.c.b16 %v1042, %v1041
      %v1070 = vpack.c.b16 %v1044, %v1043
      %v1071 = vpack.c.b16 %v1046, %v1045
      %v1072 = vpack.c.b16 %v1048, %v1047
      %v1073 = vpack.c.b16 %v1050, %v1049
      %v1074 = vpack.c.b16 %v1052, %v1051
      %v1075 = vpack.c.b16 %v1054, %v1053
      %v1076 = vpack.c.b16 %v1056, %v1055
      %v1077 = vpack.c.b16 %v1058, %v1057
      %v1078 = vpack.c.b16 %v1060, %v1059
      %v1079 = vpack.c.b16 %v1062, %v1061
      %v1080 = vpack.c.b16 %v1064, %v1063
      %1097 = vmatprep.subr.bf16.mxu0 0
      %1098 = vmatpush1.bf16.msra.mxu0 %v1065
      %1099 = vmatprep.subr.bf16.mxu0 0
      %1100 = vmatpush1.bf16.msra.mxu0 %v1066
      %1101 = vmatprep.subr.bf16.mxu0 0
      %1102 = vmatpush1.bf16.msra.mxu0 %v1067
      %1103 = vmatprep.subr.bf16.mxu0 0
      %1104 = vmatpush1.bf16.msra.mxu0 %v1068
      %1105 = vmatprep.subr.bf16.mxu0 0
      %1106 = vmatpush1.bf16.msra.mxu0 %v1069
      %1107 = vmatprep.subr.bf16.mxu0 0
      %1108 = vmatpush1.bf16.msra.mxu0 %v1070
      %1109 = vmatprep.subr.bf16.mxu0 0
      %1110 = vmatpush1.bf16.msra.mxu0 %v1071
      %1111 = vmatprep.subr.bf16.mxu0 0
      %1112 = vmatpush1.bf16.msra.mxu0 %v1072
      %1113 = vmatprep.subr.bf16.mxu0 0
      %1114 = vmatpush1.bf16.msra.mxu0 %v1073
      %1115 = vmatprep.subr.bf16.mxu0 0
      %1116 = vmatpush1.bf16.msra.mxu0 %v1074
      %1117 = vmatprep.subr.bf16.mxu0 0
      %1118 = vmatpush1.bf16.msra.mxu0 %v1075
      %1119 = vmatprep.subr.bf16.mxu0 0
      %1120 = vmatpush1.bf16.msra.mxu0 %v1076
      %1121 = vmatprep.subr.bf16.mxu0 0
      %1122 = vmatpush1.bf16.msra.mxu0 %v1077
      %1123 = vmatprep.subr.bf16.mxu0 0
      %1124 = vmatpush1.bf16.msra.mxu0 %v1078
      %1125 = vmatprep.subr.bf16.mxu0 0
      %1126 = vmatpush1.bf16.msra.mxu0 %v1079
      %1127 = vmatprep.subr.bf16.mxu0 0
      %1128 = vmatpush1.bf16.msra.mxu0 %v1080
      %1129 = vmatprep.mubr.bf16.mxu0 %v965
      %1130 = vmatmul.mubr.bf16.gmra.mrb[0].mxu0 %v964
      %v1131 = vpop.f32.mrb[0].mxu0
      %v1132 = vadd.f32 0.0, %v1131
      %v1133 = vpop.f32.mrb[0].mxu0
      %v1134 = vpop.f32.mrb[0].mxu0
      %v1135 = vpop.f32.mrb[0].mxu0
      %1136 = vdwg.mxu0
      %v1137 = vadd.f32 %v968, %v1132
      %1138 = vst [vmem:[#allocation3 + $0x2] sm:$0xff] %v1137
      %v1139 = vld [vmem:[#allocation3 + $0x1] sm:$0xff]
      %s1140 = scalar_lea.vmem %s6, 128
      %v1141 = vld [vmem:[%s1140] sm:$0xf]
      %v1142 = vld [vmem:[%s1140 + $0x4] sm:$0xf]
      %v1143 = vld [vmem:[%s1140 + $0x8] sm:$0xf]
      %v1144 = vld [vmem:[%s1140 + $0xc] sm:$0xf]
      %v1145 = vld [vmem:[%s1140 + $0x10] sm:$0xf]
      %v1146 = vld [vmem:[%s1140 + $0x14] sm:$0xf]
      %v1147 = vld [vmem:[%s1140 + $0x18] sm:$0xf]
      %v1148 = vld [vmem:[%s1140 + $0x1c] sm:$0xf]
      %v1149 = vld [vmem:[%s1140 + $0x20] sm:$0xf]
      %v1150 = vld [vmem:[%s1140 + $0x24] sm:$0xf]
      %v1151 = vld [vmem:[%s1140 + $0x28] sm:$0xf]
      %v1152 = vld [vmem:[%s1140 + $0x2c] sm:$0xf]
      %v1153 = vld [vmem:[%s1140 + $0x30] sm:$0xf]
      %v1154 = vld [vmem:[%s1140 + $0x34] sm:$0xf]
      %v1155 = vld [vmem:[%s1140 + $0x38] sm:$0xf]
      %v1156 = vld [vmem:[%s1140 + $0x3c] sm:$0xf]
      %v1157 = vld [vmem:[%s1140 + $0x40] sm:$0xf]
      %v1158 = vld [vmem:[%s1140 + $0x44] sm:$0xf]
      %v1159 = vld [vmem:[%s1140 + $0x48] sm:$0xf]
      %v1160 = vld [vmem:[%s1140 + $0x4c] sm:$0xf]
      %v1161 = vld [vmem:[%s1140 + $0x50] sm:$0xf]
      %v1162 = vld [vmem:[%s1140 + $0x54] sm:$0xf]
      %v1163 = vld [vmem:[%s1140 + $0x58] sm:$0xf]
      %v1164 = vld [vmem:[%s1140 + $0x5c] sm:$0xf]
      %v1165 = vld [vmem:[%s1140 + $0x60] sm:$0xf]
      %v1166 = vld [vmem:[%s1140 + $0x64] sm:$0xf]
      %v1167 = vld [vmem:[%s1140 + $0x68] sm:$0xf]
      %v1168 = vld [vmem:[%s1140 + $0x6c] sm:$0xf]
      %v1169 = vld [vmem:[%s1140 + $0x70] sm:$0xf]
      %v1170 = vld [vmem:[%s1140 + $0x74] sm:$0xf]
      %v1171 = vld [vmem:[%s1140 + $0x78] sm:$0xf]
      %v1172 = vld [vmem:[%s1140 + $0x7c] sm:$0xf]
      %v1205 = vunpack.c.l.b16 %v1141
      %v1206 = vunpack.c.l.b16 %v1142
      %v1207 = vunpack.c.l.b16 %v1143
      %v1208 = vunpack.c.l.b16 %v1144
      %v1209 = vunpack.c.l.b16 %v1145
      %v1210 = vunpack.c.l.b16 %v1146
      %v1211 = vunpack.c.l.b16 %v1147
      %v1212 = vunpack.c.l.b16 %v1148
      %v1213 = vunpack.c.l.b16 %v1149
      %v1214 = vunpack.c.l.b16 %v1150
      %v1215 = vunpack.c.l.b16 %v1151
      %v1216 = vunpack.c.l.b16 %v1152
      %v1217 = vunpack.c.l.b16 %v1153
      %v1218 = vunpack.c.l.b16 %v1154
      %v1219 = vunpack.c.l.b16 %v1155
      %v1220 = vunpack.c.l.b16 %v1156
      %v1221 = vunpack.c.l.b16 %v1157
      %v1222 = vunpack.c.l.b16 %v1158
      %v1223 = vunpack.c.l.b16 %v1159
      %v1224 = vunpack.c.l.b16 %v1160
      %v1225 = vunpack.c.l.b16 %v1161
      %v1226 = vunpack.c.l.b16 %v1162
      %v1227 = vunpack.c.l.b16 %v1163
      %v1228 = vunpack.c.l.b16 %v1164
      %v1229 = vunpack.c.l.b16 %v1165
      %v1230 = vunpack.c.l.b16 %v1166
      %v1231 = vunpack.c.l.b16 %v1167
      %v1232 = vunpack.c.l.b16 %v1168
      %v1233 = vunpack.c.l.b16 %v1169
      %v1234 = vunpack.c.l.b16 %v1170
      %v1235 = vunpack.c.l.b16 %v1171
      %v1236 = vunpack.c.l.b16 %v1172
      %v1237 = vpack.c.b16 %v1206, %v1205
      %v1238 = vpack.c.b16 %v1208, %v1207
      %v1239 = vpack.c.b16 %v1210, %v1209
      %v1240 = vpack.c.b16 %v1212, %v1211
      %v1241 = vpack.c.b16 %v1214, %v1213
      %v1242 = vpack.c.b16 %v1216, %v1215
      %v1243 = vpack.c.b16 %v1218, %v1217
      %v1244 = vpack.c.b16 %v1220, %v1219
      %v1245 = vpack.c.b16 %v1222, %v1221
      %v1246 = vpack.c.b16 %v1224, %v1223
      %v1247 = vpack.c.b16 %v1226, %v1225
      %v1248 = vpack.c.b16 %v1228, %v1227
      %v1249 = vpack.c.b16 %v1230, %v1229
      %v1250 = vpack.c.b16 %v1232, %v1231
      %v1251 = vpack.c.b16 %v1234, %v1233
      %v1252 = vpack.c.b16 %v1236, %v1235
      %1269 = vmatprep.subr.bf16.mxu0 0
      %1270 = vmatpush1.bf16.msra.mxu0 %v1237
      %1271 = vmatprep.subr.bf16.mxu0 0
      %1272 = vmatpush1.bf16.msra.mxu0 %v1238
      %1273 = vmatprep.subr.bf16.mxu0 0
      %1274 = vmatpush1.bf16.msra.mxu0 %v1239
      %1275 = vmatprep.subr.bf16.mxu0 0
      %1276 = vmatpush1.bf16.msra.mxu0 %v1240
      %1277 = vmatprep.subr.bf16.mxu0 0
      %1278 = vmatpush1.bf16.msra.mxu0 %v1241
      %1279 = vmatprep.subr.bf16.mxu0 0
      %1280 = vmatpush1.bf16.msra.mxu0 %v1242
      %1281 = vmatprep.subr.bf16.mxu0 0
      %1282 = vmatpush1.bf16.msra.mxu0 %v1243
      %1283 = vmatprep.subr.bf16.mxu0 0
      %1284 = vmatpush1.bf16.msra.mxu0 %v1244
      %1285 = vmatprep.subr.bf16.mxu0 0
      %1286 = vmatpush1.bf16.msra.mxu0 %v1245
      %1287 = vmatprep.subr.bf16.mxu0 0
      %1288 = vmatpush1.bf16.msra.mxu0 %v1246
      %1289 = vmatprep.subr.bf16.mxu0 0
      %1290 = vmatpush1.bf16.msra.mxu0 %v1247
      %1291 = vmatprep.subr.bf16.mxu0 0
      %1292 = vmatpush1.bf16.msra.mxu0 %v1248
      %1293 = vmatprep.subr.bf16.mxu0 0
      %1294 = vmatpush1.bf16.msra.mxu0 %v1249
      %1295 = vmatprep.subr.bf16.mxu0 0
      %1296 = vmatpush1.bf16.msra.mxu0 %v1250
      %1297 = vmatprep.subr.bf16.mxu0 0
      %1298 = vmatpush1.bf16.msra.mxu0 %v1251
      %1299 = vmatprep.subr.bf16.mxu0 0
      %1300 = vmatpush1.bf16.msra.mxu0 %v1252
      %1301 = vmatprep.mubr.bf16.mxu0 %v965
      %1302 = vmatmul.mubr.bf16.gmra.mrb[0].mxu0 %v964
      %v1303 = vpop.f32.mrb[0].mxu0
      %v1304 = vadd.f32 0.0, %v1303
      %v1305 = vpop.f32.mrb[0].mxu0
      %v1306 = vpop.f32.mrb[0].mxu0
      %v1307 = vpop.f32.mrb[0].mxu0
      %1308 = vdwg.mxu0
      %v1309 = vadd.f32 %v1139, %v1304
      %1310 = vst [vmem:[#allocation3 + $0x1] sm:$0xff] %v1309
      %v1311 = vld [vmem:[#allocation3] sm:$0xff]
      %s1312 = scalar_lea.vmem %s6, 256
      %v1313 = vld [vmem:[%s1312] sm:$0xf]
      %v1314 = vld [vmem:[%s1312 + $0x4] sm:$0xf]
      %v1315 = vld [vmem:[%s1312 + $0x8] sm:$0xf]
      %v1316 = vld [vmem:[%s1312 + $0xc] sm:$0xf]
      %v1317 = vld [vmem:[%s1312 + $0x10] sm:$0xf]
      %v1318 = vld [vmem:[%s1312 + $0x14] sm:$0xf]
      %v1319 = vld [vmem:[%s1312 + $0x18] sm:$0xf]
      %v1320 = vld [vmem:[%s1312 + $0x1c] sm:$0xf]
      %v1321 = vld [vmem:[%s1312 + $0x20] sm:$0xf]
      %v1322 = vld [vmem:[%s1312 + $0x24] sm:$0xf]
      %v1323 = vld [vmem:[%s1312 + $0x28] sm:$0xf]
      %v1324 = vld [vmem:[%s1312 + $0x2c] sm:$0xf]
      %v1325 = vld [vmem:[%s1312 + $0x30] sm:$0xf]
      %v1326 = vld [vmem:[%s1312 + $0x34] sm:$0xf]
      %v1327 = vld [vmem:[%s1312 + $0x38] sm:$0xf]
      %v1328 = vld [vmem:[%s1312 + $0x3c] sm:$0xf]
      %v1329 = vld [vmem:[%s1312 + $0x40] sm:$0xf]
      %v1330 = vld [vmem:[%s1312 + $0x44] sm:$0xf]
      %v1331 = vld [vmem:[%s1312 + $0x48] sm:$0xf]
      %v1332 = vld [vmem:[%s1312 + $0x4c] sm:$0xf]
      %v1333 = vld [vmem:[%s1312 + $0x50] sm:$0xf]
      %v1334 = vld [vmem:[%s1312 + $0x54] sm:$0xf]
      %v1335 = vld [vmem:[%s1312 + $0x58] sm:$0xf]
      %v1336 = vld [vmem:[%s1312 + $0x5c] sm:$0xf]
      %v1337 = vld [vmem:[%s1312 + $0x60] sm:$0xf]
      %v1338 = vld [vmem:[%s1312 + $0x64] sm:$0xf]
      %v1339 = vld [vmem:[%s1312 + $0x68] sm:$0xf]
      %v1340 = vld [vmem:[%s1312 + $0x6c] sm:$0xf]
      %v1341 = vld [vmem:[%s1312 + $0x70] sm:$0xf]
      %v1342 = vld [vmem:[%s1312 + $0x74] sm:$0xf]
      %v1343 = vld [vmem:[%s1312 + $0x78] sm:$0xf]
      %v1344 = vld [vmem:[%s1312 + $0x7c] sm:$0xf]
      %v1377 = vunpack.c.l.b16 %v1313
      %v1378 = vunpack.c.l.b16 %v1314
      %v1379 = vunpack.c.l.b16 %v1315
      %v1380 = vunpack.c.l.b16 %v1316
      %v1381 = vunpack.c.l.b16 %v1317
      %v1382 = vunpack.c.l.b16 %v1318
      %v1383 = vunpack.c.l.b16 %v1319
      %v1384 = vunpack.c.l.b16 %v1320
      %v1385 = vunpack.c.l.b16 %v1321
      %v1386 = vunpack.c.l.b16 %v1322
      %v1387 = vunpack.c.l.b16 %v1323
      %v1388 = vunpack.c.l.b16 %v1324
      %v1389 = vunpack.c.l.b16 %v1325
      %v1390 = vunpack.c.l.b16 %v1326
      %v1391 = vunpack.c.l.b16 %v1327
      %v1392 = vunpack.c.l.b16 %v1328
      %v1393 = vunpack.c.l.b16 %v1329
      %v1394 = vunpack.c.l.b16 %v1330
      %v1395 = vunpack.c.l.b16 %v1331
      %v1396 = vunpack.c.l.b16 %v1332
      %v1397 = vunpack.c.l.b16 %v1333
      %v1398 = vunpack.c.l.b16 %v1334
      %v1399 = vunpack.c.l.b16 %v1335
      %v1400 = vunpack.c.l.b16 %v1336
      %v1401 = vunpack.c.l.b16 %v1337
      %v1402 = vunpack.c.l.b16 %v1338
      %v1403 = vunpack.c.l.b16 %v1339
      %v1404 = vunpack.c.l.b16 %v1340
      %v1405 = vunpack.c.l.b16 %v1341
      %v1406 = vunpack.c.l.b16 %v1342
      %v1407 = vunpack.c.l.b16 %v1343
      %v1408 = vunpack.c.l.b16 %v1344
      %v1409 = vpack.c.b16 %v1378, %v1377
      %v1410 = vpack.c.b16 %v1380, %v1379
      %v1411 = vpack.c.b16 %v1382, %v1381
      %v1412 = vpack.c.b16 %v1384, %v1383
      %v1413 = vpack.c.b16 %v1386, %v1385
      %v1414 = vpack.c.b16 %v1388, %v1387
      %v1415 = vpack.c.b16 %v1390, %v1389
      %v1416 = vpack.c.b16 %v1392, %v1391
      %v1417 = vpack.c.b16 %v1394, %v1393
      %v1418 = vpack.c.b16 %v1396, %v1395
      %v1419 = vpack.c.b16 %v1398, %v1397
      %v1420 = vpack.c.b16 %v1400, %v1399
      %v1421 = vpack.c.b16 %v1402, %v1401
      %v1422 = vpack.c.b16 %v1404, %v1403
      %v1423 = vpack.c.b16 %v1406, %v1405
      %v1424 = vpack.c.b16 %v1408, %v1407
      %1441 = vmatprep.subr.bf16.mxu0 0
      %1442 = vmatpush1.bf16.msra.mxu0 %v1409
      %1443 = vmatprep.subr.bf16.mxu0 0
      %1444 = vmatpush1.bf16.msra.mxu0 %v1410
      %1445 = vmatprep.subr.bf16.mxu0 0
      %1446 = vmatpush1.bf16.msra.mxu0 %v1411
      %1447 = vmatprep.subr.bf16.mxu0 0
      %1448 = vmatpush1.bf16.msra.mxu0 %v1412
      %1449 = vmatprep.subr.bf16.mxu0 0
      %1450 = vmatpush1.bf16.msra.mxu0 %v1413
      %1451 = vmatprep.subr.bf16.mxu0 0
      %1452 = vmatpush1.bf16.msra.mxu0 %v1414
      %1453 = vmatprep.subr.bf16.mxu0 0
      %1454 = vmatpush1.bf16.msra.mxu0 %v1415
      %1455 = vmatprep.subr.bf16.mxu0 0
      %1456 = vmatpush1.bf16.msra.mxu0 %v1416
      %1457 = vmatprep.subr.bf16.mxu0 0
      %1458 = vmatpush1.bf16.msra.mxu0 %v1417
      %1459 = vmatprep.subr.bf16.mxu0 0
      %1460 = vmatpush1.bf16.msra.mxu0 %v1418
      %1461 = vmatprep.subr.bf16.mxu0 0
      %1462 = vmatpush1.bf16.msra.mxu0 %v1419
      %1463 = vmatprep.subr.bf16.mxu0 0
      %1464 = vmatpush1.bf16.msra.mxu0 %v1420
      %1465 = vmatprep.subr.bf16.mxu0 0
      %1466 = vmatpush1.bf16.msra.mxu0 %v1421
      %1467 = vmatprep.subr.bf16.mxu0 0
      %1468 = vmatpush1.bf16.msra.mxu0 %v1422
      %1469 = vmatprep.subr.bf16.mxu0 0
      %1470 = vmatpush1.bf16.msra.mxu0 %v1423
      %1471 = vmatprep.subr.bf16.mxu0 0
      %1472 = vmatpush1.bf16.msra.mxu0 %v1424
      %1473 = vmatprep.mubr.bf16.mxu0 %v965
      %1474 = vmatmul.mubr.bf16.gmra.mrb[0].mxu0 %v964
      %v1475 = vpop.f32.mrb[0].mxu0
      %v1476 = vadd.f32 0.0, %v1475
      %v1477 = vpop.f32.mrb[0].mxu0
      %v1478 = vpop.f32.mrb[0].mxu0
      %v1479 = vpop.f32.mrb[0].mxu0
      %1480 = vdwg.mxu0
      %v1481 = vadd.f32 %v1311, %v1476
      %1482 = vst [vmem:[#allocation3] sm:$0xff] %v1481
      %v1483 = vld [vmem:[#allocation3 + $0x1] sm:$0xff]
      %v1484 = vld [vmem:[%s7] sm:$0x1]
      %v1486 = vlaneseq
      %v1487 = vshrl.u32 %v1486, 7
      %v1488 = vsub.s32 0, %v1487
      %v1489 = vrot.slane %v1484, %v1488
      %v1491 = vadd.f32 %v1483, %v1489
      %v1492 = vadd.f32 %v1491, 2.0
      %v1493 = vsub.f32 0.0, %v1492
      %v1494 = vmax.f32 %v1493, 0.0
      %v1495 = vand.u32 2147483647, %v1493
      %v1496 = vsub.f32 0.0, %v1495
      %v1497 = vmul.f32 %v1496, 1.442695
      %v1498 = vpow.pop %v1497
      %v1499 = vadd.f32 %v1498, 1.0
      %v1500 = vlog2.pop %v1499
      %v1501 = vmul.f32 %v1500, 0.6931472
      %v1502 = vadd.f32 %v1494, %v1501
      %v1503 = vsub.f32 0.0, %v1502
      %v1504 = vmul.f32 %v1503, 1.442695
      %v1505 = vpow.pop %v1504
      %v1506 = vld [vmem:[%s346] sm:$0xff]
      %v1507 = vadd.f32 %v1506, %v1491
      %1509 = vrot.lane.b32.xlu0 %v1505, 64
      %v1510 = vpop.permute.xlu0 %1509
      %v1512 = vmul.f32 %v1507, %v1510
      %1513 = vst.msk [vmem:[%s350] sm:$0xff] %vm412, %v1512
      %1515 = vrot.lane.b32.xlu0 %v1503, 64
      %v1516 = vpop.permute.xlu0 %1515
      %v1518 = vsel %vm412, %v1516, 0.0
      %1519 = vadd.xlane.f32.xlu0 %v1518
      %v1520 = vpop.xlane.xlu0 %1519
      %v1521 = vrot.slane %v1520, 4
      %v1522 = vadd.f32 %v1520, %v1521
      %v1523 = vrot.slane %v1522, 2
      %v1524 = vadd.f32 %v1522, %v1523
      %v1525 = vrot.slane %v1524, 1
      %v1526 = vadd.f32 %v1524, %v1525
      %s1527 = vtos %v1526
      %v1528 = vstv %s1527
      %1529 = vst [vmem:[%s353] sm:$0x1] %v1528
      %p1530 = scmp.lt.s32.totalorder %s21, 1
      %s1531 = scalar_select %p1530, %s21, 1
      %s1532 = smul.addr %s1531, 8
      %s1533 = scalar_lea.vmem %s8, %s1532
      %p1534 = scmp.lt.s32.totalorder %s21, 1
      %s1535 = scalar_select %p1534, %s21, 1
      %s1536 = scalar_lea.vmem %s9, %s1535
      // Predicated region
      $region53: #{flow_model_forward.11} parent=51 // pred_check
        %p1537 = pneg %p217
      $region54: #{flow_model_forward.11} parent=51 // pred_check_branch
        %1539 = sbr.rel (%p1537) target = $region56
      $region55: #{flow_model_forward.11} parent=51 // pred_region
        _
      $region56: #{flow_model_forward.11} parent=51 // pred_fallthru
        _
      // Predicated region
      $region57: #{flow_model_forward.11} parent=51 // pred_check
        %p1540 = pneg %p243
      $region58: #{flow_model_forward.11} parent=51 // pred_check_branch
        %1542 = sbr.rel (%p1540) target = $region60
      $region59: #{flow_model_forward.11} parent=51 // pred_region
        _
      $region60: #{flow_model_forward.11} parent=51 // pred_fallthru
        _
    $region52: #{flow_model_forward.11} parent=5 // pred_fallthru
      _
    %p1543 = scmp.le.s32.totalorder 2, %s16
    // Predicated region
    $region61: #{flow_model_forward.11} parent=5 // pred_check
      %p1544 = pneg %p1543
    $region62: #{flow_model_forward.11} parent=5 // pred_check_branch
      %1546 = sbr.rel (%p1544) target = $region64
    $region63: #{flow_model_forward.11} parent=5 // pred_region
      %s1547 = ssub.s32 %s16, 2
      // Predicated region
      $region65: #{flow_model_forward.11} parent=63 // pred_check
        %p1548 = pneg %p223
      $region66: #{flow_model_forward.11} parent=63 // pred_check_branch
        %1550 = sbr.rel (%p1548) target = $region68
      $region67: #{flow_model_forward.11} parent=63 // pred_region
        %p1551 = scmp.lt.s32.totalorder %s22, 1
        %s1552 = scalar_select %p1551, %s22, 1
        %s1553 = smul.addr %s1552, 8
        %s1554 = scalar_lea.vmem %s8, %s1553
      $region68: #{flow_model_forward.11} parent=63 // pred_fallthru
        _
      // Predicated region
      $region69: #{flow_model_forward.11} parent=63 // pred_check
        %p1555 = pneg %p249
      $region70: #{flow_model_forward.11} parent=63 // pred_check_branch
        %1557 = sbr.rel (%p1555) target = $region72
      $region71: #{flow_model_forward.11} parent=63 // pred_region
        %p1558 = scmp.lt.s32.totalorder %s22, 1
        %s1559 = scalar_select %p1558, %s22, 1
        %s1560 = scalar_lea.vmem %s9, %s1559
      $region72: #{flow_model_forward.11} parent=63 // pred_fallthru
        _
    $region64: #{flow_model_forward.11} parent=5 // pred_fallthru
      _
  $region6: #{flow_model_forward.11} parent=0 // loop_footer
    %s20 = sadd.s32 1, %s16
  $region7: #{flow_model_forward.11} parent=0 // loop_footer_branch
    %15 = sbr.rel target = $region3
  $region8: #{flow_model_forward.11} parent=0 // loop_exit
    _

// kernel: flow_model_forward.19
$region0: #{flow_model_forward.19}
  #allocation0 [shape = 'u32[]', space=smem, size = 0x4, offset = 0x4, fixed_abs, tag = 'smem constant byte address 0x4 - core index']
  #allocation1 [shape = 'u32[144,128]{1,0:T(1,128)}', space=vmem, size = 0x12000, scoped, tag = 'internal scratch']
  %s0 = inlined_call_operand.vmem [shape: f32[2,4,128], index: 0, kind: input, shape index: {}]
  %s1 = inlined_call_operand.vmem [shape: f32[4,128], index: 1, kind: input, shape index: {}]
  %s2 = inlined_call_operand.vmem [shape: f32[4,128], index: 2, kind: input, shape index: {}]
  %s3 = inlined_call_operand.vmem [shape: f32[2,1,128], index: 3, kind: output, shape index: {}]
  %s4 = sld [smem:[#allocation0]]
  $region45: #{flow_model_forward.19} parent=0
    _
  %s6 = ssub.s32 1, %s4
  %s7 = scalar_select 0, %s6, %s4
  loop: start=0, step=1, limit=4
  $region2: #{flow_model_forward.19} parent=0 // loop_pre_header
    _
  $region3: #{flow_model_forward.19} parent=0 // loop_header
    %s9 = sphi 0, %s13
    %p10 = scmp.ge.s32.totalorder %s9, 4
    %s19 = sphi 0, %s21
    %s22 = sphi 0, %s19
    %s23 = sphi 0, %s22
    %s39 = sphi 0, %s23
    %s43 = sphi 0, %s43
    %s45 = sphi 0, %s43
    %s46 = sphi 0, %s45
    %s60 = sphi 0, %s46
    %s64 = sphi 0, %s64
    %s66 = sphi 0, %s64
    %s67 = sphi 0, %s66
    %s81 = sphi 0, %s67
    %s87 = sphi 0, %s89
    %s90 = sphi 0, %s87
    %s91 = sphi 0, %s90
    %s107 = sphi 0, %s91
  $region4: #{flow_model_forward.19} parent=0 // loop_header_branch
    %12 = sbr.rel (%p10) target = $region8
  $region5: #{flow_model_forward.19} parent=0 // loop_body
    %s14 = ssub.s32 %s9, 1
    %s15 = ssub.s32 %s9, 2
    %s16 = sadd.s32 %s9, 1
    %s17 = ssub.s32 %s9, %s16
    %p18 = scmp.eq.s32.totalorder %s17, 0
    %s20 = sadd.s32 %s19, 1
    %s21 = scalar_select %p18, %s19, %s20
    %p24 = pneg %p18
    %p25 = scmp.eq.s32.totalorder %s9, 1
    %p26 = por %p24, %p25
    %p27 = scmp.ne.s32.totalorder %s19, %s22
    %p28 = scmp.eq.s32.totalorder %s9, 0
    %p29 = por %p27, %p28
    %p30 = scmp.ne.s32.totalorder %s19, %s22
    %p31 = scmp.eq.s32.totalorder %s14, 1
    %p32 = por %p30, %p31
    %p33 = scmp.ne.s32.totalorder %s22, %s23
    %p34 = scmp.eq.s32.totalorder %s14, 0
    %p35 = por %p33, %p34
    %p36 = scmp.ne.s32.totalorder %s22, %s23
    %p37 = scmp.eq.s32.totalorder %s15, 1
    %p38 = por %p36, %p37
    %p40 = scmp.ne.s32.totalorder %s23, %s39
    %p41 = scmp.eq.s32.totalorder %s15, 0
    %p42 = por %p40, %p41
    %s44 = sadd.s32 %s43, 1
    %p47 = scmp.eq.s32.totalorder %s9, 1
    %p48 = scmp.ne.s32.totalorder %s43, %s45
    %p49 = scmp.eq.s32.totalorder %s9, 0
    %p50 = por %p48, %p49
    %p51 = scmp.ne.s32.totalorder %s43, %s45
    %p52 = scmp.eq.s32.totalorder %s14, 1
    %p53 = por %p51, %p52
    %p54 = scmp.ne.s32.totalorder %s45, %s46
    %p55 = scmp.eq.s32.totalorder %s14, 0
    %p56 = por %p54, %p55
    %p57 = scmp.ne.s32.totalorder %s45, %s46
    %p58 = scmp.eq.s32.totalorder %s15, 1
    %p59 = por %p57, %p58
    %p61 = scmp.ne.s32.totalorder %s46, %s60
    %p62 = scmp.eq.s32.totalorder %s15, 0
    %p63 = por %p61, %p62
    %s65 = sadd.s32 %s64, 1
    %p68 = scmp.eq.s32.totalorder %s9, 1
    %p69 = scmp.ne.s32.totalorder %s64, %s66
    %p70 = scmp.eq.s32.totalorder %s9, 0
    %p71 = por %p69, %p70
    %p72 = scmp.ne.s32.totalorder %s64, %s66
    %p73 = scmp.eq.s32.totalorder %s14, 1
    %p74 = por %p72, %p73
    %p75 = scmp.ne.s32.totalorder %s66, %s67
    %p76 = scmp.eq.s32.totalorder %s14, 0
    %p77 = por %p75, %p76
    %p78 = scmp.ne.s32.totalorder %s66, %s67
    %p79 = scmp.eq.s32.totalorder %s15, 1
    %p80 = por %p78, %p79
    %p82 = scmp.ne.s32.totalorder %s67, %s81
    %p83 = scmp.eq.s32.totalorder %s15, 0
    %p84 = por %p82, %p83
    %s85 = ssub.s32 %s9, %s16
    %p86 = scmp.eq.s32.totalorder %s85, 0
    %s88 = sadd.s32 %s87, 1
    %s89 = scalar_select %p86, %s87, %s88
    %p92 = pneg %p86
    %p93 = scmp.eq.s32.totalorder %s9, 1
    %p94 = por %p92, %p93
    %p95 = scmp.ne.s32.totalorder %s87, %s90
    %p96 = scmp.eq.s32.totalorder %s9, 0
    %p97 = por %p95, %p96
    %p98 = scmp.ne.s32.totalorder %s87, %s90
    %p99 = scmp.eq.s32.totalorder %s14, 1
    %p100 = por %p98, %p99
    %p101 = scmp.ne.s32.totalorder %s90, %s91
    %p102 = scmp.eq.s32.totalorder %s14, 0
    %p103 = por %p101, %p102
    %p104 = scmp.ne.s32.totalorder %s90, %s91
    %p105 = scmp.eq.s32.totalorder %s15, 1
    %p106 = por %p104, %p105
    %p108 = scmp.ne.s32.totalorder %s91, %s107
    %p109 = scmp.eq.s32.totalorder %s15, 0
    %p110 = por %p108, %p109
    %p111 = scmp.le.s32.totalorder 1, %s9
    %p112 = scmp.lt.s32.totalorder %s9, 3
    %p113 = pnand %p111, %p112
    %p114 = pneg %p113
    // Predicated region
    $region9: #{flow_model_forward.19} parent=5 // pred_check
      _
    $region10: #{flow_model_forward.19} parent=5 // pred_check_branch
      %116 = sbr.rel (%p113) target = $region12
    $region11: #{flow_model_forward.19} parent=5 // pred_region
      %s117 = ssub.s32 %s9, 1
      // Predicated region
      $region13: #{flow_model_forward.19} parent=11 // pred_check
        %p118 = pneg %p56
      $region14: #{flow_model_forward.19} parent=11 // pred_check_branch
        %120 = sbr.rel (%p118) target = $region16
      $region15: #{flow_model_forward.19} parent=11 // pred_region
        _
      $region16: #{flow_model_forward.19} parent=11 // pred_fallthru
        _
      // Predicated region
      $region17: #{flow_model_forward.19} parent=11 // pred_check
        %p121 = pneg %p77
      $region18: #{flow_model_forward.19} parent=11 // pred_check_branch
        %123 = sbr.rel (%p121) target = $region20
      $region19: #{flow_model_forward.19} parent=11 // pred_region
        _
      $region20: #{flow_model_forward.19} parent=11 // pred_fallthru
        _
    $region12: #{flow_model_forward.19} parent=5 // pred_fallthru
      _
    %p124 = scmp.lt.s32.totalorder %s9, 2
    // Predicated region
    $region21: #{flow_model_forward.19} parent=5 // pred_check
      %p125 = pneg %p124
    $region22: #{flow_model_forward.19} parent=5 // pred_check_branch
      %127 = sbr.rel (%p125) target = $region24
    $region23: #{flow_model_forward.19} parent=5 // pred_region
      // Predicated region
      $region25: #{flow_model_forward.19} parent=23 // pred_check
        %p128 = pneg %p29
      $region26: #{flow_model_forward.19} parent=23 // pred_check_branch
        %130 = sbr.rel (%p128) target = $region28
      $region27: #{flow_model_forward.19} parent=23 // pred_region
        %p131 = scmp.lt.s32.totalorder %s9, 1
        %s132 = scalar_select %p131, %s9, 1
        %s133 = smul.addr %s132, 4
        %s134 = scalar_lea.vmem %s0, %s133
      $region28: #{flow_model_forward.19} parent=23 // pred_fallthru
        _
    $region24: #{flow_model_forward.19} parent=5 // pred_fallthru
      _
    %p135 = scmp.le.s32.totalorder 1, %s9
    %p136 = scmp.lt.s32.totalorder %s9, 3
    %p137 = pnand %p135, %p136
    %p138 = pneg %p137
    // Predicated region
    $region29: #{flow_model_forward.19} parent=5 // pred_check
      _
    $region30: #{flow_model_forward.19} parent=5 // pred_check_branch
      %140 = sbr.rel (%p137) target = $region32
    $region31: #{flow_model_forward.19} parent=5 // pred_region
      %s141 = ssub.s32 %s9, 1
      %p142 = scmp.lt.s32.totalorder %s14, 1
      %s143 = scalar_select %p142, %s14, 1
      %s144 = smul.addr %s143, 4
      %s145 = scalar_lea.vmem %s0, %s144
      %p146 = pneg %p35
      %p147 = pneg %p32
      %p148 = pneg %p56
      %p149 = pneg %p53
      %p150 = pneg %p77
      %p151 = pneg %p74
      %p152 = pneg %p103
      %p153 = pneg %p100
      %p154 = scmp.lt.s32.totalorder %s14, 1
      %s155 = scalar_select %p154, %s14, 1
      %s156 = scalar_lea.vmem %s3, %s155
      %p157 = scmp.lt.s32.totalorder %s14, 1
      %s158 = scalar_select %p157, %s14, 1
      %s159 = smul.addr %s158, 4
      %s160 = scalar_lea.vmem %s0, %s159
      %p161 = scmp.lt.s32.totalorder %s14, 1
      %s162 = scalar_select %p161, %s14, 1
      %s163 = scalar_lea.vmem %s3, %s162
      %v164 = vld [vmem:[%s160] sm:$0xf]
      %v165 = vld [vmem:[%s1] sm:$0xf]
      %v166 = vld [vmem:[%s2] sm:$0xf]
      %v167 = vsub.f32 -0.9189385, %v166
      %v168 = vsub.f32 %v164, %v165
      %v169 = vmul.f32 %v168, %v168
      %v170 = vmul.f32 %v169, 0.5
      %v171 = vmul.f32 %v166, -2.0
      %v172 = vmul.f32 %v171, 1.442695
      %v173 = vpow.pop %v172
      %v174 = vmul.f32 %v170, %v173
      %v175 = vsub.f32 %v167, %v174
      %vm176 = vcmask 1043456
      %v177 = vsel %vm176, %v175, 0.0
      %178 = vadd.xlane.f32.xlu0 %v177
      %v179 = vpop.xlane.xlu0 %178
      %v180 = vrot.slane %v179, 4
      %v181 = vadd.f32 %v179, %v180
      %v182 = vrot.slane %v181, 2
      %v183 = vadd.f32 %v181, %v182
      %v184 = vrot.slane %v183, 1
      %v185 = vadd.f32 %v183, %v184
      %s186 = vtos %v185
      %v187 = vstv %s186
      %188 = vst [vmem:[%s163] sm:$0x1] %v187
      %p189 = scmp.lt.s32.totalorder %s14, 1
      %s190 = scalar_select %p189, %s14, 1
      %s191 = scalar_lea.vmem %s3, %s190
      // Predicated region
      $region33: #{flow_model_forward.19} parent=31 // pred_check
        %p192 = pneg %p100
      $region34: #{flow_model_forward.19} parent=31 // pred_check_branch
        %194 = sbr.rel (%p192) target = $region36
      $region35: #{flow_model_forward.19} parent=31 // pred_region
        _
      $region36: #{flow_model_forward.19} parent=31 // pred_fallthru
        _
    $region32: #{flow_model_forward.19} parent=5 // pred_fallthru
      _
    %p195 = scmp.le.s32.totalorder 2, %s9
    // Predicated region
    $region37: #{flow_model_forward.19} parent=5 // pred_check
      %p196 = pneg %p195
    $region38: #{flow_model_forward.19} parent=5 // pred_check_branch
      %198 = sbr.rel (%p196) target = $region40
    $region39: #{flow_model_forward.19} parent=5 // pred_region
      %s199 = ssub.s32 %s9, 2
      // Predicated region
      $region41: #{flow_model_forward.19} parent=39 // pred_check
        %p200 = pneg %p106
      $region42: #{flow_model_forward.19} parent=39 // pred_check_branch
        %202 = sbr.rel (%p200) target = $region44
      $region43: #{flow_model_forward.19} parent=39 // pred_region
        %p203 = scmp.lt.s32.totalorder %s15, 1
        %s204 = scalar_select %p203, %s15, 1
        %s205 = scalar_lea.vmem %s3, %s204
      $region44: #{flow_model_forward.19} parent=39 // pred_fallthru
        _
    $region40: #{flow_model_forward.19} parent=5 // pred_fallthru
      _
  $region6: #{flow_model_forward.19} parent=0 // loop_footer
    %s13 = sadd.s32 1, %s9
  $region7: #{flow_model_forward.19} parent=0 // loop_footer_branch
    %8 = sbr.rel target = $region3
  $region8: #{flow_model_forward.19} parent=0 // loop_exit
    _

// kernel: flow_model_forward.14
$region0: #{flow_model_forward.14}
  #allocation0 [shape = 'u32[]', space=smem, size = 0x4, offset = 0x4, fixed_abs, tag = 'smem constant byte address 0x4 - core index']
  #allocation1 [shape = 'u32[144,128]{1,0:T(1,128)}', space=vmem, size = 0x12000, scoped, tag = 'internal scratch']
  #allocation2 [shape = 'f32[6,128]{1,0:T(8,128)}', space=vmem, size = 0x1000, scoped, tag = 'scratch operand']
  #allocation3 [shape = 'f32[6,128]{1,0:T(8,128)}', space=vmem, size = 0x1000, scoped, tag = 'scratch operand']
  %s0 = inlined_call_operand.vmem [shape: bf16[2,4,64], index: 0, kind: input, shape index: {}]
  %s1 = inlined_call_operand.vmem [shape: f32[2,4,64], index: 1, kind: input, shape index: {}]
  %s2 = inlined_call_operand.vmem [shape: bf16[3,64,128], index: 2, kind: input, shape index: {}]
  %s3 = inlined_call_operand.vmem [shape: f32[1,128], index: 3, kind: input, shape index: {}]
  %s4 = inlined_call_operand.vmem [shape: bf16[128,128], index: 4, kind: input, shape index: {}]
  %s5 = inlined_call_operand.vmem [shape: f32[1,128], index: 5, kind: input, shape index: {}]
  %s6 = inlined_call_operand.vmem [shape: bf16[3,128,128], index: 6, kind: input, shape index: {}]
  %s7 = inlined_call_operand.vmem [shape: f32[1,128], index: 7, kind: input, shape index: {}]
  %s8 = inlined_call_operand.vmem [shape: f32[2,4,64], index: 8, kind: output, shape index: {0}]
  %s9 = inlined_call_operand.vmem [shape: f32[2,1,128], index: 9, kind: output, shape index: {1}]
  %10 = xla_tuple %s8, %s9
  %s11 = sld [smem:[#allocation0]]
  $region73: #{flow_model_forward.14} parent=0
    _
  %s13 = ssub.s32 1, %s11
  %s14 = scalar_select 0, %s13, %s11
  loop: start=0, step=1, limit=4
  $region2: #{flow_model_forward.14} parent=0 // loop_pre_header
    _
  $region3: #{flow_model_forward.14} parent=0 // loop_header
    %s16 = sphi 0, %s20
    %p17 = scmp.ge.s32.totalorder %s16, 4
    %s26 = sphi 0, %s28
    %s29 = sphi 0, %s26
    %s30 = sphi 0, %s29
    %s46 = sphi 0, %s30
    %s52 = sphi 0, %s54
    %s55 = sphi 0, %s52
    %s56 = sphi 0, %s55
    %s72 = sphi 0, %s56
    %s76 = sphi 0, %s76
    %s78 = sphi 0, %s76
    %s79 = sphi 0, %s78
    %s93 = sphi 0, %s79
    %s97 = sphi 0, %s97
    %s99 = sphi 0, %s97
    %s100 = sphi 0, %s99
    %s114 = sphi 0, %s100
    %s118 = sphi 0, %s118
    %s120 = sphi 0, %s118
    %s121 = sphi 0, %s120
    %s135 = sphi 0, %s121
    %s139 = sphi 0, %s139
    %s141 = sphi 0, %s139
    %s142 = sphi 0, %s141
    %s156 = sphi 0, %s142
    %s160 = sphi 0, %s160
    %s162 = sphi 0, %s160
    %s163 = sphi 0, %s162
    %s177 = sphi 0, %s163
    %s181 = sphi 0, %s181
    %s183 = sphi 0, %s181
    %s184 = sphi 0, %s183
    %s198 = sphi 0, %s184
    %s204 = sphi 0, %s206
    %s207 = sphi 0, %s204
    %s208 = sphi 0, %s207
    %s224 = sphi 0, %s208
    %s230 = sphi 0, %s232
    %s233 = sphi 0, %s230
    %s234 = sphi 0, %s233
    %s250 = sphi 0, %s234
  $region4: #{flow_model_forward.14} parent=0 // loop_header_branch
    %19 = sbr.rel (%p17) target = $region8
  $region5: #{flow_model_forward.14} parent=0 // loop_body
    %s21 = ssub.s32 %s16, 1
    %s22 = ssub.s32 %s16, 2
    %s23 = sadd.s32 %s16, 1
    %s24 = ssub.s32 %s16, %s23
    %p25 = scmp.eq.s32.totalorder %s24, 0
    %s27 = sadd.s32 %s26, 1
    %s28 = scalar_select %p25, %s26, %s27
    %p31 = pneg %p25
    %p32 = scmp.eq.s32.totalorder %s16, 1
    %p33 = por %p31, %p32
    %p34 = scmp.ne.s32.totalorder %s26, %s29
    %p35 = scmp.eq.s32.totalorder %s16, 0
    %p36 = por %p34, %p35
    %p37 = scmp.ne.s32.totalorder %s26, %s29
    %p38 = scmp.eq.s32.totalorder %s21, 1
    %p39 = por %p37, %p38
    %p40 = scmp.ne.s32.totalorder %s29, %s30
    %p41 = scmp.eq.s32.totalorder %s21, 0
    %p42 = por %p40, %p41
    %p43 = scmp.ne.s32.totalorder %s29, %s30
    %p44 = scmp.eq.s32.totalorder %s22, 1
    %p45 = por %p43, %p44
    %p47 = scmp.ne.s32.totalorder %s30, %s46
    %p48 = scmp.eq.s32.totalorder %s22, 0
    %p49 = por %p47, %p48
    %s50 = ssub.s32 %s16, %s23
    %p51 = scmp.eq.s32.totalorder %s50, 0
    %s53 = sadd.s32 %s52, 1
    %s54 = scalar_select %p51, %s52, %s53
    %p57 = pneg %p51
    %p58 = scmp.eq.s32.totalorder %s16, 1
    %p59 = por %p57, %p58
    %p60 = scmp.ne.s32.totalorder %s52, %s55
    %p61 = scmp.eq.s32.totalorder %s16, 0
    %p62 = por %p60, %p61
    %p63 = scmp.ne.s32.totalorder %s52, %s55
    %p64 = scmp.eq.s32.totalorder %s21, 1
    %p65 = por %p63, %p64
    %p66 = scmp.ne.s32.totalorder %s55, %s56
    %p67 = scmp.eq.s32.totalorder %s21, 0
    %p68 = por %p66, %p67
    %p69 = scmp.ne.s32.totalorder %s55, %s56
    %p70 = scmp.eq.s32.totalorder %s22, 1
    %p71 = por %p69, %p70
    %p73 = scmp.ne.s32.totalorder %s56, %s72
    %p74 = scmp.eq.s32.totalorder %s22, 0
    %p75 = por %p73, %p74
    %s77 = sadd.s32 %s76, 1
    %p80 = scmp.eq.s32.totalorder %s16, 1
    %p81 = scmp.ne.s32.totalorder %s76, %s78
    %p82 = scmp.eq.s32.totalorder %s16, 0
    %p83 = por %p81, %p82
    %p84 = scmp.ne.s32.totalorder %s76, %s78
    %p85 = scmp.eq.s32.totalorder %s21, 1
    %p86 = por %p84, %p85
    %p87 = scmp.ne.s32.totalorder %s78, %s79
    %p88 = scmp.eq.s32.totalorder %s21, 0
    %p89 = por %p87, %p88
    %p90 = scmp.ne.s32.totalorder %s78, %s79
    %p91 = scmp.eq.s32.totalorder %s22, 1
    %p92 = por %p90, %p91
    %p94 = scmp.ne.s32.totalorder %s79, %s93
    %p95 = scmp.eq.s32.totalorder %s22, 0
    %p96 = por %p94, %p95
    %s98 = sadd.s32 %s97, 1
    %p101 = scmp.eq.s32.totalorder %s16, 1
    %p102 = scmp.ne.s32.totalorder %s97, %s99
    %p103 = scmp.eq.s32.totalorder %s16, 0
    %p104 = por %p102, %p103
    %p105 = scmp.ne.s32.totalorder %s97, %s99
    %p106 = scmp.eq.s32.totalorder %s21, 1
    %p107 = por %p105, %p106
    %p108 = scmp.ne.s32.totalorder %s99, %s100
    %p109 = scmp.eq.s32.totalorder %s21, 0
    %p110 = por %p108, %p109
    %p111 = scmp.ne.s32.totalorder %s99, %s100
    %p112 = scmp.eq.s32.totalorder %s22, 1
    %p113 = por %p111, %p112
    %p115 = scmp.ne.s32.totalorder %s100, %s114
    %p116 = scmp.eq.s32.totalorder %s22, 0
    %p117 = por %p115, %p116
    %s119 = sadd.s32 %s118, 1
    %p122 = scmp.eq.s32.totalorder %s16, 1
    %p123 = scmp.ne.s32.totalorder %s118, %s120
    %p124 = scmp.eq.s32.totalorder %s16, 0
    %p125 = por %p123, %p124
    %p126 = scmp.ne.s32.totalorder %s118, %s120
    %p127 = scmp.eq.s32.totalorder %s21, 1
    %p128 = por %p126, %p127
    %p129 = scmp.ne.s32.totalorder %s120, %s121
    %p130 = scmp.eq.s32.totalorder %s21, 0
    %p131 = por %p129, %p130
    %p132 = scmp.ne.s32.totalorder %s120, %s121
    %p133 = scmp.eq.s32.totalorder %s22, 1
    %p134 = por %p132, %p133
    %p136 = scmp.ne.s32.totalorder %s121, %s135
    %p137 = scmp.eq.s32.totalorder %s22, 0
    %p138 = por %p136, %p137
    %s140 = sadd.s32 %s139, 1
    %p143 = scmp.eq.s32.totalorder %s16, 1
    %p144 = scmp.ne.s32.totalorder %s139, %s141
    %p145 = scmp.eq.s32.totalorder %s16, 0
    %p146 = por %p144, %p145
    %p147 = scmp.ne.s32.totalorder %s139, %s141
    %p148 = scmp.eq.s32.totalorder %s21, 1
    %p149 = por %p147, %p148
    %p150 = scmp.ne.s32.totalorder %s141, %s142
    %p151 = scmp.eq.s32.totalorder %s21, 0
    %p152 = por %p150, %p151
    %p153 = scmp.ne.s32.totalorder %s141, %s142
    %p154 = scmp.eq.s32.totalorder %s22, 1
    %p155 = por %p153, %p154
    %p157 = scmp.ne.s32.totalorder %s142, %s156
    %p158 = scmp.eq.s32.totalorder %s22, 0
    %p159 = por %p157, %p158
    %s161 = sadd.s32 %s160, 1
    %p164 = scmp.eq.s32.totalorder %s16, 1
    %p165 = scmp.ne.s32.totalorder %s160, %s162
    %p166 = scmp.eq.s32.totalorder %s16, 0
    %p167 = por %p165, %p166
    %p168 = scmp.ne.s32.totalorder %s160, %s162
    %p169 = scmp.eq.s32.totalorder %s21, 1
    %p170 = por %p168, %p169
    %p171 = scmp.ne.s32.totalorder %s162, %s163
    %p172 = scmp.eq.s32.totalorder %s21, 0
    %p173 = por %p171, %p172
    %p174 = scmp.ne.s32.totalorder %s162, %s163
    %p175 = scmp.eq.s32.totalorder %s22, 1
    %p176 = por %p174, %p175
    %p178 = scmp.ne.s32.totalorder %s163, %s177
    %p179 = scmp.eq.s32.totalorder %s22, 0
    %p180 = por %p178, %p179
    %s182 = sadd.s32 %s181, 1
    %p185 = scmp.eq.s32.totalorder %s16, 1
    %p186 = scmp.ne.s32.totalorder %s181, %s183
    %p187 = scmp.eq.s32.totalorder %s16, 0
    %p188 = por %p186, %p187
    %p189 = scmp.ne.s32.totalorder %s181, %s183
    %p190 = scmp.eq.s32.totalorder %s21, 1
    %p191 = por %p189, %p190
    %p192 = scmp.ne.s32.totalorder %s183, %s184
    %p193 = scmp.eq.s32.totalorder %s21, 0
    %p194 = por %p192, %p193
    %p195 = scmp.ne.s32.totalorder %s183, %s184
    %p196 = scmp.eq.s32.totalorder %s22, 1
    %p197 = por %p195, %p196
    %p199 = scmp.ne.s32.totalorder %s184, %s198
    %p200 = scmp.eq.s32.totalorder %s22, 0
    %p201 = por %p199, %p200
    %s202 = ssub.s32 %s16, %s23
    %p203 = scmp.eq.s32.totalorder %s202, 0
    %s205 = sadd.s32 %s204, 1
    %s206 = scalar_select %p203, %s204, %s205
    %p209 = pneg %p203
    %p210 = scmp.eq.s32.totalorder %s16, 1
    %p211 = por %p209, %p210
    %p212 = scmp.ne.s32.totalorder %s204, %s207
    %p213 = scmp.eq.s32.totalorder %s16, 0
    %p214 = por %p212, %p213
    %p215 = scmp.ne.s32.totalorder %s204, %s207
    %p216 = scmp.eq.s32.totalorder %s21, 1
    %p217 = por %p215, %p216
    %p218 = scmp.ne.s32.totalorder %s207, %s208
    %p219 = scmp.eq.s32.totalorder %s21, 0
    %p220 = por %p218, %p219
    %p221 = scmp.ne.s32.totalorder %s207, %s208
    %p222 = scmp.eq.s32.totalorder %s22, 1
    %p223 = por %p221, %p222
    %p225 = scmp.ne.s32.totalorder %s208, %s224
    %p226 = scmp.eq.s32.totalorder %s22, 0
    %p227 = por %p225, %p226
    %s228 = ssub.s32 %s16, %s23
    %p229 = scmp.eq.s32.totalorder %s228, 0
    %s231 = sadd.s32 %s230, 1
    %s232 = scalar_select %p229, %s230, %s231
    %p235 = pneg %p229
    %p236 = scmp.eq.s32.totalorder %s16, 1
    %p237 = por %p235, %p236
    %p238 = scmp.ne.s32.totalorder %s230, %s233
    %p239 = scmp.eq.s32.totalorder %s16, 0
    %p240 = por %p238, %p239
    %p241 = scmp.ne.s32.totalorder %s230, %s233
    %p242 = scmp.eq.s32.totalorder %s21, 1
    %p243 = por %p241, %p242
    %p244 = scmp.ne.s32.totalorder %s233, %s234
    %p245 = scmp.eq.s32.totalorder %s21, 0
    %p246 = por %p244, %p245
    %p247 = scmp.ne.s32.totalorder %s233, %s234
    %p248 = scmp.eq.s32.totalorder %s22, 1
    %p249 = por %p247, %p248
    %p251 = scmp.ne.s32.totalorder %s234, %s250
    %p252 = scmp.eq.s32.totalorder %s22, 0
    %p253 = por %p251, %p252
    %p254 = scmp.le.s32.totalorder 1, %s16
    %p255 = scmp.lt.s32.totalorder %s16, 3
    %p256 = pnand %p254, %p255
    %p257 = pneg %p256
    // Predicated region
    $region9: #{flow_model_forward.14} parent=5 // pred_check
      _
    $region10: #{flow_model_forward.14} parent=5 // pred_check_branch
      %259 = sbr.rel (%p256) target = $region12
    $region11: #{flow_model_forward.14} parent=5 // pred_region
      %s260 = ssub.s32 %s16, 1
      // Predicated region
      $region13: #{flow_model_forward.14} parent=11 // pred_check
        %p261 = pneg %p89
      $region14: #{flow_model_forward.14} parent=11 // pred_check_branch
        %263 = sbr.rel (%p261) target = $region16
      $region15: #{flow_model_forward.14} parent=11 // pred_region
        _
      $region16: #{flow_model_forward.14} parent=11 // pred_fallthru
        _
      // Predicated region
      $region17: #{flow_model_forward.14} parent=11 // pred_check
        %p264 = pneg %p110
      $region18: #{flow_model_forward.14} parent=11 // pred_check_branch
        %266 = sbr.rel (%p264) target = $region20
      $region19: #{flow_model_forward.14} parent=11 // pred_region
        _
      $region20: #{flow_model_forward.14} parent=11 // pred_fallthru
        _
      // Predicated region
      $region21: #{flow_model_forward.14} parent=11 // pred_check
        %p267 = pneg %p131
      $region22: #{flow_model_forward.14} parent=11 // pred_check_branch
        %269 = sbr.rel (%p267) target = $region24
      $region23: #{flow_model_forward.14} parent=11 // pred_region
        _
      $region24: #{flow_model_forward.14} parent=11 // pred_fallthru
        _
      // Predicated region
      $region25: #{flow_model_forward.14} parent=11 // pred_check
        %p270 = pneg %p152
      $region26: #{flow_model_forward.14} parent=11 // pred_check_branch
        %272 = sbr.rel (%p270) target = $region28
      $region27: #{flow_model_forward.14} parent=11 // pred_region
        _
      $region28: #{flow_model_forward.14} parent=11 // pred_fallthru
        _
      // Predicated region
      $region29: #{flow_model_forward.14} parent=11 // pred_check
        %p273 = pneg %p173
      $region30: #{flow_model_forward.14} parent=11 // pred_check_branch
        %275 = sbr.rel (%p273) target = $region32
      $region31: #{flow_model_forward.14} parent=11 // pred_region
        _
      $region32: #{flow_model_forward.14} parent=11 // pred_fallthru
        _
      // Predicated region
      $region33: #{flow_model_forward.14} parent=11 // pred_check
        %p276 = pneg %p194
      $region34: #{flow_model_forward.14} parent=11 // pred_check_branch
        %278 = sbr.rel (%p276) target = $region36
      $region35: #{flow_model_forward.14} parent=11 // pred_region
        _
      $region36: #{flow_model_forward.14} parent=11 // pred_fallthru
        _
    $region12: #{flow_model_forward.14} parent=5 // pred_fallthru
      _
    %p279 = scmp.lt.s32.totalorder %s16, 2
    // Predicated region
    $region37: #{flow_model_forward.14} parent=5 // pred_check
      %p280 = pneg %p279
    $region38: #{flow_model_forward.14} parent=5 // pred_check_branch
      %282 = sbr.rel (%p280) target = $region40
    $region39: #{flow_model_forward.14} parent=5 // pred_region
      // Predicated region
      $region41: #{flow_model_forward.14} parent=39 // pred_check
        %p283 = pneg %p36
      $region42: #{flow_model_forward.14} parent=39 // pred_check_branch
        %285 = sbr.rel (%p283) target = $region44
      $region43: #{flow_model_forward.14} parent=39 // pred_region
        %p286 = scmp.lt.s32.totalorder %s16, 1
        %s287 = scalar_select %p286, %s16, 1
        %s288 = smul.addr %s287, 2
        %s289 = scalar_lea.vmem %s0, %s288
      $region44: #{flow_model_forward.14} parent=39 // pred_fallthru
        _
      // Predicated region
      $region45: #{flow_model_forward.14} parent=39 // pred_check
        %p290 = pneg %p62
      $region46: #{flow_model_forward.14} parent=39 // pred_check_branch
        %292 = sbr.rel (%p290) target = $region48
      $region47: #{flow_model_forward.14} parent=39 // pred_region
        %p293 = scmp.lt.s32.totalorder %s16, 1
        %s294 = scalar_select %p293, %s16, 1
        %s295 = smul.addr %s294, 4
        %s296 = scalar_lea.vmem %s1, %s295
      $region48: #{flow_model_forward.14} parent=39 // pred_fallthru
        _
    $region40: #{flow_model_forward.14} parent=5 // pred_fallthru
      _
    %p297 = scmp.le.s32.totalorder 1, %s16
    %p298 = scmp.lt.s32.totalorder %s16, 3
    %p299 = pnand %p297, %p298
    %p300 = pneg %p299
    // Predicated region
    $region49: #{flow_model_forward.14} parent=5 // pred_check
      _
    $region50: #{flow_model_forward.14} parent=5 // pred_check_branch
      %302 = sbr.rel (%p299) target = $region52
    $region51: #{flow_model_forward.14} parent=5 // pred_region
      %s303 = ssub.s32 %s16, 1
      %p304 = scmp.lt.s32.totalorder %s21, 1
      %s305 = scalar_select %p304, %s21, 1
      %s306 = smul.addr %s305, 2
      %s307 = scalar_lea.vmem %s0, %s306
      %p308 = pneg %p42
      %p309 = pneg %p39
      %p310 = scmp.lt.s32.totalorder %s21, 1
      %s311 = scalar_select %p310, %s21, 1
      %s312 = smul.addr %s311, 4
      %s313 = scalar_lea.vmem %s1, %s312
      %p314 = pneg %p68
      %p315 = pneg %p65
      %p316 = pneg %p89
      %p317 = pneg %p86
      %p318 = pneg %p110
      %p319 = pneg %p107
      %p320 = pneg %p131
      %p321 = pneg %p128
      %p322 = pneg %p152
      %p323 = pneg %p149
      %p324 = pneg %p173
      %p325 = pneg %p170
      %p326 = pneg %p194
      %p327 = pneg %p191
      %p328 = pneg %p220
      %p329 = pneg %p217
      %p330 = scmp.lt.s32.totalorder %s21, 1
      %s331 = scalar_select %p330, %s21, 1
      %s332 = smul.addr %s331, 4
      %s333 = scalar_lea.vmem %s8, %s332
      %p334 = pneg %p246
      %p335 = pneg %p243
      %p336 = scmp.lt.s32.totalorder %s21, 1
      %s337 = scalar_select %p336, %s21, 1
      %s338 = scalar_lea.vmem %s9, %s337
      %p339 = scmp.lt.s32.totalorder %s21, 1
      %s340 = scalar_select %p339, %s21, 1
      %s341 = smul.addr %s340, 2
      %s342 = scalar_lea.vmem %s0, %s341
      %p343 = scmp.lt.s32.totalorder %s21, 1
      %s344 = scalar_select %p343, %s21, 1
      %s345 = smul.addr %s344, 4
      %s346 = scalar_lea.vmem %s1, %s345
      %p347 = scmp.lt.s32.totalorder %s21, 1
      %s348 = scalar_select %p347, %s21, 1
      %s349 = smul.addr %s348, 4
      %s350 = scalar_lea.vmem %s8, %s349
      %p351 = scmp.lt.s32.totalorder %s21, 1
      %s352 = scalar_select %p351, %s21, 1
      %s353 = scalar_lea.vmem %s9, %s352
      %v355 = vld [vmem:[%s342] sm:$0x3]
      %356 = vst [vmem:[#allocation2] sm:$0x3f] 0.0
      %v357 = vld [vmem:[#allocation2 + $0x2] sm:$0xf]
      %v358 = vld [vmem:[%s2] sm:$0xf]
      %v359 = vld [vmem:[%s2 + $0x4] sm:$0xf]
      %v360 = vld [vmem:[%s2 + $0x8] sm:$0xf]
      %v361 = vld [vmem:[%s2 + $0xc] sm:$0xf]
      %v362 = vld [vmem:[%s2 + $0x10] sm:$0xf]
      %v363 = vld [vmem:[%s2 + $0x14] sm:$0xf]
      %v364 = vld [vmem:[%s2 + $0x18] sm:$0xf]
      %v365 = vld [vmem:[%s2 + $0x1c] sm:$0xf]
      %v374 = vunpack.c.l.b16 %v358
      %v375 = vunpack.c.l.b16 %v359
      %v376 = vunpack.c.l.b16 %v360
      %v377 = vunpack.c.l.b16 %v361
      %v378 = vunpack.c.l.b16 %v362
      %v379 = vunpack.c.l.b16 %v363
      %v380 = vunpack.c.l.b16 %v364
      %v381 = vunpack.c.l.b16 %v365
      %v382 = vpack.c.b16 %v375, %v374
      %v383 = vpack.c.b16 %v377, %v376
      %v384 = vpack.c.b16 %v379, %v378
      %v385 = vpack.c.b16 %v381, %v380
      %vm390 = vcmask 523264
      %v392 = vsel %vm390, %v355, 0
      %394 = vmatprep.subr.bf16.mxu0 0
      %395 = vmatpush1.bf16.msra.mxu0 %v382
      %396 = vmatprep.subr.bf16.mxu0 0
      %397 = vmatpush1.bf16.msra.mxu0 %v383
      %398 = vmatprep.subr.bf16.mxu0 0
      %399 = vmatpush1.bf16.msra.mxu0 %v384
      %400 = vmatprep.subr.bf16.mxu0 0
      %401 = vmatpush1.bf16.msra.mxu0 %v385
      %402 = vmatprep.subr.bf16.mxu0 0
      %403 = vmatpush1.bf16.msra.mxu0 0
      %404 = vmatprep.subr.bf16.mxu0 0
      %405 = vmatpush1.bf16.msra.mxu0 0
      %406 = vmatprep.subr.bf16.mxu0 0
      %407 = vmatpush1.bf16.msra.mxu0 0
      %408 = vmatprep.subr.bf16.mxu0 0
      %409 = vmatpush1.bf16.msra.mxu0 0
      %410 = vmatprep.subr.bf16.mxu0 0
      %411 = vmatpush1.bf16.msra.mxu0 0
      %412 = vmatprep.subr.bf16.mxu0 0
      %413 = vmatpush1.bf16.msra.mxu0 0
      %414 = vmatprep.subr.bf16.mxu0 0
      %415 = vmatpush1.bf16.msra.mxu0 0
      %416 = vmatprep.subr.bf16.mxu0 0
      %417 = vmatpush1.bf16.msra.mxu0 0
      %418 = vmatprep.subr.bf16.mxu0 0
      %419 = vmatpush1.bf16.msra.mxu0 0
      %420 = vmatprep.subr.bf16.mxu0 0
      %421 = vmatpush1.bf16.msra.mxu0 0
      %422 = vmatprep.subr.bf16.mxu0 0
      %423 = vmatpush1.bf16.msra.mxu0 0
      %424 = vmatprep.subr.bf16.mxu0 0
      %425 = vmatpush1.bf16.msra.mxu0 0
      %426 = vmatprep.mubr.bf16.mxu0 0
      %427 = vmatmul.mubr.bf16.gmra.mrb[0].mxu0 %v392
      %v428 = vpop.f32.mrb[0].mxu0
      %v429 = vadd.f32 0.0, %v428
      %v430 = vpop.f32.mrb[0].mxu0
      %v431 = vpop.f32.mrb[0].mxu0
      %v432 = vpop.f32.mrb[0].mxu0
      %433 = vdwg.mxu0
      %v434 = vadd.f32 %v357, %v429
      %435 = vst [vmem:[#allocation2 + $0x2] sm:$0xf] %v434
      %v436 = vld [vmem:[#allocation2 + $0x1] sm:$0xf]
      %s437 = scalar_lea.vmem %s2, 32
      %v438 = vld [vmem:[%s437] sm:$0xf]
      %v439 = vld [vmem:[%s437 + $0x4] sm:$0xf]
      %v440 = vld [vmem:[%s437 + $0x8] sm:$0xf]
      %v441 = vld [vmem:[%s437 + $0xc] sm:$0xf]
      %v442 = vld [vmem:[%s437 + $0x10] sm:$0xf]
      %v443 = vld [vmem:[%s437 + $0x14] sm:$0xf]
      %v444 = vld [vmem:[%s437 + $0x18] sm:$0xf]
      %v445 = vld [vmem:[%s437 + $0x1c] sm:$0xf]
      %v454 = vunpack.c.l.b16 %v438
      %v455 = vunpack.c.l.b16 %v439
      %v456 = vunpack.c.l.b16 %v440
      %v457 = vunpack.c.l.b16 %v441
      %v458 = vunpack.c.l.b16 %v442
      %v459 = vunpack.c.l.b16 %v443
      %v460 = vunpack.c.l.b16 %v444
      %v461 = vunpack.c.l.b16 %v445
      %v462 = vpack.c.b16 %v455, %v454
      %v463 = vpack.c.b16 %v457, %v456
      %v464 = vpack.c.b16 %v459, %v458
      %v465 = vpack.c.b16 %v461, %v460
      %470 = vmatprep.subr.bf16.mxu0 0
      %471 = vmatpush1.bf16.msra.mxu0 %v462
      %472 = vmatprep.subr.bf16.mxu0 0
      %473 = vmatpush1.bf16.msra.mxu0 %v463
      %474 = vmatprep.subr.bf16.mxu0 0
      %475 = vmatpush1.bf16.msra.mxu0 %v464
      %476 = vmatprep.subr.bf16.mxu0 0
      %477 = vmatpush1.bf16.msra.mxu0 %v465
      %478 = vmatprep.subr.bf16.mxu0 0
      %479 = vmatpush1.bf16.msra.mxu0 0
      %480 = vmatprep.subr.bf16.mxu0 0
      %481 = vmatpush1.bf16.msra.mxu0 0
      %482 = vmatprep.subr.bf16.mxu0 0
      %483 = vmatpush1.bf16.msra.mxu0 0
      %484 = vmatprep.subr.bf16.mxu0 0
      %485 = vmatpush1.bf16.msra.mxu0 0
      %486 = vmatprep.subr.bf16.mxu0 0
      %487 = vmatpush1.bf16.msra.mxu0 0
      %488 = vmatprep.subr.bf16.mxu0 0
      %489 = vmatpush1.bf16.msra.mxu0 0
      %490 = vmatprep.subr.bf16.mxu0 0
      %491 = vmatpush1.bf16.msra.mxu0 0
      %492 = vmatprep.subr.bf16.mxu0 0
      %493 = vmatpush1.bf16.msra.mxu0 0
      %494 = vmatprep.subr.bf16.mxu0 0
      %495 = vmatpush1.bf16.msra.mxu0 0
      %496 = vmatprep.subr.bf16.mxu0 0
      %497 = vmatpush1.bf16.msra.mxu0 0
      %498 = vmatprep.subr.bf16.mxu0 0
      %499 = vmatpush1.bf16.msra.mxu0 0
      %500 = vmatprep.subr.bf16.mxu0 0
      %501 = vmatpush1.bf16.msra.mxu0 0
      %502 = vmatprep.mubr.bf16.mxu0 0
      %503 = vmatmul.mubr.bf16.gmra.mrb[0].mxu0 %v392
      %v504 = vpop.f32.mrb[0].mxu0
      %v505 = vadd.f32 0.0, %v504
      %v506 = vpop.f32.mrb[0].mxu0
      %v507 = vpop.f32.mrb[0].mxu0
      %v508 = vpop.f32.mrb[0].mxu0
      %509 = vdwg.mxu0
      %v510 = vadd.f32 %v436, %v505
      %511 = vst [vmem:[#allocation2 + $0x1] sm:$0xf] %v510
      %v512 = vld [vmem:[#allocation2] sm:$0xf]
      %s513 = scalar_lea.vmem %s2, 64
      %v514 = vld [vmem:[%s513] sm:$0xf]
      %v515 = vld [vmem:[%s513 + $0x4] sm:$0xf]
      %v516 = vld [vmem:[%s513 + $0x8] sm:$0xf]
      %v517 = vld [vmem:[%s513 + $0xc] sm:$0xf]
      %v518 = vld [vmem:[%s513 + $0x10] sm:$0xf]
      %v519 = vld [vmem:[%s513 + $0x14] sm:$0xf]
      %v520 = vld [vmem:[%s513 + $0x18] sm:$0xf]
      %v521 = vld [vmem:[%s513 + $0x1c] sm:$0xf]
      %v530 = vunpack.c.l.b16 %v514
      %v531 = vunpack.c.l.b16 %v515
      %v532 = vunpack.c.l.b16 %v516
      %v533 = vunpack.c.l.b16 %v517
      %v534 = vunpack.c.l.b16 %v518
      %v535 = vunpack.c.l.b16 %v519
      %v536 = vunpack.c.l.b16 %v520
      %v537 = vunpack.c.l.b16 %v521
      %v538 = vpack.c.b16 %v531, %v530
      %v539 = vpack.c.b16 %v533, %v532
      %v540 = vpack.c.b16 %v535, %v534
      %v541 = vpack.c.b16 %v537, %v536
      %546 = vmatprep.subr.bf16.mxu0 0
      %547 = vmatpush1.bf16.msra.mxu0 %v538
      %548 = vmatprep.subr.bf16.mxu0 0
      %549 = vmatpush1.bf16.msra.mxu0 %v539
      %550 = vmatprep.subr.bf16.mxu0 0
      %551 = vmatpush1.bf16.msra.mxu0 %v540
      %552 = vmatprep.subr.bf16.mxu0 0
      %553 = vmatpush1.bf16.msra.mxu0 %v541
      %554 = vmatprep.subr.bf16.mxu0 0
      %555 = vmatpush1.bf16.msra.mxu0 0
      %556 = vmatprep.subr.bf16.mxu0 0
      %557 = vmatpush1.bf16.msra.mxu0 0
      %558 = vmatprep.subr.bf16.mxu0 0
      %559 = vmatpush1.bf16.msra.mxu0 0
      %560 = vmatprep.subr.bf16.mxu0 0
      %561 = vmatpush1.bf16.msra.mxu0 0
      %562 = vmatprep.subr.bf16.mxu0 0
      %563 = vmatpush1.bf16.msra.mxu0 0
      %564 = vmatprep.subr.bf16.mxu0 0
      %565 = vmatpush1.bf16.msra.mxu0 0
      %566 = vmatprep.subr.bf16.mxu0 0
      %567 = vmatpush1.bf16.msra.mxu0 0
      %568 = vmatprep.subr.bf16.mxu0 0
      %569 = vmatpush1.bf16.msra.mxu0 0
      %570 = vmatprep.subr.bf16.mxu0 0
      %571 = vmatpush1.bf16.msra.mxu0 0
      %572 = vmatprep.subr.bf16.mxu0 0
      %573 = vmatpush1.bf16.msra.mxu0 0
      %574 = vmatprep.subr.bf16.mxu0 0
      %575 = vmatpush1.bf16.msra.mxu0 0
      %576 = vmatprep.subr.bf16.mxu0 0
      %577 = vmatpush1.bf16.msra.mxu0 0
      %578 = vmatprep.mubr.bf16.mxu0 0
      %579 = vmatmul.mubr.bf16.gmra.mrb[0].mxu0 %v392
      %v580 = vpop.f32.mrb[0].mxu0
      %v581 = vadd.f32 0.0, %v580
      %v582 = vpop.f32.mrb[0].mxu0
      %v583 = vpop.f32.mrb[0].mxu0
      %v584 = vpop.f32.mrb[0].mxu0
      %585 = vdwg.mxu0
      %v586 = vadd.f32 %v512, %v581
      %587 = vst [vmem:[#allocation2] sm:$0xf] %v586
      %v588 = vld [vmem:[#allocation2 + $0x1] sm:$0xf]
      %v589 = vld [vmem:[%s3] sm:$0x1]
      %v591 = vlaneseq
      %v592 = vshrl.u32 %v591, 7
      %v593 = vsub.s32 0, %v592
      %v594 = vrot.slane %v589, %v593
      %v596 = vadd.f32 %v588, %v594
      %v597 = vmax.f32 %v596, 0.0
      %v598 = vpack.c.bf16 %v597, %v597
      %v599 = vld [vmem:[%s4] sm:$0xf]
      %v600 = vld [vmem:[%s4 + $0x4] sm:$0xf]
      %v601 = vld [vmem:[%s4 + $0x8] sm:$0xf]
      %v602 = vld [vmem:[%s4 + $0xc] sm:$0xf]
      %v603 = vld [vmem:[%s4 + $0x10] sm:$0xf]
      %v604 = vld [vmem:[%s4 + $0x14] sm:$0xf]
      %v605 = vld [vmem:[%s4 + $0x18] sm:$0xf]
      %v606 = vld [vmem:[%s4 + $0x1c] sm:$0xf]
      %v607 = vld [vmem:[%s4 + $0x20] sm:$0xf]
      %v608 = vld [vmem:[%s4 + $0x24] sm:$0xf]
      %v609 = vld [vmem:[%s4 + $0x28] sm:$0xf]
      %v610 = vld [vmem:[%s4 + $0x2c] sm:$0xf]
      %v611 = vld [vmem:[%s4 + $0x30] sm:$0xf]
      %v612 = vld [vmem:[%s4 + $0x34] sm:$0xf]
      %v613 = vld [vmem:[%s4 + $0x38] sm:$0xf]
      %v614 = vld [vmem:[%s4 + $0x3c] sm:$0xf]
      %v615 = vld [vmem:[%s5] sm:$0x1]
      %v617 = vlaneseq
      %v618 = vshrl.u32 %v617, 7
      %v619 = vsub.s32 0, %v618
      %v620 = vrot.slane %v615, %v619
      %v638 = vunpack.c.l.b16 %v599
      %v639 = vunpack.c.l.b16 %v600
      %v640 = vunpack.c.l.b16 %v601
      %v641 = vunpack.c.l.b16 %v602
      %v642 = vunpack.c.l.b16 %v603
      %v643 = vunpack.c.l.b16 %v604
      %v644 = vunpack.c.l.b16 %v605
      %v645 = vunpack.c.l.b16 %v606
      %v646 = vunpack.c.l.b16 %v607
      %v647 = vunpack.c.l.b16 %v608
      %v648 = vunpack.c.l.b16 %v609
      %v649 = vunpack.c.l.b16 %v610
      %v650 = vunpack.c.l.b16 %v611
      %v651 = vunpack.c.l.b16 %v612
      %v652 = vunpack.c.l.b16 %v613
      %v653 = vunpack.c.l.b16 %v614
      %v654 = vpack.c.b16 %v639, %v638
      %v655 = vpack.c.b16 %v641, %v640
      %v656 = vpack.c.b16 %v643, %v642
      %v657 = vpack.c.b16 %v645, %v644
      %v658 = vpack.c.b16 %v647, %v646
      %v659 = vpack.c.b16 %v649, %v648
      %v660 = vpack.c.b16 %v651, %v650
      %v661 = vpack.c.b16 %v653, %v652
      %670 = vmatprep.subr.bf16.mxu0 0
      %671 = vmatpush1.bf16.msra.mxu0 %v654
      %672 = vmatprep.subr.bf16.mxu0 0
      %673 = vmatpush1.bf16.msra.mxu0 %v655
      %674 = vmatprep.subr.bf16.mxu0 0
      %675 = vmatpush1.bf16.msra.mxu0 %v656
      %676 = vmatprep.subr.bf16.mxu0 0
      %677 = vmatpush1.bf16.msra.mxu0 %v657
      %678 = vmatprep.subr.bf16.mxu0 0
      %679 = vmatpush1.bf16.msra.mxu0 %v658
      %680 = vmatprep.subr.bf16.mxu0 0
      %681 = vmatpush1.bf16.msra.mxu0 %v659
      %682 = vmatprep.subr.bf16.mxu0 0
      %683 = vmatpush1.bf16.msra.mxu0 %v660
      %684 = vmatprep.subr.bf16.mxu0 0
      %685 = vmatpush1.bf16.msra.mxu0 %v661
      %686 = vmatprep.subr.bf16.mxu0 0
      %687 = vmatpush1.bf16.msra.mxu0 0
      %688 = vmatprep.subr.bf16.mxu0 0
      %689 = vmatpush1.bf16.msra.mxu0 0
      %690 = vmatprep.subr.bf16.mxu0 0
      %691 = vmatpush1.bf16.msra.mxu0 0
      %692 = vmatprep.subr.bf16.mxu0 0
      %693 = vmatpush1.bf16.msra.mxu0 0
      %694 = vmatprep.subr.bf16.mxu0 0
      %695 = vmatpush1.bf16.msra.mxu0 0
      %696 = vmatprep.subr.bf16.mxu0 0
      %697 = vmatpush1.bf16.msra.mxu0 0
      %698 = vmatprep.subr.bf16.mxu0 0
      %699 = vmatpush1.bf16.msra.mxu0 0
      %700 = vmatprep.subr.bf16.mxu0 0
      %701 = vmatpush1.bf16.msra.mxu0 0
      %702 = vmatprep.mubr.bf16.mxu0 0
      %703 = vmatmul.mubr.bf16.gmra.mrb[0].mxu0 %v598
      %v704 = vpop.f32.mrb[0].mxu0
      %v705 = vadd.f32 %v620, %v704
      %v706 = vpop.f32.mrb[0].mxu0
      %v707 = vpop.f32.mrb[0].mxu0
      %v708 = vpop.f32.mrb[0].mxu0
      %709 = vdwg.mxu0
      %v710 = vmax.f32 %v705, 0.0
      %v711 = vpack.c.bf16 %v710, %v710
      %712 = vst [vmem:[#allocation3] sm:$0x3f] 0.0
      %v713 = vld [vmem:[#allocation3 + $0x2] sm:$0xf]
      %v714 = vld [vmem:[%s6] sm:$0xf]
      %v715 = vld [vmem:[%s6 + $0x4] sm:$0xf]
      %v716 = vld [vmem:[%s6 + $0x8] sm:$0xf]
      %v717 = vld [vmem:[%s6 + $0xc] sm:$0xf]
      %v718 = vld [vmem:[%s6 + $0x10] sm:$0xf]
      %v719 = vld [vmem:[%s6 + $0x14] sm:$0xf]
      %v720 = vld [vmem:[%s6 + $0x18] sm:$0xf]
      %v721 = vld [vmem:[%s6 + $0x1c] sm:$0xf]
      %v722 = vld [vmem:[%s6 + $0x20] sm:$0xf]
      %v723 = vld [vmem:[%s6 + $0x24] sm:$0xf]
      %v724 = vld [vmem:[%s6 + $0x28] sm:$0xf]
      %v725 = vld [vmem:[%s6 + $0x2c] sm:$0xf]
      %v726 = vld [vmem:[%s6 + $0x30] sm:$0xf]
      %v727 = vld [vmem:[%s6 + $0x34] sm:$0xf]
      %v728 = vld [vmem:[%s6 + $0x38] sm:$0xf]
      %v729 = vld [vmem:[%s6 + $0x3c] sm:$0xf]
      %v746 = vunpack.c.l.b16 %v714
      %v747 = vunpack.c.l.b16 %v715
      %v748 = vunpack.c.l.b16 %v716
      %v749 = vunpack.c.l.b16 %v717
      %v750 = vunpack.c.l.b16 %v718
      %v751 = vunpack.c.l.b16 %v719
      %v752 = vunpack.c.l.b16 %v720
      %v753 = vunpack.c.l.b16 %v721
      %v754 = vunpack.c.l.b16 %v722
      %v755 = vunpack.c.l.b16 %v723
      %v756 = vunpack.c.l.b16 %v724
      %v757 = vunpack.c.l.b16 %v725
      %v758 = vunpack.c.l.b16 %v726
      %v759 = vunpack.c.l.b16 %v727
      %v760 = vunpack.c.l.b16 %v728
      %v761 = vunpack.c.l.b16 %v729
      %v762 = vpack.c.b16 %v747, %v746
      %v763 = vpack.c.b16 %v749, %v748
      %v764 = vpack.c.b16 %v751, %v750
      %v765 = vpack.c.b16 %v753, %v752
      %v766 = vpack.c.b16 %v755, %v754
      %v767 = vpack.c.b16 %v757, %v756
      %v768 = vpack.c.b16 %v759, %v758
      %v769 = vpack.c.b16 %v761, %v760
      %778 = vmatprep.subr.bf16.mxu0 0
      %779 = vmatpush1.bf16.msra.mxu0 %v762
      %780 = vmatprep.subr.bf16.mxu0 0
      %781 = vmatpush1.bf16.msra.mxu0 %v763
      %782 = vmatprep.subr.bf16.mxu0 0
      %783 = vmatpush1.bf16.msra.mxu0 %v764
      %784 = vmatprep.subr.bf16.mxu0 0
      %785 = vmatpush1.bf16.msra.mxu0 %v765
      %786 = vmatprep.subr.bf16.mxu0 0
      %787 = vmatpush1.bf16.msra.mxu0 %v766
      %788 = vmatprep.subr.bf16.mxu0 0
      %789 = vmatpush1.bf16.msra.mxu0 %v767
      %790 = vmatprep.subr.bf16.mxu0 0
      %791 = vmatpush1.bf16.msra.mxu0 %v768
      %792 = vmatprep.subr.bf16.mxu0 0
      %793 = vmatpush1.bf16.msra.mxu0 %v769
      %794 = vmatprep.subr.bf16.mxu0 0
      %795 = vmatpush1.bf16.msra.mxu0 0
      %796 = vmatprep.subr.bf16.mxu0 0
      %797 = vmatpush1.bf16.msra.mxu0 0
      %798 = vmatprep.subr.bf16.mxu0 0
      %799 = vmatpush1.bf16.msra.mxu0 0
      %800 = vmatprep.subr.bf16.mxu0 0
      %801 = vmatpush1.bf16.msra.mxu0 0
      %802 = vmatprep.subr.bf16.mxu0 0
      %803 = vmatpush1.bf16.msra.mxu0 0
      %804 = vmatprep.subr.bf16.mxu0 0
      %805 = vmatpush1.bf16.msra.mxu0 0
      %806 = vmatprep.subr.bf16.mxu0 0
      %807 = vmatpush1.bf16.msra.mxu0 0
      %808 = vmatprep.subr.bf16.mxu0 0
      %809 = vmatpush1.bf16.msra.mxu0 0
      %810 = vmatprep.mubr.bf16.mxu0 0
      %811 = vmatmul.mubr.bf16.gmra.mrb[0].mxu0 %v711
      %v812 = vpop.f32.mrb[0].mxu0
      %v813 = vadd.f32 0.0, %v812
      %v814 = vpop.f32.mrb[0].mxu0
      %v815 = vpop.f32.mrb[0].mxu0
      %v816 = vpop.f32.mrb[0].mxu0
      %817 = vdwg.mxu0
      %v818 = vadd.f32 %v713, %v813
      %819 = vst [vmem:[#allocation3 + $0x2] sm:$0xf] %v818
      %v820 = vld [vmem:[#allocation3 + $0x1] sm:$0xf]
      %s821 = scalar_lea.vmem %s6, 64
      %v822 = vld [vmem:[%s821] sm:$0xf]
      %v823 = vld [vmem:[%s821 + $0x4] sm:$0xf]
      %v824 = vld [vmem:[%s821 + $0x8] sm:$0xf]
      %v825 = vld [vmem:[%s821 + $0xc] sm:$0xf]
      %v826 = vld [vmem:[%s821 + $0x10] sm:$0xf]
      %v827 = vld [vmem:[%s821 + $0x14] sm:$0xf]
      %v828 = vld [vmem:[%s821 + $0x18] sm:$0xf]
      %v829 = vld [vmem:[%s821 + $0x1c] sm:$0xf]
      %v830 = vld [vmem:[%s821 + $0x20] sm:$0xf]
      %v831 = vld [vmem:[%s821 + $0x24] sm:$0xf]
      %v832 = vld [vmem:[%s821 + $0x28] sm:$0xf]
      %v833 = vld [vmem:[%s821 + $0x2c] sm:$0xf]
      %v834 = vld [vmem:[%s821 + $0x30] sm:$0xf]
      %v835 = vld [vmem:[%s821 + $0x34] sm:$0xf]
      %v836 = vld [vmem:[%s821 + $0x38] sm:$0xf]
      %v837 = vld [vmem:[%s821 + $0x3c] sm:$0xf]
      %v854 = vunpack.c.l.b16 %v822
      %v855 = vunpack.c.l.b16 %v823
      %v856 = vunpack.c.l.b16 %v824
      %v857 = vunpack.c.l.b16 %v825
      %v858 = vunpack.c.l.b16 %v826
      %v859 = vunpack.c.l.b16 %v827
      %v860 = vunpack.c.l.b16 %v828
      %v861 = vunpack.c.l.b16 %v829
      %v862 = vunpack.c.l.b16 %v830
      %v863 = vunpack.c.l.b16 %v831
      %v864 = vunpack.c.l.b16 %v832
      %v865 = vunpack.c.l.b16 %v833
      %v866 = vunpack.c.l.b16 %v834
      %v867 = vunpack.c.l.b16 %v835
      %v868 = vunpack.c.l.b16 %v836
      %v869 = vunpack.c.l.b16 %v837
      %v870 = vpack.c.b16 %v855, %v854
      %v871 = vpack.c.b16 %v857, %v856
      %v872 = vpack.c.b16 %v859, %v858
      %v873 = vpack.c.b16 %v861, %v860
      %v874 = vpack.c.b16 %v863, %v862
      %v875 = vpack.c.b16 %v865, %v864
      %v876 = vpack.c.b16 %v867, %v866
      %v877 = vpack.c.b16 %v869, %v868
      %886 = vmatprep.subr.bf16.mxu0 0
      %887 = vmatpush1.bf16.msra.mxu0 %v870
      %888 = vmatprep.subr.bf16.mxu0 0
      %889 = vmatpush1.bf16.msra.mxu0 %v871
      %890 = vmatprep.subr.bf16.mxu0 0
      %891 = vmatpush1.bf16.msra.mxu0 %v872
      %892 = vmatprep.subr.bf16.mxu0 0
      %893 = vmatpush1.bf16.msra.mxu0 %v873
      %894 = vmatprep.subr.bf16.mxu0 0
      %895 = vmatpush1.bf16.msra.mxu0 %v874
      %896 = vmatprep.subr.bf16.mxu0 0
      %897 = vmatpush1.bf16.msra.mxu0 %v875
      %898 = vmatprep.subr.bf16.mxu0 0
      %899 = vmatpush1.bf16.msra.mxu0 %v876
      %900 = vmatprep.subr.bf16.mxu0 0
      %901 = vmatpush1.bf16.msra.mxu0 %v877
      %902 = vmatprep.subr.bf16.mxu0 0
      %903 = vmatpush1.bf16.msra.mxu0 0
      %904 = vmatprep.subr.bf16.mxu0 0
      %905 = vmatpush1.bf16.msra.mxu0 0
      %906 = vmatprep.subr.bf16.mxu0 0
      %907 = vmatpush1.bf16.msra.mxu0 0
      %908 = vmatprep.subr.bf16.mxu0 0
      %909 = vmatpush1.bf16.msra.mxu0 0
      %910 = vmatprep.subr.bf16.mxu0 0
      %911 = vmatpush1.bf16.msra.mxu0 0
      %912 = vmatprep.subr.bf16.mxu0 0
      %913 = vmatpush1.bf16.msra.mxu0 0
      %914 = vmatprep.subr.bf16.mxu0 0
      %915 = vmatpush1.bf16.msra.mxu0 0
      %916 = vmatprep.subr.bf16.mxu0 0
      %917 = vmatpush1.bf16.msra.mxu0 0
      %918 = vmatprep.mubr.bf16.mxu0 0
      %919 = vmatmul.mubr.bf16.gmra.mrb[0].mxu0 %v711
      %v920 = vpop.f32.mrb[0].mxu0
      %v921 = vadd.f32 0.0, %v920
      %v922 = vpop.f32.mrb[0].mxu0
      %v923 = vpop.f32.mrb[0].mxu0
      %v924 = vpop.f32.mrb[0].mxu0
      %925 = vdwg.mxu0
      %v926 = vadd.f32 %v820, %v921
      %927 = vst [vmem:[#allocation3 + $0x1] sm:$0xf] %v926
      %v928 = vld [vmem:[#allocation3] sm:$0xf]
      %s929 = scalar_lea.vmem %s6, 128
      %v930 = vld [vmem:[%s929] sm:$0xf]
      %v931 = vld [vmem:[%s929 + $0x4] sm:$0xf]
      %v932 = vld [vmem:[%s929 + $0x8] sm:$0xf]
      %v933 = vld [vmem:[%s929 + $0xc] sm:$0xf]
      %v934 = vld [vmem:[%s929 + $0x10] sm:$0xf]
      %v935 = vld [vmem:[%s929 + $0x14] sm:$0xf]
      %v936 = vld [vmem:[%s929 + $0x18] sm:$0xf]
      %v937 = vld [vmem:[%s929 + $0x1c] sm:$0xf]
      %v938 = vld [vmem:[%s929 + $0x20] sm:$0xf]
      %v939 = vld [vmem:[%s929 + $0x24] sm:$0xf]
      %v940 = vld [vmem:[%s929 + $0x28] sm:$0xf]
      %v941 = vld [vmem:[%s929 + $0x2c] sm:$0xf]
      %v942 = vld [vmem:[%s929 + $0x30] sm:$0xf]
      %v943 = vld [vmem:[%s929 + $0x34] sm:$0xf]
      %v944 = vld [vmem:[%s929 + $0x38] sm:$0xf]
      %v945 = vld [vmem:[%s929 + $0x3c] sm:$0xf]
      %v962 = vunpack.c.l.b16 %v930
      %v963 = vunpack.c.l.b16 %v931
      %v964 = vunpack.c.l.b16 %v932
      %v965 = vunpack.c.l.b16 %v933
      %v966 = vunpack.c.l.b16 %v934
      %v967 = vunpack.c.l.b16 %v935
      %v968 = vunpack.c.l.b16 %v936
      %v969 = vunpack.c.l.b16 %v937
      %v970 = vunpack.c.l.b16 %v938
      %v971 = vunpack.c.l.b16 %v939
      %v972 = vunpack.c.l.b16 %v940
      %v973 = vunpack.c.l.b16 %v941
      %v974 = vunpack.c.l.b16 %v942
      %v975 = vunpack.c.l.b16 %v943
      %v976 = vunpack.c.l.b16 %v944
      %v977 = vunpack.c.l.b16 %v945
      %v978 = vpack.c.b16 %v963, %v962
      %v979 = vpack.c.b16 %v965, %v964
      %v980 = vpack.c.b16 %v967, %v966
      %v981 = vpack.c.b16 %v969, %v968
      %v982 = vpack.c.b16 %v971, %v970
      %v983 = vpack.c.b16 %v973, %v972
      %v984 = vpack.c.b16 %v975, %v974
      %v985 = vpack.c.b16 %v977, %v976
      %994 = vmatprep.subr.bf16.mxu0 0
      %995 = vmatpush1.bf16.msra.mxu0 %v978
      %996 = vmatprep.subr.bf16.mxu0 0
      %997 = vmatpush1.bf16.msra.mxu0 %v979
      %998 = vmatprep.subr.bf16.mxu0 0
      %999 = vmatpush1.bf16.msra.mxu0 %v980
      %1000 = vmatprep.subr.bf16.mxu0 0
      %1001 = vmatpush1.bf16.msra.mxu0 %v981
      %1002 = vmatprep.subr.bf16.mxu0 0
      %1003 = vmatpush1.bf16.msra.mxu0 %v982
      %1004 = vmatprep.subr.bf16.mxu0 0
      %1005 = vmatpush1.bf16.msra.mxu0 %v983
      %1006 = vmatprep.subr.bf16.mxu0 0
      %1007 = vmatpush1.bf16.msra.mxu0 %v984
      %1008 = vmatprep.subr.bf16.mxu0 0
      %1009 = vmatpush1.bf16.msra.mxu0 %v985
      %1010 = vmatprep.subr.bf16.mxu0 0
      %1011 = vmatpush1.bf16.msra.mxu0 0
      %1012 = vmatprep.subr.bf16.mxu0 0
      %1013 = vmatpush1.bf16.msra.mxu0 0
      %1014 = vmatprep.subr.bf16.mxu0 0
      %1015 = vmatpush1.bf16.msra.mxu0 0
      %1016 = vmatprep.subr.bf16.mxu0 0
      %1017 = vmatpush1.bf16.msra.mxu0 0
      %1018 = vmatprep.subr.bf16.mxu0 0
      %1019 = vmatpush1.bf16.msra.mxu0 0
      %1020 = vmatprep.subr.bf16.mxu0 0
      %1021 = vmatpush1.bf16.msra.mxu0 0
      %1022 = vmatprep.subr.bf16.mxu0 0
      %1023 = vmatpush1.bf16.msra.mxu0 0
      %1024 = vmatprep.subr.bf16.mxu0 0
      %1025 = vmatpush1.bf16.msra.mxu0 0
      %1026 = vmatprep.mubr.bf16.mxu0 0
      %1027 = vmatmul.mubr.bf16.gmra.mrb[0].mxu0 %v711
      %v1028 = vpop.f32.mrb[0].mxu0
      %v1029 = vadd.f32 0.0, %v1028
      %v1030 = vpop.f32.mrb[0].mxu0
      %v1031 = vpop.f32.mrb[0].mxu0
      %v1032 = vpop.f32.mrb[0].mxu0
      %1033 = vdwg.mxu0
      %v1034 = vadd.f32 %v928, %v1029
      %1035 = vst [vmem:[#allocation3] sm:$0xf] %v1034
      %v1036 = vld [vmem:[#allocation3 + $0x1] sm:$0xf]
      %v1037 = vld [vmem:[%s7] sm:$0x1]
      %v1039 = vlaneseq
      %v1040 = vshrl.u32 %v1039, 7
      %v1041 = vsub.s32 0, %v1040
      %v1042 = vrot.slane %v1037, %v1041
      %v1044 = vadd.f32 %v1036, %v1042
      %v1045 = vadd.f32 %v1044, 2.0
      %v1046 = vsub.f32 0.0, %v1045
      %v1047 = vmax.f32 %v1046, 0.0
      %v1048 = vand.u32 2147483647, %v1046
      %v1049 = vsub.f32 0.0, %v1048
      %v1050 = vmul.f32 %v1049, 1.442695
      %v1051 = vpow.pop %v1050
      %v1052 = vadd.f32 %v1051, 1.0
      %v1053 = vlog2.pop %v1052
      %v1054 = vmul.f32 %v1053, 0.6931472
      %v1055 = vadd.f32 %v1047, %v1054
      %v1056 = vsub.f32 0.0, %v1055
      %v1057 = vmul.f32 %v1056, 1.442695
      %v1058 = vpow.pop %v1057
      %v1059 = vld [vmem:[%s346] sm:$0xf]
      %v1060 = vadd.f32 %v1059, %v1044
      %1062 = vrot.lane.b32.xlu0 %v1058, 64
      %v1063 = vpop.permute.xlu0 %1062
      %v1065 = vmul.f32 %v1060, %v1063
      %vm1066 = vcmask 519168
      %1067 = vst.msk [vmem:[%s350] sm:$0xf] %vm1066, %v1065
      %1069 = vrot.lane.b32.xlu0 %v1056, 64
      %v1070 = vpop.permute.xlu0 %1069
      %v1072 = vsel %vm1066, %v1070, 0.0
      %1073 = vadd.xlane.f32.xlu0 %v1072
      %v1074 = vpop.xlane.xlu0 %1073
      %v1075 = vrot.slane %v1074, 4
      %v1076 = vadd.f32 %v1074, %v1075
      %v1077 = vrot.slane %v1076, 2
      %v1078 = vadd.f32 %v1076, %v1077
      %v1079 = vrot.slane %v1078, 1
      %v1080 = vadd.f32 %v1078, %v1079
      %s1081 = vtos %v1080
      %v1082 = vstv %s1081
      %1083 = vst [vmem:[%s353] sm:$0x1] %v1082
      %p1084 = scmp.lt.s32.totalorder %s21, 1
      %s1085 = scalar_select %p1084, %s21, 1
      %s1086 = smul.addr %s1085, 4
      %s1087 = scalar_lea.vmem %s8, %s1086
      %p1088 = scmp.lt.s32.totalorder %s21, 1
      %s1089 = scalar_select %p1088, %s21, 1
      %s1090 = scalar_lea.vmem %s9, %s1089
      // Predicated region
      $region53: #{flow_model_forward.14} parent=51 // pred_check
        %p1091 = pneg %p217
      $region54: #{flow_model_forward.14} parent=51 // pred_check_branch
        %1093 = sbr.rel (%p1091) target = $region56
      $region55: #{flow_model_forward.14} parent=51 // pred_region
        _
      $region56: #{flow_model_forward.14} parent=51 // pred_fallthru
        _
      // Predicated region
      $region57: #{flow_model_forward.14} parent=51 // pred_check
        %p1094 = pneg %p243
      $region58: #{flow_model_forward.14} parent=51 // pred_check_branch
        %1096 = sbr.rel (%p1094) target = $region60
      $region59: #{flow_model_forward.14} parent=51 // pred_region
        _
      $region60: #{flow_model_forward.14} parent=51 // pred_fallthru
        _
    $region52: #{flow_model_forward.14} parent=5 // pred_fallthru
      _
    %p1097 = scmp.le.s32.totalorder 2, %s16
    // Predicated region
    $region61: #{flow_model_forward.14} parent=5 // pred_check
      %p1098 = pneg %p1097
    $region62: #{flow_model_forward.14} parent=5 // pred_check_branch
      %1100 = sbr.rel (%p1098) target = $region64
    $region63: #{flow_model_forward.14} parent=5 // pred_region
      %s1101 = ssub.s32 %s16, 2
      // Predicated region
      $region65: #{flow_model_forward.14} parent=63 // pred_check
        %p1102 = pneg %p223
      $region66: #{flow_model_forward.14} parent=63 // pred_check_branch
        %1104 = sbr.rel (%p1102) target = $region68
      $region67: #{flow_model_forward.14} parent=63 // pred_region
        %p1105 = scmp.lt.s32.totalorder %s22, 1
        %s1106 = scalar_select %p1105, %s22, 1
        %s1107 = smul.addr %s1106, 4
        %s1108 = scalar_lea.vmem %s8, %s1107
      $region68: #{flow_model_forward.14} parent=63 // pred_fallthru
        _
      // Predicated region
      $region69: #{flow_model_forward.14} parent=63 // pred_check
        %p1109 = pneg %p249
      $region70: #{flow_model_forward.14} parent=63 // pred_check_branch
        %1111 = sbr.rel (%p1109) target = $region72
      $region71: #{flow_model_forward.14} parent=63 // pred_region
        %p1112 = scmp.lt.s32.totalorder %s22, 1
        %s1113 = scalar_select %p1112, %s22, 1
        %s1114 = scalar_lea.vmem %s9, %s1113
      $region72: #{flow_model_forward.14} parent=63 // pred_fallthru
        _
    $region64: #{flow_model_forward.14} parent=5 // pred_fallthru
      _
  $region6: #{flow_model_forward.14} parent=0 // loop_footer
    %s20 = sadd.s32 1, %s16
  $region7: #{flow_model_forward.14} parent=0 // loop_footer_branch
    %15 = sbr.rel target = $region3
  $region8: #{flow_model_forward.14} parent=0 // loop_exit
    _

</llo_original>
